<compile_context>
chip_gen: v5e
topology: v5e:2x2
jax: 0.10.0
libtpu: 0.0.40
codegen_flags: <defaults>
</compile_context>

<pallas_src>
import math

import jax
import jax.numpy as jnp
from jax.experimental import pallas as pl
from jax.experimental.pallas import tpu as pltpu


_SQRT_2_OVER_PI = math.sqrt(2.0 / math.pi)


def _gelu(x):
    # tanh-approximate GELU (same formula in kernels and reference).
    # NOTE: on v6e/v7x, if the edge kernel ever becomes VALU-bound after the bf16-EF change,
    # the cheaper x*sigmoid(1.702x) form (EUP transcendental, ~3x fewer VALU ops) can be
    # substituted here at a small accuracy cost.
    return 0.5 * x * (1.0 + jnp.tanh(_SQRT_2_OVER_PI * (x + 0.044715 * x * x * x)))


def _round_up(x, m):
    return ((x + m - 1) // m) * m


def _tpu_vmem_budget():
    """(edge-feature block budget, vmem_limit_bytes), derived per TPU generation."""
    try:
        cap = int(pltpu.get_tpu_info().vmem_capacity_bytes)
    except Exception:
        cap = 64 << 20                      # conservative (v7x-sized) fallback
    if cap >= (100 << 20):                  # v5e / v6e: 128 MiB physical VMEM
        return 12 << 20, 96 << 20
    return 8 << 20, 48 << 20                # v7x: 64 MiB physical VMEM


# ----------------------------------------------------------------------------
# Kernel 1: per-node fused projections with packed block-diagonal weights.
#   h1        = gelu(x @ [W1_q | W1_k] + [b1_q | b1_k])              (Tr, 2E)
#   [q | k]   = h1 @ blockdiag(W2_q, W2_k) + [b2_q | b2_k]           (Tr, K)
#   [Hq | Hk] = gelu([q | k]) @ blockdiag(W1e_q, W1e_k) + [0 | b1_e] (Tr, 2K)
# ----------------------------------------------------------------------------
def _node_proj_kernel(x_ref, w1_ref, b1_ref, w2_ref, b2_ref, w3_ref, b3_ref, out_ref):
    x = x_ref[...]
    h1 = _gelu(jnp.dot(x, w1_ref[...], preferred_element_type=jnp.float32) + b1_ref[...])
    qk = jnp.dot(h1, w2_ref[...], preferred_element_type=jnp.float32) + b2_ref[...]
    out_ref[...] = (jnp.dot(_gelu(qk), w3_ref[...], preferred_element_type=jnp.float32)
                    + b3_ref[...]).astype(out_ref.dtype)


def _node_proj_pallas(x, params):
    rows, E = x.shape
    K = params['e1_b'].shape[0]
    Kh = K // 2
    f32 = jnp.float32

    # Pack q/k projection weights.
    w1 = jnp.concatenate([params['q1_w'], params['k1_w']], axis=1)                 # (E, 2E)
    b1 = jnp.concatenate([params['q1_b'], params['k1_b']]).reshape(1, 2 * E)
    z_ek = jnp.zeros((E, Kh), f32)
    w2 = jnp.concatenate(
        [jnp.concatenate([params['q2_w'], z_ek], axis=1),
         jnp.concatenate([z_ek, params['k2_w']], axis=1)], axis=0)                 # (2E, K)
    b2 = jnp.concatenate([params['q2_b'], params['k2_b']]).reshape(1, K)
    z_kk = jnp.zeros((Kh, K), f32)
    w3 = jnp.concatenate(
        [jnp.concatenate([params['e1_w'][:Kh], z_kk], axis=1),
         jnp.concatenate([z_kk, params['e1_w'][Kh:K]], axis=1)], axis=0)           # (K, 2K)
    b3 = jnp.concatenate([jnp.zeros((K,), f32), params['e1_b']]).reshape(1, 2 * K)

    # One block when rows are small; otherwise 1024-row tiles with a ragged (clipped) tail.
    Tr = rows if rows <= 1024 else 1024
    grid_r = pl.cdiv(rows, Tr)

    _, vmem_limit = _tpu_vmem_budget()

    def _w(shape):
        return pl.BlockSpec(shape, lambda r: (0, 0))

    cost = pl.CostEstimate(
        flops=int(2 * rows * (E * 2 * E + 2 * E * K + K * 2 * K)),
        transcendentals=int(rows * (2 * E + K)),
        bytes_accessed=int(4 * (rows * (E + 2 * K)
                                + E * 2 * E + 2 * E * K + K * 2 * K + 2 * E + 5 * K)))

    out = pl.pallas_call(
        _node_proj_kernel,
        out_shape=jax.ShapeDtypeStruct((rows, 2 * K), jnp.float32),
        grid=(grid_r,),
        in_specs=[
            pl.BlockSpec((Tr, E), lambda r: (r, 0)),
            _w((E, 2 * E)), _w((1, 2 * E)),
            _w((2 * E, K)), _w((1, K)),
            _w((K, 2 * K)), _w((1, 2 * K)),
        ],
        out_specs=pl.BlockSpec((Tr, 2 * K), lambda r: (r, 0)),
        compiler_params=pltpu.CompilerParams(
            dimension_semantics=("parallel",),
            vmem_limit_bytes=vmem_limit),
        cost_estimate=cost,
    )(x, w1, b1, w2, b2, w3, b3)

    return out[:, :K], out[:, K:]


# ----------------------------------------------------------------------------
# Kernel 2: per-edge fused MLP (the hot loop, O(B*N^2*K^2) FLOPs)
#   hidden[i,j] = gelu(EF[i,j] @ W1_e + Hq[i] + Hk[j])      (e_proj bias folded into Hk)
#   out[i,j]    = where(mask[i,j], hidden[i,j] . w2 + b2, 0)
# ----------------------------------------------------------------------------
def _edge_scale_kernel(hq_ref, hk_ref, ef_ref, mask_ref, w1e_ref, w2_ref, b2_ref, out_ref):
    # hq_ref  : (1, Ti, K)      per-row (i) contribution, f32
    # hk_ref  : (1, N,  K)      per-col (j) contribution (e_proj bias b1 folded in), f32
    # ef_ref  : (1, Ti, N, K)   edge-feature block, NATIVE dtype (f32 or bf16)
    # mask_ref: (1, Ti, N)      bool non-padding mask
    # w1e_ref : (K, K) in ef dtype; w2_ref: (1, K) f32; b2_ref: (1, 1) f32
    # out_ref : (1, Ti, Nj_out) with Nj_out = round_up(N, 128) (lane-dense store)
    ti = hq_ref.shape[1]
    nj = hk_ref.shape[1]
    kk = w1e_ref.shape[0]
    nj_out = out_ref.shape[2]

    ef = ef_ref[0].reshape(ti * nj, kk)                               # (Ti*N, K), native dtype
    he = jnp.dot(ef, w1e_ref[...], preferred_element_type=jnp.float32)   # MXU, f32 accum
    h = he.reshape(ti, nj, kk) + hq_ref[0][:, None, :] + hk_ref[0][None, :, :]
    h = _gelu(h)
    s = jnp.sum(h * w2_ref[...], axis=-1) + b2_ref[...]               # (Ti, N), XLU lane-reduce
    s = jnp.where(mask_ref[0], s, 0.0)                                # exact masked_fill
    if nj_out > nj:   # zero-extend to a lane-dense (x128) store; wrapper slices it back
        s = jnp.concatenate([s, jnp.zeros((ti, nj_out - nj), s.dtype)], axis=-1)
    out_ref[0] = s.astype(out_ref.dtype)


def _edge_scale_pallas(hq, hk, edge_features, edge_mask, w1e, w2_row, b2):
    B, N, K = hq.shape
    ef_itemsize = jnp.dtype(edge_features.dtype).itemsize

    ef_block_budget, vmem_limit = _tpu_vmem_budget()

    # Largest i-tile whose edge-feature block (double-buffered by the pipeline) fits the budget.
    row_bytes = max(1, N * K * ef_itemsize)
    ti = max(1, ef_block_budget // row_bytes)
    if ti >= N:
        Ti = N
    else:
        Ti = max(8, (ti // 8) * 8)
    # v7x megacore: make sure there are at least 2 parallel grid steps when feasible.
    if B * pl.cdiv(N, Ti) < 2 and N >= 16:
        Ti = max(8, ((pl.cdiv(N, 2) + 7) // 8) * 8)
    grid_i = pl.cdiv(N, Ti)

    Nj_out = _round_up(N, 128)            # lane-dense output last dim (padded in-kernel only)

    w1e = w1e.astype(edge_features.dtype)                 # tiny; keeps the MXU dot single-dtype
    w2 = w2_row.reshape(1, K).astype(jnp.float32)
    b2 = jnp.asarray(b2, jnp.float32).reshape(1, 1)

    cost = pl.CostEstimate(
        flops=int(2 * B * N * N * K * (K + 1)),
        transcendentals=int(B * N * N * K),
        bytes_accessed=int(B * N * N * K * ef_itemsize            # edge features
                           + B * N * N * 1                        # bool mask
                           + B * N * Nj_out * 4                   # output
                           + 2 * B * N * K * 4                    # hq / hk
                           + K * K * ef_itemsize + 4 * K + 4))

    out = pl.pallas_call(
        _edge_scale_kernel,
        out_shape=jax.ShapeDtypeStruct((B, N, Nj_out), jnp.float32),
        grid=(B, grid_i),
        in_specs=[
            pl.BlockSpec((1, Ti, K), lambda b, i: (b, i, 0)),       # hq
            pl.BlockSpec((1, N, K), lambda b, i: (b, 0, 0)),        # hk (full j extent)
            pl.BlockSpec((1, Ti, N, K), lambda b, i: (b, i, 0, 0)),  # edge features, native dtype
            pl.BlockSpec((1, Ti, N), lambda b, i: (b, i, 0)),       # bool non-padding mask
            pl.BlockSpec((K, K), lambda b, i: (0, 0)),
            pl.BlockSpec((1, K), lambda b, i: (0, 0)),
            pl.BlockSpec((1, 1), lambda b, i: (0, 0)),
        ],
        out_specs=pl.BlockSpec((1, Ti, Nj_out), lambda b, i: (b, i, 0)),
        compiler_params=pltpu.CompilerParams(
            dimension_semantics=("parallel", "parallel"),
            vmem_limit_bytes=vmem_limit),
        cost_estimate=cost,
    )(hq, hk, edge_features, edge_mask, w1e, w2, b2)

    if Nj_out != N:
        out = out[:, :, :N]
    return out


# ----------------------------------------------------------------------------
# sphere_fit: O(B*N) batched 3x3 linear algebra + mask bookkeeping (plain JAX).
# ----------------------------------------------------------------------------
def _sphere_fit(fit_scale_pred, delta_pos, edge_non_padding_mask,
                drop_edge_mask, drop_or_add, non_fix_atom_mask):
    npm = edge_non_padding_mask                        # (B, N, N) bool
    dem = drop_edge_mask                               # (N, N) bool
    eps = 1e-5

    if drop_or_add:
        fsp = jnp.where(dem[None], 0.0, fit_scale_pred)          # in-place masked_fill_
        pc = delta_pos * fsp[..., None]
        eec = (npm & ~dem[None]).sum(axis=2).astype(jnp.float32) + eps
        v3 = ((pc ** 2).sum(-1, keepdims=True) * pc).sum(axis=2) / eec[..., None]
        a1 = jnp.einsum('bijx,bijy->bixy', pc, pc) / eec[..., None, None]
        fsp_out = fsp
    else:
        fsp = fit_scale_pred
        pc = delta_pos * fsp[..., None]
        fsp_add = jnp.where(~dem[None], 0.0, fsp)
        pca = delta_pos * fsp_add[..., None]
        eec = jnp.where(npm, npm.astype(jnp.int32) + dem[None].astype(jnp.int32),
                        0).sum(axis=2).astype(jnp.float32) + eps
        v3 = (((pc ** 2).sum(-1, keepdims=True) * pc).sum(axis=2)
              + ((pca ** 2).sum(-1, keepdims=True) * pca).sum(axis=2)) / eec[..., None]
        a1 = (jnp.einsum('bijx,bijy->bixy', pc, pc)
              + jnp.einsum('bijx,bijy->bixy', pca, pca)) / eec[..., None, None]
        fsp_out = fit_scale_pred

    untrust = (eec / (npm.sum(axis=2).astype(jnp.float32) + eps)) < 0.3
    eye = jnp.eye(3, dtype=a1.dtype)
    a1 = jnp.where(non_fix_atom_mask[..., None, None], a1, eye)

    # Deterministic version of the torch try/except singular fallback.
    is_sing = jnp.abs(jnp.linalg.det(a1)) < 1e-15
    a1 = jnp.where(is_sing[..., None, None], eye, a1)
    center = jnp.linalg.inv(2.0 * a1) @ v3[..., None]
    pos_shift = 2.0 * center[..., 0]
    pos_shift = jnp.where(is_sing[..., None], 0.0, pos_shift)
    pos_shift = jnp.where(untrust[..., None], 0.0, pos_shift)
    pos_shift = jnp.where(non_fix_atom_mask[..., None], pos_shift, 0.0)
    return pos_shift, fsp_out


# ----------------------------------------------------------------------------
# Full forward (Pallas path) and pure-JAX reference.
# ----------------------------------------------------------------------------
def node_task_head_forward(params, query, edge_features, delta_pos,
                           edge_non_padding_mask, drop_edge_mask,
                           non_fix_atom_mask, *, drop_or_add, use_shift_proj):
    B, N, E = query.shape
    K = edge_features.shape[-1]

    xq = query.reshape(B * N, E).astype(jnp.float32)
    hq, hk = _node_proj_pallas(xq, params)                    # (B*N, K) each, f32
    hq = hq.reshape(B, N, K)
    hk = hk.reshape(B, N, K)

    # edge_features is consumed in its NATIVE dtype (no wrapper upcast / pad).
    fsp = _edge_scale_pallas(hq, hk, edge_features, edge_non_padding_mask,
                             params['e1_w'][K:], params['e2_w'][:, 0],
                             params['e2_b'])                  # (B, N, N) f32

    pos_shift, fsp = _sphere_fit(fsp, delta_pos.astype(jnp.float32),
                                 edge_non_padding_mask, drop_edge_mask,
                                 drop_or_add, non_fix_atom_mask)
    if use_shift_proj:
        return pos_shift, fsp
    return pos_shift


def _nonlinear_ref(x, w1, b1, w2, b2):
    return _gelu(x @ w1 + b1) @ w2 + b2


def node_task_head_reference(params, query, edge_features, delta_pos,
                             edge_non_padding_mask, drop_edge_mask,
                             non_fix_atom_mask, *, drop_or_add, use_shift_proj):
    B, N, E = query.shape
    K = edge_features.shape[-1]
    Kh = K // 2
    q = _nonlinear_ref(query, params['q1_w'], params['q1_b'],
                       params['q2_w'], params['q2_b'])
    k = _nonlinear_ref(query, params['k1_w'], params['k1_b'],
                       params['k2_w'], params['k2_b'])
    qs = jnp.broadcast_to(q[:, :, None, :], (B, N, N, Kh))
    ks = jnp.transpose(jnp.broadcast_to(k[:, :, None, :], (B, N, N, Kh)), (0, 2, 1, 3))
    e_emb = _gelu(jnp.concatenate([qs, ks], axis=-1))
    feat = jnp.concatenate([e_emb, edge_features.astype(jnp.float32)], axis=-1)
    fsp = _nonlinear_ref(feat, params['e1_w'], params['e1_b'],
                         params['e2_w'], params['e2_b'])[..., 0]
    fsp = jnp.where(edge_non_padding_mask, fsp, 0.0)
    pos_shift, fsp = _sphere_fit(fsp, delta_pos, edge_non_padding_mask,
                                 drop_edge_mask, drop_or_add, non_fix_atom_mask)
    if use_shift_proj:
        return pos_shift, fsp
    return pos_shift


if __name__ == "__main__":
    B, N = 2, 16          # batch, nodes
    E = 32                # embed_dim
    K = 32                # gbf_kernels
    Kh = K // 2

    key = jax.random.PRNGKey(0)
    ks = jax.random.split(key, 18)

    def init_linear(kw, kb, fan_in, fan_out):
        bound = 1.0 / math.sqrt(fan_in)
        w = jax.random.uniform(kw, (fan_in, fan_out), jnp.float32, -bound, bound)
        b = jax.random.uniform(kb, (fan_out,), jnp.float32, -bound, bound)
        return w, b

    params = {}
    params['q1_w'], params['q1_b'] = init_linear(ks[0], ks[1], E, E)
    params['q2_w'], params['q2_b'] = init_linear(ks[2], ks[3], E, Kh)
    params['k1_w'], params['k1_b'] = init_linear(ks[4], ks[5], E, E)
    params['k2_w'], params['k2_b'] = init_linear(ks[6], ks[7], E, Kh)
    params['e1_w'], params['e1_b'] = init_linear(ks[8], ks[9], 2 * K, K)
    params['e2_w'], params['e2_b'] = init_linear(ks[10], ks[11], K, 1)

    query = jax.random.normal(ks[12], (B, N, E), jnp.float32)
    edge_features = jax.random.normal(ks[13], (B, N, N, K), jnp.float32)
    delta_pos = jax.random.normal(ks[14], (B, N, N, 3), jnp.float32)
    edge_non_padding_mask = jax.random.bernoulli(ks[15], 0.9, (B, N, N))
    drop_edge_mask = jax.random.bernoulli(ks[16], 0.2, (N, N))
    non_fix_atom_mask = jax.random.bernoulli(ks[17], 0.8, (B, N))

    fwd = jax.jit(node_task_head_forward,
                  static_argnames=("drop_or_add", "use_shift_proj"))

    for mode in (True, False):
        pos_shift, fsp = fwd(params, query, edge_features, delta_pos,
                             edge_non_padding_mask, drop_edge_mask,
                             non_fix_atom_mask, drop_or_add=mode,
                             use_shift_proj=True)
        pos_shift = jax.block_until_ready(pos_shift)

        ref_shift, ref_fsp = node_task_head_reference(
            params, query, edge_features, delta_pos,
            edge_non_padding_mask, drop_edge_mask, non_fix_atom_mask,
            drop_or_add=mode, use_shift_proj=True)

        assert pos_shift.shape == (B, N, 3)
        assert fsp.shape == (B, N, N)
        assert jnp.allclose(fsp, ref_fsp, atol=1e-4, rtol=1e-4), \
            float(jnp.max(jnp.abs(fsp - ref_fsp)))
        assert jnp.allclose(pos_shift, ref_shift, atol=1e-2, rtol=1e-2), \
            float(jnp.max(jnp.abs(pos_shift - ref_shift)))

    # Native-dtype path smoke test: bf16 edge features are fed to the edge kernel without any
    # wrapper upcast (production case); only check shapes / finiteness here.
    ef_bf16 = edge_features.astype(jnp.bfloat16)
    ps16, fsp16 = fwd(params, query, ef_bf16, delta_pos,
                      edge_non_padding_mask, drop_edge_mask,
                      non_fix_atom_mask, drop_or_add=True, use_shift_proj=True)
    ps16 = jax.block_until_ready(ps16)
    assert ps16.shape == (B, N, 3) and fsp16.shape == (B, N, N)
    assert bool(jnp.all(jnp.isfinite(ps16))) and bool(jnp.all(jnp.isfinite(fsp16)))

    print("KERNEL_OK")
</pallas_src>

<mosaic_0001>
module attributes {stable_mosaic.version = 11 : i64} {
  func.func @_node_proj_kernel(%arg0: i32, %arg1: memref<32x32xf32, #tpu.memory_space<vmem>>, %arg2: memref<32x64xf32, #tpu.memory_space<vmem>>, %arg3: memref<1x64xf32, #tpu.memory_space<vmem>>, %arg4: memref<64x32xf32, #tpu.memory_space<vmem>>, %arg5: memref<1x32xf32, #tpu.memory_space<vmem>>, %arg6: memref<32x64xf32, #tpu.memory_space<vmem>>, %arg7: memref<1x64xf32, #tpu.memory_space<vmem>>, %arg8: memref<32x64xf32, #tpu.memory_space<vmem>>) attributes {dimension_semantics = [#tpu.dimension_semantics<parallel>], iteration_bounds = array<i64: 1>, scalar_prefetch = 0 : i64, scratch_operands = 0 : i64, tpu.core_type = #tpu.core_type<tc>, window_params = [{transform_indices = @transform_0, window_bounds = array<i64: 32, 32>}, {pipeline_mode = #tpu.pipeline_mode<synchronous>, transform_indices = @transform_1, window_bounds = array<i64: 32, 64>}, {pipeline_mode = #tpu.pipeline_mode<synchronous>, transform_indices = @transform_2, window_bounds = array<i64: 1, 64>}, {pipeline_mode = #tpu.pipeline_mode<synchronous>, transform_indices = @transform_3, window_bounds = array<i64: 64, 32>}, {pipeline_mode = #tpu.pipeline_mode<synchronous>, transform_indices = @transform_4, window_bounds = array<i64: 1, 32>}, {pipeline_mode = #tpu.pipeline_mode<synchronous>, transform_indices = @transform_5, window_bounds = array<i64: 32, 64>}, {pipeline_mode = #tpu.pipeline_mode<synchronous>, transform_indices = @transform_6, window_bounds = array<i64: 1, 64>}, {transform_indices = @transform_7, window_bounds = array<i64: 32, 64>}]} {
    %c0 = arith.constant 0 : index
    %c0_0 = arith.constant 0 : index
    %0 = vector.load %arg1[%c0, %c0_0] : memref<32x32xf32, #tpu.memory_space<vmem>>, vector<32x32xf32>
    %c0_1 = arith.constant 0 : index
    %c0_2 = arith.constant 0 : index
    %1 = vector.load %arg2[%c0_1, %c0_2] : memref<32x64xf32, #tpu.memory_space<vmem>>, vector<32x64xf32>
    %cst = arith.constant dense<0.000000e+00> : vector<32x64xf32>
    %2 = tpu.matmul %0, %1, %cst {dimension_numbers = #tpu.dot_dimension_numbers<[1], [0], [0], [1], [0, 0, 1, 1], [], []>} : vector<32x32xf32>, vector<32x64xf32>, vector<32x64xf32> -> vector<32x64xf32>
    %c0_3 = arith.constant 0 : index
    %c0_4 = arith.constant 0 : index
    %3 = vector.load %arg3[%c0_3, %c0_4] : memref<1x64xf32, #tpu.memory_space<vmem>>, vector<1x64xf32>
    %4 = vector.broadcast %3 : vector<1x64xf32> to vector<32x64xf32>
    %5 = arith.addf %2, %4 : vector<32x64xf32>
    %cst_5 = arith.constant 5.000000e-01 : f32
    %6 = vector.broadcast %cst_5 : f32 to vector<32x64xf32>
    %7 = arith.mulf %6, %5 : vector<32x64xf32>
    %cst_6 = arith.constant 4.471500e-02 : f32
    %8 = vector.broadcast %cst_6 : f32 to vector<32x64xf32>
    %9 = arith.mulf %8, %5 : vector<32x64xf32>
    %10 = arith.mulf %9, %5 : vector<32x64xf32>
    %11 = arith.mulf %10, %5 : vector<32x64xf32>
    %12 = arith.addf %5, %11 : vector<32x64xf32>
    %cst_7 = arith.constant 0.797884583 : f32
    %13 = vector.broadcast %cst_7 : f32 to vector<32x64xf32>
    %14 = arith.mulf %13, %12 : vector<32x64xf32>
    %15 = math.tanh %14 : vector<32x64xf32>
    %cst_8 = arith.constant 1.000000e+00 : f32
    %16 = vector.broadcast %cst_8 : f32 to vector<32x64xf32>
    %17 = arith.addf %16, %15 : vector<32x64xf32>
    %18 = arith.mulf %7, %17 : vector<32x64xf32>
    %c0_9 = arith.constant 0 : index
    %c0_10 = arith.constant 0 : index
    %19 = vector.load %arg4[%c0_9, %c0_10] : memref<64x32xf32, #tpu.memory_space<vmem>>, vector<64x32xf32>
    %cst_11 = arith.constant dense<0.000000e+00> : vector<32x32xf32>
    %20 = tpu.matmul %18, %19, %cst_11 {dimension_numbers = #tpu.dot_dimension_numbers<[1], [0], [0], [1], [0, 0, 1, 1], [], []>} : vector<32x64xf32>, vector<64x32xf32>, vector<32x32xf32> -> vector<32x32xf32>
    %c0_12 = arith.constant 0 : index
    %c0_13 = arith.constant 0 : index
    %21 = vector.load %arg5[%c0_12, %c0_13] : memref<1x32xf32, #tpu.memory_space<vmem>>, vector<1x32xf32>
    %22 = vector.broadcast %21 : vector<1x32xf32> to vector<32x32xf32>
    %23 = arith.addf %20, %22 : vector<32x32xf32>
    %cst_14 = arith.constant 5.000000e-01 : f32
    %24 = vector.broadcast %cst_14 : f32 to vector<32x32xf32>
    %25 = arith.mulf %24, %23 : vector<32x32xf32>
    %cst_15 = arith.constant 4.471500e-02 : f32
    %26 = vector.broadcast %cst_15 : f32 to vector<32x32xf32>
    %27 = arith.mulf %26, %23 : vector<32x32xf32>
    %28 = arith.mulf %27, %23 : vector<32x32xf32>
    %29 = arith.mulf %28, %23 : vector<32x32xf32>
    %30 = arith.addf %23, %29 : vector<32x32xf32>
    %cst_16 = arith.constant 0.797884583 : f32
    %31 = vector.broadcast %cst_16 : f32 to vector<32x32xf32>
    %32 = arith.mulf %31, %30 : vector<32x32xf32>
    %33 = math.tanh %32 : vector<32x32xf32>
    %cst_17 = arith.constant 1.000000e+00 : f32
    %34 = vector.broadcast %cst_17 : f32 to vector<32x32xf32>
    %35 = arith.addf %34, %33 : vector<32x32xf32>
    %36 = arith.mulf %25, %35 : vector<32x32xf32>
    %c0_18 = arith.constant 0 : index
    %c0_19 = arith.constant 0 : index
    %37 = vector.load %arg6[%c0_18, %c0_19] : memref<32x64xf32, #tpu.memory_space<vmem>>, vector<32x64xf32>
    %cst_20 = arith.constant dense<0.000000e+00> : vector<32x64xf32>
    %38 = tpu.matmul %36, %37, %cst_20 {dimension_numbers = #tpu.dot_dimension_numbers<[1], [0], [0], [1], [0, 0, 1, 1], [], []>} : vector<32x32xf32>, vector<32x64xf32>, vector<32x64xf32> -> vector<32x64xf32>
    %c0_21 = arith.constant 0 : index
    %c0_22 = arith.constant 0 : index
    %39 = vector.load %arg7[%c0_21, %c0_22] : memref<1x64xf32, #tpu.memory_space<vmem>>, vector<1x64xf32>
    %40 = vector.broadcast %39 : vector<1x64xf32> to vector<32x64xf32>
    %41 = arith.addf %38, %40 : vector<32x64xf32>
    %c0_23 = arith.constant 0 : index
    %c0_24 = arith.constant 0 : index
    %42 = vector.load %arg8[%c0_23, %c0_24] : memref<32x64xf32, #tpu.memory_space<vmem>>, vector<32x64xf32>
    tpu.vector_store %arg8[%c0_23, %c0_24], %41 {strides = array<i32>} : memref<32x64xf32, #tpu.memory_space<vmem>>, vector<32x64xf32>,
    return
  }
  func.func @transform_0(%arg0: i32) -> (i32, i32) {
    %c0_i32 = arith.constant 0 : i32
    %c0_i32_0 = arith.constant 0 : i32
    return %arg0, %c0_i32 : i32, i32
  }
  func.func @transform_1(%arg0: i32) -> (i32, i32) {
    %c0_i32 = arith.constant 0 : i32
    %c0_i32_0 = arith.constant 0 : i32
    %c0_i32_1 = arith.constant 0 : i32
    return %c0_i32, %c0_i32_0 : i32, i32
  }
  func.func @transform_2(%arg0: i32) -> (i32, i32) {
    %c0_i32 = arith.constant 0 : i32
    %c0_i32_0 = arith.constant 0 : i32
    %c0_i32_1 = arith.constant 0 : i32
    return %c0_i32, %c0_i32_0 : i32, i32
  }
  func.func @transform_3(%arg0: i32) -> (i32, i32) {
    %c0_i32 = arith.constant 0 : i32
    %c0_i32_0 = arith.constant 0 : i32
    %c0_i32_1 = arith.constant 0 : i32
    return %c0_i32, %c0_i32_0 : i32, i32
  }
  func.func @transform_4(%arg0: i32) -> (i32, i32) {
    %c0_i32 = arith.constant 0 : i32
    %c0_i32_0 = arith.constant 0 : i32
    %c0_i32_1 = arith.constant 0 : i32
    return %c0_i32, %c0_i32_0 : i32, i32
  }
  func.func @transform_5(%arg0: i32) -> (i32, i32) {
    %c0_i32 = arith.constant 0 : i32
    %c0_i32_0 = arith.constant 0 : i32
    %c0_i32_1 = arith.constant 0 : i32
    return %c0_i32, %c0_i32_0 : i32, i32
  }
  func.func @transform_6(%arg0: i32) -> (i32, i32) {
    %c0_i32 = arith.constant 0 : i32
    %c0_i32_0 = arith.constant 0 : i32
    %c0_i32_1 = arith.constant 0 : i32
    return %c0_i32, %c0_i32_0 : i32, i32
  }
  func.func @transform_7(%arg0: i32) -> (i32, i32) {
    %c0_i32 = arith.constant 0 : i32
    %c0_i32_0 = arith.constant 0 : i32
    return %arg0, %c0_i32 : i32, i32
  }
}

module attributes {stable_mosaic.version = 11 : i64} {
  func.func @_edge_scale_kernel(%arg0: i32, %arg1: i32, %arg2: memref<1x16x32xf32, #tpu.memory_space<vmem>>, %arg3: memref<1x16x32xf32, #tpu.memory_space<vmem>>, %arg4: memref<1x16x16x32xf32, #tpu.memory_space<vmem>>, %arg5: memref<1x16x16xi32, #tpu.memory_space<vmem>>, %arg6: memref<32x32xf32, #tpu.memory_space<vmem>>, %arg7: memref<1x32xf32, #tpu.memory_space<vmem>>, %arg8: memref<1x1xf32, #tpu.memory_space<vmem>>, %arg9: memref<1x16x128xf32, #tpu.memory_space<vmem>>) attributes {dimension_semantics = [#tpu.dimension_semantics<parallel>, #tpu.dimension_semantics<parallel>], iteration_bounds = array<i64: 2, 1>, scalar_prefetch = 0 : i64, scratch_operands = 0 : i64, tpu.core_type = #tpu.core_type<tc>, window_params = [{transform_indices = @transform_0, window_bounds = array<i64: 1, 16, 32>}, {transform_indices = @transform_1, window_bounds = array<i64: 1, 16, 32>}, {transform_indices = @transform_2, window_bounds = array<i64: 1, 16, 16, 32>}, {transform_indices = @transform_3, window_bounds = array<i64: 1, 16, 16>}, {pipeline_mode = #tpu.pipeline_mode<synchronous>, transform_indices = @transform_4, window_bounds = array<i64: 32, 32>}, {pipeline_mode = #tpu.pipeline_mode<synchronous>, transform_indices = @transform_5, window_bounds = array<i64: 1, 32>}, {pipeline_mode = #tpu.pipeline_mode<synchronous>, transform_indices = @transform_6, window_bounds = array<i64: 1, 1>}, {transform_indices = @transform_7, window_bounds = array<i64: 1, 16, 128>}]} {
    %c0 = arith.constant 0 : index
    %c0_0 = arith.constant 0 : index
    %c0_1 = arith.constant 0 : index
    %c0_2 = arith.constant 0 : index
    %0 = vector.load %arg4[%c0, %c0_0, %c0_1, %c0_2] : memref<1x16x16x32xf32, #tpu.memory_space<vmem>>, vector<1x16x16x32xf32>
    %1 = vector.shape_cast %0 : vector<1x16x16x32xf32> to vector<16x16x32xf32>
    %2 = vector.shape_cast %1 : vector<16x16x32xf32> to vector<256x32xf32>
    %c0_3 = arith.constant 0 : index
    %c0_4 = arith.constant 0 : index
    %3 = vector.load %arg6[%c0_3, %c0_4] : memref<32x32xf32, #tpu.memory_space<vmem>>, vector<32x32xf32>
    %cst = arith.constant dense<0.000000e+00> : vector<256x32xf32>
    %4 = tpu.matmul %2, %3, %cst {dimension_numbers = #tpu.dot_dimension_numbers<[1], [0], [0], [1], [0, 0, 1, 1], [], []>} : vector<256x32xf32>, vector<32x32xf32>, vector<256x32xf32> -> vector<256x32xf32>
    %5 = vector.shape_cast %4 : vector<256x32xf32> to vector<16x16x32xf32>
    %c0_5 = arith.constant 0 : index
    %c0_6 = arith.constant 0 : index
    %c0_7 = arith.constant 0 : index
    %6 = vector.load %arg2[%c0_5, %c0_6, %c0_7] : memref<1x16x32xf32, #tpu.memory_space<vmem>>, vector<1x16x32xf32>
    %7 = vector.shape_cast %6 : vector<1x16x32xf32> to vector<16x32xf32>
    %8 = vector.shape_cast %7 : vector<16x32xf32> to vector<16x1x32xf32>
    %9 = vector.broadcast %8 : vector<16x1x32xf32> to vector<16x16x32xf32>
    %10 = arith.addf %5, %9 : vector<16x16x32xf32>
    %c0_8 = arith.constant 0 : index
    %c0_9 = arith.constant 0 : index
    %c0_10 = arith.constant 0 : index
    %11 = vector.load %arg3[%c0_8, %c0_9, %c0_10] : memref<1x16x32xf32, #tpu.memory_space<vmem>>, vector<1x16x32xf32>
    %12 = vector.shape_cast %11 : vector<1x16x32xf32> to vector<16x32xf32>
    %13 = vector.shape_cast %12 : vector<16x32xf32> to vector<1x16x32xf32>
    %14 = vector.broadcast %13 : vector<1x16x32xf32> to vector<16x16x32xf32>
    %15 = arith.addf %10, %14 : vector<16x16x32xf32>
    %cst_11 = arith.constant 5.000000e-01 : f32
    %16 = vector.broadcast %cst_11 : f32 to vector<16x16x32xf32>
    %17 = arith.mulf %16, %15 : vector<16x16x32xf32>
    %cst_12 = arith.constant 4.471500e-02 : f32
    %18 = vector.broadcast %cst_12 : f32 to vector<16x16x32xf32>
    %19 = arith.mulf %18, %15 : vector<16x16x32xf32>
    %20 = arith.mulf %19, %15 : vector<16x16x32xf32>
    %21 = arith.mulf %20, %15 : vector<16x16x32xf32>
    %22 = arith.addf %15, %21 : vector<16x16x32xf32>
    %cst_13 = arith.constant 0.797884583 : f32
    %23 = vector.broadcast %cst_13 : f32 to vector<16x16x32xf32>
    %24 = arith.mulf %23, %22 : vector<16x16x32xf32>
    %25 = math.tanh %24 : vector<16x16x32xf32>
    %cst_14 = arith.constant 1.000000e+00 : f32
    %26 = vector.broadcast %cst_14 : f32 to vector<16x16x32xf32>
    %27 = arith.addf %26, %25 : vector<16x16x32xf32>
    %28 = arith.mulf %17, %27 : vector<16x16x32xf32>
    %c0_15 = arith.constant 0 : index
    %c0_16 = arith.constant 0 : index
    %29 = vector.load %arg7[%c0_15, %c0_16] : memref<1x32xf32, #tpu.memory_space<vmem>>, vector<1x32xf32>
    %30 = vector.shape_cast %29 : vector<1x32xf32> to vector<1x1x32xf32>
    %31 = vector.broadcast %30 : vector<1x1x32xf32> to vector<16x16x32xf32>
    %32 = arith.mulf %28, %31 : vector<16x16x32xf32>
    %cst_17 = arith.constant dense<0.000000e+00> : vector<16x16xf32>
    %33 = vector.multi_reduction <add>, %32, %cst_17 [2] : vector<16x16x32xf32> to vector<16x16xf32>
    %c0_18 = arith.constant 0 : index
    %c0_19 = arith.constant 0 : index
    %34 = vector.load %arg8[%c0_18, %c0_19] : memref<1x1xf32, #tpu.memory_space<vmem>>, vector<1x1xf32>
    %35 = vector.broadcast %34 : vector<1x1xf32> to vector<16x16xf32>
    %36 = arith.addf %33, %35 : vector<16x16xf32>
    %c0_20 = arith.constant 0 : index
    %c0_21 = arith.constant 0 : index
    %c0_22 = arith.constant 0 : index
    %37 = vector.load %arg5[%c0_20, %c0_21, %c0_22] : memref<1x16x16xi32, #tpu.memory_space<vmem>>, vector<1x16x16xi32>
    %38 = vector.shape_cast %37 : vector<1x16x16xi32> to vector<16x16xi32>
    %cst_23 = arith.constant dense<0> : vector<16x16xi32>
    %39 = arith.cmpi ne, %38, %cst_23 : vector<16x16xi32>
    %cst_24 = arith.constant 0.000000e+00 : f32
    %40 = vector.broadcast %cst_24 : f32 to vector<16x16xf32>
    %41 = arith.select %39, %36, %40 : vector<16x16xi1>, vector<16x16xf32>
    %cst_25 = arith.constant 0.000000e+00 : f32
    %42 = vector.broadcast %cst_25 : f32 to vector<16x112xf32>
    %43 = tpu.concatenate %41, %42 in 1 : vector<16x16xf32>, vector<16x112xf32> -> vector<16x128xf32>
    %c0_26 = arith.constant 0 : index
    %c0_27 = arith.constant 0 : index
    %c0_28 = arith.constant 0 : index
    %44 = vector.load %arg9[%c0_26, %c0_27, %c0_28] : memref<1x16x128xf32, #tpu.memory_space<vmem>>, vector<1x16x128xf32>
    %45 = vector.shape_cast %44 : vector<1x16x128xf32> to vector<16x128xf32>
    %46 = vector.shape_cast %43 : vector<16x128xf32> to vector<1x16x128xf32>
    tpu.vector_store %arg9[%c0_26, %c0_27, %c0_28], %46 {strides = array<i32>} : memref<1x16x128xf32, #tpu.memory_space<vmem>>, vector<1x16x128xf32>,
    return
  }
  func.func @transform_0(%arg0: i32, %arg1: i32) -> (i32, i32, i32) {
    %c0_i32 = arith.constant 0 : i32
    %c0_i32_0 = arith.constant 0 : i32
    return %arg0, %arg1, %c0_i32 : i32, i32, i32
  }
  func.func @transform_1(%arg0: i32, %arg1: i32) -> (i32, i32, i32) {
    %c0_i32 = arith.constant 0 : i32
    %c0_i32_0 = arith.constant 0 : i32
    %c0_i32_1 = arith.constant 0 : i32
    return %arg0, %c0_i32, %c0_i32_0 : i32, i32, i32
  }
  func.func @transform_2(%arg0: i32, %arg1: i32) -> (i32, i32, i32, i32) {
    %c0_i32 = arith.constant 0 : i32
    %c0_i32_0 = arith.constant 0 : i32
    %c0_i32_1 = arith.constant 0 : i32
    return %arg0, %arg1, %c0_i32, %c0_i32_0 : i32, i32, i32, i32
  }
  func.func @transform_3(%arg0: i32, %arg1: i32) -> (i32, i32, i32) {
    %c0_i32 = arith.constant 0 : i32
    %c0_i32_0 = arith.constant 0 : i32
    return %arg0, %arg1, %c0_i32 : i32, i32, i32
  }
  func.func @transform_4(%arg0: i32, %arg1: i32) -> (i32, i32) {
    %c0_i32 = arith.constant 0 : i32
    %c0_i32_0 = arith.constant 0 : i32
    %c0_i32_1 = arith.constant 0 : i32
    return %c0_i32, %c0_i32_0 : i32, i32
  }
  func.func @transform_5(%arg0: i32, %arg1: i32) -> (i32, i32) {
    %c0_i32 = arith.constant 0 : i32
    %c0_i32_0 = arith.constant 0 : i32
    %c0_i32_1 = arith.constant 0 : i32
    return %c0_i32, %c0_i32_0 : i32, i32
  }
  func.func @transform_6(%arg0: i32, %arg1: i32) -> (i32, i32) {
    %c0_i32 = arith.constant 0 : i32
    %c0_i32_0 = arith.constant 0 : i32
    %c0_i32_1 = arith.constant 0 : i32
    return %c0_i32, %c0_i32_0 : i32, i32
  }
  func.func @transform_7(%arg0: i32, %arg1: i32) -> (i32, i32, i32) {
    %c0_i32 = arith.constant 0 : i32
    %c0_i32_0 = arith.constant 0 : i32
    return %arg0, %arg1, %c0_i32 : i32, i32, i32
  }
}

</mosaic_0001>

<llo_original>
// kernel: node_task_head_forward.2
$region0: #{node_task_head_forward.2}
  #allocation0 [shape = 'u32[]', space=smem, size = 0x4, offset = 0x4, fixed_abs, tag = 'smem constant byte address 0x4 - core index']
  #allocation1 [shape = 'u32[72,128]{1,0:T(1,128)}', space=vmem, size = 0x9000, scoped, tag = 'internal scratch']
  %s0 = inlined_call_operand.vmem [shape: f32[32,32], index: 0, kind: input, shape index: {}]
  %s1 = inlined_call_operand.vmem [shape: f32[32,64], index: 1, kind: input, shape index: {}]
  %s2 = inlined_call_operand.vmem [shape: f32[1,64], index: 2, kind: input, shape index: {}]
  %s3 = inlined_call_operand.vmem [shape: f32[64,32], index: 3, kind: input, shape index: {}]
  %s4 = inlined_call_operand.vmem [shape: f32[1,32], index: 4, kind: input, shape index: {}]
  %s5 = inlined_call_operand.vmem [shape: f32[32,64], index: 5, kind: input, shape index: {}]
  %s6 = inlined_call_operand.vmem [shape: f32[1,64], index: 6, kind: input, shape index: {}]
  %s7 = inlined_call_operand.vmem [shape: f32[32,64], index: 7, kind: output, shape index: {}]
  %s8 = sld [smem:[#allocation0]]
  $region38: #{node_task_head_forward.2} parent=0
    _
  %s10 = ssub.s32 1, %s8
  %s11 = scalar_select 0, %s10, %s8
  // Predicated region
  $region2: #{node_task_head_forward.2} parent=0 // pred_check
    _
  $region3: #{node_task_head_forward.2} parent=0 // pred_check_branch
    %13 = sbr.rel (0) target = $region5
  $region4: #{node_task_head_forward.2} parent=0 // pred_region
    _
  $region5: #{node_task_head_forward.2} parent=0 // pred_fallthru
    _
  // Predicated region
  $region6: #{node_task_head_forward.2} parent=0 // pred_check
    _
  $region7: #{node_task_head_forward.2} parent=0 // pred_check_branch
    %15 = sbr.rel (0) target = $region9
  $region8: #{node_task_head_forward.2} parent=0 // pred_region
    _
  $region9: #{node_task_head_forward.2} parent=0 // pred_fallthru
    _
  // Predicated region
  $region10: #{node_task_head_forward.2} parent=0 // pred_check
    _
  $region11: #{node_task_head_forward.2} parent=0 // pred_check_branch
    %17 = sbr.rel (0) target = $region13
  $region12: #{node_task_head_forward.2} parent=0 // pred_region
    _
  $region13: #{node_task_head_forward.2} parent=0 // pred_fallthru
    _
  // Predicated region
  $region14: #{node_task_head_forward.2} parent=0 // pred_check
    _
  $region15: #{node_task_head_forward.2} parent=0 // pred_check_branch
    %19 = sbr.rel (0) target = $region17
  $region16: #{node_task_head_forward.2} parent=0 // pred_region
    _
  $region17: #{node_task_head_forward.2} parent=0 // pred_fallthru
    _
  // Predicated region
  $region18: #{node_task_head_forward.2} parent=0 // pred_check
    _
  $region19: #{node_task_head_forward.2} parent=0 // pred_check_branch
    %21 = sbr.rel (0) target = $region21
  $region20: #{node_task_head_forward.2} parent=0 // pred_region
    _
  $region21: #{node_task_head_forward.2} parent=0 // pred_fallthru
    _
  // Predicated region
  $region22: #{node_task_head_forward.2} parent=0 // pred_check
    _
  $region23: #{node_task_head_forward.2} parent=0 // pred_check_branch
    %23 = sbr.rel (0) target = $region25
  $region24: #{node_task_head_forward.2} parent=0 // pred_region
    _
  $region25: #{node_task_head_forward.2} parent=0 // pred_fallthru
    _
  // Predicated region
  $region26: #{node_task_head_forward.2} parent=0 // pred_check
    _
  $region27: #{node_task_head_forward.2} parent=0 // pred_check_branch
    %25 = sbr.rel (0) target = $region29
  $region28: #{node_task_head_forward.2} parent=0 // pred_region
    _
  $region29: #{node_task_head_forward.2} parent=0 // pred_fallthru
    _
  %v26 = vld [vmem:[%s0] sm:$0xff]
  %v27 = vld [vmem:[%s0 + $0x8] sm:$0xff]
  %v28 = vld [vmem:[%s0 + $0x10] sm:$0xff]
  %v29 = vld [vmem:[%s0 + $0x18] sm:$0xff]
  %v30 = vld [vmem:[%s1] sm:$0xff]
  %v31 = vld [vmem:[%s1 + $0x8] sm:$0xff]
  %v32 = vld [vmem:[%s1 + $0x10] sm:$0xff]
  %v33 = vld [vmem:[%s1 + $0x18] sm:$0xff]
  %v34 = vld [vmem:[%s2] sm:$0x1]
  %v36 = vperm.slane %v34, 0
  %vm38 = vcmask 261120
  %v40 = vsel %vm38, %v26, 0
  %v43 = vsel %vm38, %v27, 0
  %v46 = vsel %vm38, %v28, 0
  %v49 = vsel %vm38, %v29, 0
  %51 = vmatpush.msra.mxu0 0.0
  %52 = vmatpush.msra.mxu0 0.0
  %53 = vmatpush.msra.mxu0 0.0
  %54 = vmatpush.msra.mxu0 0.0
  %55 = vmatpush.msra.mxu0 0.0
  %56 = vmatpush.msra.mxu0 0.0
  %57 = vmatpush.msra.mxu0 0.0
  %58 = vmatpush.msra.mxu0 0.0
  %59 = vmatpush.msra.mxu0 0.0
  %60 = vmatpush.msra.mxu0 0.0
  %61 = vmatpush.msra.mxu0 0.0
  %62 = vmatpush.msra.mxu0 0.0
  %63 = vmatpush.msra.mxu0 %v33
  %64 = vmatpush.msra.mxu0 %v32
  %65 = vmatpush.msra.mxu0 %v31
  %66 = vmatpush.msra.mxu0 %v30
  %67 = vmatmul.f32.gmra.mxu0 %v40
  %v68 = vpop.f32.mrf.mxu0
  %v69 = vadd.f32 %v36, %v68
  %70 = vmatmul.f32.gmra.mxu0 %v43
  %v71 = vpop.f32.mrf.mxu0
  %v72 = vadd.f32 %v36, %v71
  %73 = vmatmul.f32.gmra.mxu0 %v46
  %v74 = vpop.f32.mrf.mxu0
  %v75 = vadd.f32 %v36, %v74
  %76 = vmatmul.f32.gmra.mxu0 %v49
  %v77 = vpop.f32.mrf.mxu0
  %v78 = vadd.f32 %v36, %v77
  %79 = vdwg.mxu0
  %v80 = vmul.f32 %v69, 0.5
  %v81 = vmul.f32 %v72, 0.5
  %v82 = vmul.f32 %v75, 0.5
  %v83 = vmul.f32 %v78, 0.5
  %v84 = vmul.f32 %v69, 0.044715
  %v85 = vmul.f32 %v72, 0.044715
  %v86 = vmul.f32 %v75, 0.044715
  %v87 = vmul.f32 %v78, 0.044715
  %v88 = vmul.f32 %v84, %v69
  %v89 = vmul.f32 %v85, %v72
  %v90 = vmul.f32 %v86, %v75
  %v91 = vmul.f32 %v87, %v78
  %v92 = vmul.f32 %v88, %v69
  %v93 = vmul.f32 %v89, %v72
  %v94 = vmul.f32 %v90, %v75
  %v95 = vmul.f32 %v91, %v78
  %v96 = vadd.f32 %v69, %v92
  %v97 = vadd.f32 %v72, %v93
  %v98 = vadd.f32 %v75, %v94
  %v99 = vadd.f32 %v78, %v95
  %v100 = vmul.f32 %v96, 0.7978846
  %v101 = vmul.f32 %v97, 0.7978846
  %v102 = vmul.f32 %v98, 0.7978846
  %v103 = vmul.f32 %v99, 0.7978846
  %v104 = vtanh.pop %v100
  %v105 = vtanh.pop %v101
  %v106 = vtanh.pop %v102
  %v107 = vtanh.pop %v103
  %v108 = vadd.f32 %v104, 1.0
  %v109 = vadd.f32 %v105, 1.0
  %v110 = vadd.f32 %v106, 1.0
  %v111 = vadd.f32 %v107, 1.0
  %v112 = vmul.f32 %v80, %v108
  %v113 = vmul.f32 %v81, %v109
  %v114 = vmul.f32 %v82, %v110
  %v115 = vmul.f32 %v83, %v111
  %v116 = vld [vmem:[%s3] sm:$0xff]
  %v117 = vld [vmem:[%s3 + $0x8] sm:$0xff]
  %v118 = vld [vmem:[%s3 + $0x10] sm:$0xff]
  %v119 = vld [vmem:[%s3 + $0x18] sm:$0xff]
  %v120 = vld [vmem:[%s3 + $0x20] sm:$0xff]
  %v121 = vld [vmem:[%s3 + $0x28] sm:$0xff]
  %v122 = vld [vmem:[%s3 + $0x30] sm:$0xff]
  %v123 = vld [vmem:[%s3 + $0x38] sm:$0xff]
  %v124 = vld [vmem:[%s4] sm:$0x1]
  %v126 = vperm.slane %v124, 0
  %vm128 = vcmask 523264
  %v130 = vsel %vm128, %v112, 0
  %v133 = vsel %vm128, %v113, 0
  %v136 = vsel %vm128, %v114, 0
  %v139 = vsel %vm128, %v115, 0
  %141 = vmatpush.msra.mxu0 0.0
  %142 = vmatpush.msra.mxu0 0.0
  %143 = vmatpush.msra.mxu0 0.0
  %144 = vmatpush.msra.mxu0 0.0
  %145 = vmatpush.msra.mxu0 0.0
  %146 = vmatpush.msra.mxu0 0.0
  %147 = vmatpush.msra.mxu0 0.0
  %148 = vmatpush.msra.mxu0 0.0
  %149 = vmatpush.msra.mxu0 %v123
  %150 = vmatpush.msra.mxu0 %v122
  %151 = vmatpush.msra.mxu0 %v121
  %152 = vmatpush.msra.mxu0 %v120
  %153 = vmatpush.msra.mxu0 %v119
  %154 = vmatpush.msra.mxu0 %v118
  %155 = vmatpush.msra.mxu0 %v117
  %156 = vmatpush.msra.mxu0 %v116
  %157 = vmatmul.f32.gmra.mxu0 %v130
  %v158 = vpop.f32.mrf.mxu0
  %v159 = vadd.f32 %v126, %v158
  %160 = vmatmul.f32.gmra.mxu0 %v133
  %v161 = vpop.f32.mrf.mxu0
  %v162 = vadd.f32 %v126, %v161
  %163 = vmatmul.f32.gmra.mxu0 %v136
  %v164 = vpop.f32.mrf.mxu0
  %v165 = vadd.f32 %v126, %v164
  %166 = vmatmul.f32.gmra.mxu0 %v139
  %v167 = vpop.f32.mrf.mxu0
  %v168 = vadd.f32 %v126, %v167
  %169 = vdwg.mxu0
  %v170 = vmul.f32 %v159, 0.5
  %v171 = vmul.f32 %v162, 0.5
  %v172 = vmul.f32 %v165, 0.5
  %v173 = vmul.f32 %v168, 0.5
  %v174 = vmul.f32 %v159, 0.044715
  %v175 = vmul.f32 %v162, 0.044715
  %v176 = vmul.f32 %v165, 0.044715
  %v177 = vmul.f32 %v168, 0.044715
  %v178 = vmul.f32 %v174, %v159
  %v179 = vmul.f32 %v175, %v162
  %v180 = vmul.f32 %v176, %v165
  %v181 = vmul.f32 %v177, %v168
  %v182 = vmul.f32 %v178, %v159
  %v183 = vmul.f32 %v179, %v162
  %v184 = vmul.f32 %v180, %v165
  %v185 = vmul.f32 %v181, %v168
  %v186 = vadd.f32 %v159, %v182
  %v187 = vadd.f32 %v162, %v183
  %v188 = vadd.f32 %v165, %v184
  %v189 = vadd.f32 %v168, %v185
  %v190 = vmul.f32 %v186, 0.7978846
  %v191 = vmul.f32 %v187, 0.7978846
  %v192 = vmul.f32 %v188, 0.7978846
  %v193 = vmul.f32 %v189, 0.7978846
  %v194 = vtanh.pop %v190
  %v195 = vtanh.pop %v191
  %v196 = vtanh.pop %v192
  %v197 = vtanh.pop %v193
  %v198 = vadd.f32 %v194, 1.0
  %v199 = vadd.f32 %v195, 1.0
  %v200 = vadd.f32 %v196, 1.0
  %v201 = vadd.f32 %v197, 1.0
  %v202 = vmul.f32 %v170, %v198
  %v203 = vmul.f32 %v171, %v199
  %v204 = vmul.f32 %v172, %v200
  %v205 = vmul.f32 %v173, %v201
  %v206 = vld [vmem:[%s5] sm:$0xff]
  %v207 = vld [vmem:[%s5 + $0x8] sm:$0xff]
  %v208 = vld [vmem:[%s5 + $0x10] sm:$0xff]
  %v209 = vld [vmem:[%s5 + $0x18] sm:$0xff]
  %v210 = vld [vmem:[%s6] sm:$0x1]
  %v212 = vperm.slane %v210, 0
  %v215 = vsel %vm38, %v202, 0
  %v218 = vsel %vm38, %v203, 0
  %v221 = vsel %vm38, %v204, 0
  %v224 = vsel %vm38, %v205, 0
  %226 = vmatpush.msra.mxu0 0.0
  %227 = vmatpush.msra.mxu0 0.0
  %228 = vmatpush.msra.mxu0 0.0
  %229 = vmatpush.msra.mxu0 0.0
  %230 = vmatpush.msra.mxu0 0.0
  %231 = vmatpush.msra.mxu0 0.0
  %232 = vmatpush.msra.mxu0 0.0
  %233 = vmatpush.msra.mxu0 0.0
  %234 = vmatpush.msra.mxu0 0.0
  %235 = vmatpush.msra.mxu0 0.0
  %236 = vmatpush.msra.mxu0 0.0
  %237 = vmatpush.msra.mxu0 0.0
  %238 = vmatpush.msra.mxu0 %v209
  %239 = vmatpush.msra.mxu0 %v208
  %240 = vmatpush.msra.mxu0 %v207
  %241 = vmatpush.msra.mxu0 %v206
  %242 = vmatmul.f32.gmra.mxu0 %v215
  %v243 = vpop.f32.mrf.mxu0
  %v244 = vadd.f32 %v212, %v243
  %245 = vmatmul.f32.gmra.mxu0 %v218
  %v246 = vpop.f32.mrf.mxu0
  %v247 = vadd.f32 %v212, %v246
  %248 = vmatmul.f32.gmra.mxu0 %v221
  %v249 = vpop.f32.mrf.mxu0
  %v250 = vadd.f32 %v212, %v249
  %251 = vmatmul.f32.gmra.mxu0 %v224
  %v252 = vpop.f32.mrf.mxu0
  %v253 = vadd.f32 %v212, %v252
  %254 = vdwg.mxu0
  %255 = vst.msk [vmem:[%s7] sm:$0xff] %vm128, %v244
  %256 = vst.msk [vmem:[%s7 + $0x8] sm:$0xff] %vm128, %v247
  %257 = vst.msk [vmem:[%s7 + $0x10] sm:$0xff] %vm128, %v250
  %258 = vst.msk [vmem:[%s7 + $0x18] sm:$0xff] %vm128, %v253
  // Predicated region
  $region30: #{node_task_head_forward.2} parent=0 // pred_check
    _
  $region31: #{node_task_head_forward.2} parent=0 // pred_check_branch
    %260 = sbr.rel (0) target = $region33
  $region32: #{node_task_head_forward.2} parent=0 // pred_region
    _
  $region33: #{node_task_head_forward.2} parent=0 // pred_fallthru
    _
  // Predicated region
  $region34: #{node_task_head_forward.2} parent=0 // pred_check
    _
  $region35: #{node_task_head_forward.2} parent=0 // pred_check_branch
    %262 = sbr.rel (0) target = $region37
  $region36: #{node_task_head_forward.2} parent=0 // pred_region
    _
  $region37: #{node_task_head_forward.2} parent=0 // pred_fallthru
    _

// kernel: custom-call.11
$region0: #{custom-call.11}
  %s0 = inlined_call_operand.vmem [shape: f32[2,16,3,3], index: 0, kind: input, shape index: {}]
  %s1 = inlined_call_operand.vmem [shape: f32[2,16,3,3], index: 1, kind: output, shape index: {0}]
  %s2 = inlined_call_operand.hbm [shape: s32[2,16,3], index: 2, kind: output, shape index: {1}]
  %s3 = inlined_call_operand.vmem [shape: s32[2,16,3], index: 3, kind: output, shape index: {2}]
  %4 = xla_tuple %s1, %s2, %s3
  $region1: #{custom-call.11} parent=0
    #allocation0 [shape = 'u8[4096]{0}', space=vmem, size = 0x1000, scoped, tag = 'operand span for operand 0']
    #allocation1 [shape = 'u8[4096]{0}', space=vmem, size = 0x1000, scoped, tag = 'packed  for operand 0']
    #allocation2 [shape = 'u8[4096]{0}', space=vmem, size = 0x1000, scoped, tag = 'operand span for operand 1']
    #allocation3 [shape = 'u8[4096]{0}', space=vmem, size = 0x1000, scoped, tag = 'packed  for operand 1']
    #allocation4 [shape = 'u8[8192]{0}', space=vmem, size = 0x2000, scoped, tag = 'operand span for operand 2']
    #allocation5 [shape = 's32[2]{0}', space=sflag, size = 0x8, scoped, tag = 'scoped memory for custom-call.11']
    #allocation6 [shape = 'u8[8192]{0}', space=vmem, size = 0x2000, scoped, tag = 'operand span for operand 3']
    %5 = vsyncpa [#allocation5], 0
    %s6 = scalar_lea.sflag [#allocation5], 1
    %7 = vsyncpa %s6, 0
    loop: start=0, step=1, limit=34
    $region2: #{custom-call.11} parent=1 // loop_pre_header
      _
    $region3: #{custom-call.11} parent=1 // loop_header
      %s9 = sphi 0, %s13
      %p10 = scmp.ge.s32.totalorder %s9, 34
      %s16 = sphi 0, %s28
      %s17 = sphi 0, %s24
      %s18 = sphi 0, %s16
      %s19 = sphi 0, %s17
      %s20 = sphi 0, %s18
      %s21 = sphi 0, %s19
      %s35 = sphi 0, %s37
      %s38 = sphi 0, %s35
      %s39 = sphi 0, %s38
      %s55 = sphi 0, %s39
      %s65 = sphi 0, %s67
      %s68 = sphi 0, %s65
      %s69 = sphi 0, %s68
      %s85 = sphi 0, %s69
    $region4: #{custom-call.11} parent=1 // loop_header_branch
      %12 = sbr.rel (%p10) target = $region8
    $region5: #{custom-call.11} parent=1 // loop_body
      %s14 = ssub.s32 %s9, 1
      %s15 = ssub.s32 %s9, 2
      %s22 = sadd.s32 1, %s17
      %p23 = scmp.ge.s32.totalorder %s22, 16
      %s24 = scalar_select %p23, 0, %s22
      %s25 = sadd.s32 1, %s16
      %s26 = scalar_select %p23, %s25, %s16
      %p27 = scmp.ge.s32.totalorder %s26, 2
      %s28 = scalar_select %p27, 0, %s26
      %s29 = sshrl.u32 %s17, 3
      %s30 = sshrl.u32 %s24, 3
      %s31 = ssub.s32 %s16, %s28
      %s32 = ssub.s32 %s29, %s30
      %s33 = sor.u32 %s31, %s32
      %p34 = scmp.eq.s32.totalorder %s33, 0
      %s36 = sadd.s32 %s35, 1
      %s37 = scalar_select %p34, %s35, %s36
      %p40 = pneg %p34
      %p41 = scmp.eq.s32.totalorder %s9, 31
      %p42 = por %p40, %p41
      %p43 = scmp.ne.s32.totalorder %s35, %s38
      %p44 = scmp.eq.s32.totalorder %s9, 0
      %p45 = por %p43, %p44
      %p46 = scmp.ne.s32.totalorder %s35, %s38
      %p47 = scmp.eq.s32.totalorder %s14, 31
      %p48 = por %p46, %p47
      %p49 = scmp.ne.s32.totalorder %s38, %s39
      %p50 = scmp.eq.s32.totalorder %s14, 0
      %p51 = por %p49, %p50
      %p52 = scmp.ne.s32.totalorder %s38, %s39
      %p53 = scmp.eq.s32.totalorder %s15, 31
      %p54 = por %p52, %p53
      %p56 = scmp.ne.s32.totalorder %s39, %s55
      %p57 = scmp.eq.s32.totalorder %s15, 0
      %p58 = por %p56, %p57
      %s59 = sshrl.u32 %s17, 3
      %s60 = sshrl.u32 %s24, 3
      %s61 = ssub.s32 %s16, %s28
      %s62 = ssub.s32 %s59, %s60
      %s63 = sor.u32 %s61, %s62
      %p64 = scmp.eq.s32.totalorder %s63, 0
      %s66 = sadd.s32 %s65, 1
      %s67 = scalar_select %p64, %s65, %s66
      %p70 = pneg %p64
      %p71 = scmp.eq.s32.totalorder %s9, 31
      %p72 = por %p70, %p71
      %p73 = scmp.ne.s32.totalorder %s65, %s68
      %p74 = scmp.eq.s32.totalorder %s9, 0
      %p75 = por %p73, %p74
      %p76 = scmp.ne.s32.totalorder %s65, %s68
      %p77 = scmp.eq.s32.totalorder %s14, 31
      %p78 = por %p76, %p77
      %p79 = scmp.ne.s32.totalorder %s68, %s69
      %p80 = scmp.eq.s32.totalorder %s14, 0
      %p81 = por %p79, %p80
      %p82 = scmp.ne.s32.totalorder %s68, %s69
      %p83 = scmp.eq.s32.totalorder %s15, 31
      %p84 = por %p82, %p83
      %p86 = scmp.ne.s32.totalorder %s69, %s85
      %p87 = scmp.eq.s32.totalorder %s15, 0
      %p88 = por %p86, %p87
      %p89 = scmp.le.s32.totalorder 1, %s9
      %p90 = scmp.lt.s32.totalorder %s9, 33
      %p91 = pnand %p89, %p90
      %p92 = pneg %p91
      // Predicated region
      $region9: #{custom-call.11} parent=5 // pred_check
        _
      $region10: #{custom-call.11} parent=5 // pred_check_branch
        %94 = sbr.rel (%p91) target = $region12
      $region11: #{custom-call.11} parent=5 // pred_region
        %s95 = ssub.s32 %s9, 1
      $region12: #{custom-call.11} parent=5 // pred_fallthru
        _
      %p96 = scmp.lt.s32.totalorder %s9, 32
      // Predicated region
      $region13: #{custom-call.11} parent=5 // pred_check
        %p97 = pneg %p96
      $region14: #{custom-call.11} parent=5 // pred_check_branch
        %99 = sbr.rel (%p97) target = $region16
      $region15: #{custom-call.11} parent=5 // pred_region
        %s100 = sand.u32 %s9, 1
        %s101 = sand.u32 %s9, 1
        %s102 = smul.addr %s101, 4
        %s103 = scalar_lea.vmem [#allocation1], %s102
        %s104 = smul.addr %s16, 16
        %s105 = sadd.s32 %s17, %s104
        %s106 = smul.addr %s105, 4
        %s107 = scalar_lea.vmem %s0, %s106
        // Predicated region
        $region17: #{custom-call.11} parent=15 // pred_check
          _
        $region18: #{custom-call.11} parent=15 // pred_check_branch
          %109 = sbr.rel (0) target = $region20
        $region19: #{custom-call.11} parent=15 // pred_region
          // Predicated region
          $region21: #{custom-call.11} parent=19 // pred_check
            _
          $region22: #{custom-call.11} parent=19 // pred_check_branch
            %111 = sbr.rel target = $region24
          $region23: #{custom-call.11} parent=19 // pred_region
            // Predicated region
            $region36: #{custom-call.11} parent=23 // pred_check
              _
            $region37: #{custom-call.11} parent=23 // pred_check_branch
              %127 = sbr.rel (0) target = $region39
            $region38: #{custom-call.11} parent=23 // pred_region
              %s129 = ssub.s32 16, 1
              loop: start=0, step=1, limit=1
              $region40: #{custom-call.11} parent=38 // loop_pre_header
                _
              $region41: #{custom-call.11} parent=38 // loop_header
                %s131 = sphi 0, %s135
                %p132 = scmp.ge.s32.totalorder %s131, 1
                %s136 = sphi %s107, %s107
                %s137 = sphi %s103, %s103
              $region42: #{custom-call.11} parent=38 // loop_header_branch
                %134 = sbr.rel (%p132) target = $region46
              $region43: #{custom-call.11} parent=38 // loop_body
                %v138 = vld [vmem:[%s136] sm:%s129]
                %139 = vst [vmem:[%s137] sm:%s129] %v138
              $region44: #{custom-call.11} parent=38 // loop_footer
                %s135 = sadd.s32 1, %s131
              $region45: #{custom-call.11} parent=38 // loop_footer_branch
                %130 = sbr.rel target = $region41
              $region46: #{custom-call.11} parent=38 // loop_exit
                _
            $region39: #{custom-call.11} parent=23 // pred_fallthru
              _
          $region24: #{custom-call.11} parent=19 // pred_fallthru
            _
          // Predicated region
          $region25: #{custom-call.11} parent=19 // pred_check
            _
          $region26: #{custom-call.11} parent=19 // pred_check_branch
            %113 = sbr.rel (0) target = $region28
          $region27: #{custom-call.11} parent=19 // pred_region
            %s115 = ssub.s32 16, 1
            loop: start=0, step=1, limit=1
            $region29: #{custom-call.11} parent=27 // loop_pre_header
              _
            $region30: #{custom-call.11} parent=27 // loop_header
              %s117 = sphi 0, %s121
              %p118 = scmp.ge.s32.totalorder %s117, 1
              %s122 = sphi %s107, %s107
              %s123 = sphi %s103, %s103
            $region31: #{custom-call.11} parent=27 // loop_header_branch
              %120 = sbr.rel (%p118) target = $region35
            $region32: #{custom-call.11} parent=27 // loop_body
              %v124 = vld [vmem:[%s122] sm:%s115]
              %125 = vst [vmem:[%s123] sm:%s115] %v124
            $region33: #{custom-call.11} parent=27 // loop_footer
              %s121 = sadd.s32 1, %s117
            $region34: #{custom-call.11} parent=27 // loop_footer_branch
              %116 = sbr.rel target = $region30
            $region35: #{custom-call.11} parent=27 // loop_exit
              _
          $region28: #{custom-call.11} parent=19 // pred_fallthru
            _
        $region20: #{custom-call.11} parent=15 // pred_fallthru
          _
        %140 = vnop
      $region16: #{custom-call.11} parent=5 // pred_fallthru
        _
      %p141 = scmp.le.s32.totalorder 1, %s9
      %p142 = scmp.lt.s32.totalorder %s9, 33
      %p143 = pnand %p141, %p142
      %p144 = pneg %p143
      // Predicated region
      $region47: #{custom-call.11} parent=5 // pred_check
        _
      $region48: #{custom-call.11} parent=5 // pred_check_branch
        %146 = sbr.rel (%p143) target = $region50
      $region49: #{custom-call.11} parent=5 // pred_region
        #allocation7 [shape = 's32[3,128]{1,0}', space=vmem, size = 0x1000, scoped, tag = 'scratch for permutations']
        %s147 = ssub.s32 %s9, 1
        %s148 = sand.u32 %s14, 1
        %s149 = sand.u32 %s14, 1
        %s150 = smul.addr %s149, 4
        %s151 = scalar_lea.vmem [#allocation1], %s150
        %s152 = sand.u32 %s14, 1
        %s153 = sand.u32 %s14, 1
        %s154 = smul.addr %s153, 4
        %s155 = scalar_lea.vmem [#allocation1], %s154
        %s156 = sand.u32 %s14, 1
        %s157 = sand.u32 %s14, 1
        %s158 = smul.addr %s157, 4
        %s159 = scalar_lea.vmem [#allocation3], %s158
        %p160 = pneg %p51
        %p161 = pneg %p48
        %s162 = sand.u32 %s38, 1
        %s163 = scalar_lea.sflag [#allocation5], %s162
        %s164 = sand.u32 %s38, 1
        %s165 = smul.addr %s164, 8
        %s166 = scalar_lea.vmem [#allocation4], %s165
        %p167 = pneg %p81
        %p168 = pneg %p78
        %s169 = sand.u32 %s68, 1
        %s170 = sand.u32 %s68, 1
        %s171 = smul.addr %s170, 8
        %s172 = scalar_lea.vmem [#allocation6], %s171
        %s174 = ssub.s32 16, 1
        %v175 = vld [vmem:[%s155] sm:%s174]
        %176 = vst [vmem:[#allocation0] sm:%s174] %v175
        %s177 = sshrl.u32 %s19, 3
        %s178 = sshrl.u32 %s19, 3
        %v179 = vld [vmem:[#allocation0] sm:$0xff]
        %180 = vst [vmem:[#allocation2] sm:$0xff] %v179
        %s181 = sand.u32 %s19, 7
        %s182 = scalar_lea.vmem %s166, %s181 [#allocation4]
        %s183 = sand.u32 %s19, 7
        %s184 = scalar_lea.vmem %s172, %s183 [#allocation6]
        %185 = vst [vmem:[%s182] sm:$0x1] 0
        %v186 = vlaneseq
        %v187 = vshrl.u32 %v186, 7
        %v188 = vmov %v187
        %190 = vst [vmem:[#allocation7] sm:$0xff] %v188
        loop: start=0, step=1, limit=3
        $region52: #{custom-call.11} parent=49 // loop_pre_header
          _
        $region53: #{custom-call.11} parent=49 // loop_header
          %s192 = sphi 0, %s196
          %p193 = scmp.ge.s32.totalorder %s192, 3
        $region54: #{custom-call.11} parent=49 // loop_header_branch
          %195 = sbr.rel (%p193) target = $region58
        $region55: #{custom-call.11} parent=49 // loop_body
          %v197 = vstv %s192
          %v198 = vlaneseq
          %v199 = vshrl.u32 %v198, 7
          %v200 = vmov %v199
          %v201 = vld [vmem:[#allocation2] sm:$0xff]
          %v202 = vand.u32 2147483647, %v201
          %v204 = vstv %s192
          %vm205 = vcmp.ge.s32.totalorder %v200, %v204
          %vm206 = vcmp.lt.s32.totalorder %v200, 3
          %vm207 = vmand %vm205, %vm206
          %vm208 = vcmp.lt.f32.partialorder -inf, %v202
          %vm209 = vmand %vm207, %vm208
          %v210 = vsel %vm209, %v200, %v197
          %v211 = vsel %vm209, %v202, -inf
          %v212 = vrot.slane %v211, 1
          %v213 = vrot.slane %v210, 1
          %vm214 = vcmp.ge.f32.partialorder %v212, %v211
          %v215 = vsel %vm214, %v212, %v211
          %v216 = vsel %vm214, %v213, %v210
          %v217 = vrot.slane %v212, 1
          %v218 = vrot.slane %v213, 1
          %vm219 = vcmp.ge.f32.partialorder %v217, %v215
          %v220 = vsel %vm219, %v217, %v215
          %v221 = vsel %vm219, %v218, %v216
          %v222 = vrot.slane %v217, 1
          %v223 = vrot.slane %v218, 1
          %vm224 = vcmp.ge.f32.partialorder %v222, %v220
          %v225 = vsel %vm224, %v222, %v220
          %v226 = vsel %vm224, %v223, %v221
          %v227 = vrot.slane %v222, 1
          %v228 = vrot.slane %v223, 1
          %vm229 = vcmp.ge.f32.partialorder %v227, %v225
          %v230 = vsel %vm229, %v227, %v225
          %v231 = vsel %vm229, %v228, %v226
          %v232 = vrot.slane %v227, 1
          %v233 = vrot.slane %v228, 1
          %vm234 = vcmp.ge.f32.partialorder %v232, %v230
          %v235 = vsel %vm234, %v232, %v230
          %v236 = vsel %vm234, %v233, %v231
          %v237 = vrot.slane %v232, 1
          %v238 = vrot.slane %v233, 1
          %vm239 = vcmp.ge.f32.partialorder %v237, %v235
          %v240 = vsel %vm239, %v237, %v235
          %v241 = vsel %vm239, %v238, %v236
          %v242 = vrot.slane %v237, 1
          %v243 = vrot.slane %v238, 1
          %vm244 = vcmp.ge.f32.partialorder %v242, %v240
          %v245 = vsel %vm244, %v242, %v240
          %v246 = vsel %vm244, %v243, %v241
          %s247 = ssub.s32 128, %s192
          %248 = vrot.lane.b32.xlu0 %v246, %s247
          %v249 = vpop.permute.xlu0 %248
          %s250 = vtos %v249
          %v251 = vstv %s192
          %v252 = vlaneseq
          %v253 = vand.u32 %v252, 127
          %vm254 = vcmp.eq.s32.totalorder %v253, %v251
          %v255 = vstv %s250
          %v256 = vld [vmem:[%s182] ss:$0 sm:$0xff]
          %v257 = vsel %vm254, %v255, %v256
          %258 = vst [vmem:[%s182] sm:$0x1] %v257
          %s259 = scalar_lea.vmem [#allocation2], %s192
          %s260 = scalar_lea.vmem [#allocation2], %s250
          %v261 = vld [vmem:[%s259] ss:$0 sm:$0xff]
          %v262 = vld [vmem:[%s260] ss:$0 sm:$0xff]
          %263 = vst [vmem:[%s260] sm:$0x1] %v261
          %264 = vst [vmem:[%s259] sm:$0x1] %v262
          %s265 = scalar_lea.vmem [#allocation7], %s192
          %s266 = scalar_lea.vmem [#allocation7], %s250
          %v267 = vld [vmem:[%s265] ss:$0 sm:$0xff]
          %v268 = vld [vmem:[%s266] ss:$0 sm:$0xff]
          %269 = vst [vmem:[%s266] sm:$0x1] %v267
          %270 = vst [vmem:[%s265] sm:$0x1] %v268
          %vm271 = vcmp.ne.f32.partialorder %v262, 0.0
          %vm272 = vmand %vm254, %vm271
          %v273 = vsel %vm272, %v262, 1.0
          %v274 = vlaneseq
          %v275 = vand.u32 %v274, 127
          %v276 = vstv %s192
          %vm277 = vcmp.gt.s32.totalorder %v275, %v276
          %v278 = vsel %vm277, %v262, 0.0
          %v279 = vlaneseq
          %v280 = vshrl.u32 %v279, 7
          %v281 = vmov %v280
          %v282 = vld [vmem:[#allocation2] sm:$0xff]
          %v284 = vstv %s192
          %vm285 = vcmp.gt.s32.totalorder %v281, %v284
          %v286 = vsel %vm285, %v273, 1.0
          %v287 = vrcp.pop %v286
          %v288 = vmul.f32 %v286, %v287
          %v289 = vsub.f32 1.0, %v288
          %v290 = vmul.f32 %v287, %v289
          %v291 = vadd.f32 %v287, %v290
          %vm292 = vweird.f32 %v286
          %vm293 = vweird.f32 %v287
          %vm294 = vmor %vm292, %vm293
          %v295 = vsel %vm294, %v287, %v291
          %v296 = vand.u32 2147483647, %v286
          %vm297 = vcmp.eq.f32.partialorder %v296, 8.507059e+37
          %v298 = vand.u32 %v286, 2147483648
          %v299 = vor.u32 1.1754944e-38, %v298
          %v300 = vsel %vm297, %v299, %v295
          %v301 = vmul.f32 %v282, %v300
          %vm302 = vmand %vm285, %vm254
          %v303 = vsel %vm302, %v301, 0.0
          %304 = vadd.xlane.f32.xlu0 %v303
          %v305 = vpop.xlane.xlu0 %304
          %v306 = vmul.f32 %v305, %v278
          %v307 = vsub.f32 %v301, %v306
          %308 = vst [vmem:[#allocation2] sm:$0xff] %v307
        $region56: #{custom-call.11} parent=49 // loop_footer
          %s196 = sadd.s32 1, %s192
        $region57: #{custom-call.11} parent=49 // loop_footer_branch
          %191 = sbr.rel target = $region53
        $region58: #{custom-call.11} parent=49 // loop_exit
          _
        %v309 = vld [vmem:[#allocation7] sm:$0xff]
        %s310 = scalar_lea.vmem [#allocation7], 8
        %s311 = scalar_lea.vmem [#allocation7], 16
        %s312 = scalar_lea.vmem [#allocation7], 24
        %s313 = scalar_lea.vmem [#allocation7], 32
        %s314 = scalar_lea.vmem [#allocation7], 40
        %s315 = scalar_lea.vmem [#allocation7], 48
        %s316 = scalar_lea.vmem [#allocation7], 56
        %s317 = scalar_lea.vmem [#allocation7], 64
        %s318 = scalar_lea.vmem [#allocation7], 72
        %s319 = scalar_lea.vmem [#allocation7], 80
        %s320 = scalar_lea.vmem [#allocation7], 88
        %s321 = scalar_lea.vmem [#allocation7], 96
        %s322 = scalar_lea.vmem [#allocation7], 104
        %s323 = scalar_lea.vmem [#allocation7], 112
        %s324 = scalar_lea.vmem [#allocation7], 120
        %325 = vxpose.xlu0.b32.start [1/16] %v309, 128
        %326 = vxpose.xlu0.b32.cont [2/16] 0, 128
        %327 = vxpose.xlu0.b32.cont [3/16] 0, 128
        %328 = vxpose.xlu0.b32.cont [4/16] 0, 128
        %329 = vxpose.xlu0.b32.cont [5/16] 0, 128
        %330 = vxpose.xlu0.b32.cont [6/16] 0, 128
        %331 = vxpose.xlu0.b32.cont [7/16] 0, 128
        %332 = vxpose.xlu0.b32.cont [8/16] 0, 128
        %333 = vxpose.xlu0.b32.cont [9/16] 0, 128
        %334 = vxpose.xlu0.b32.cont [10/16] 0, 128
        %335 = vxpose.xlu0.b32.cont [11/16] 0, 128
        %336 = vxpose.xlu0.b32.cont [12/16] 0, 128
        %337 = vxpose.xlu0.b32.cont [13/16] 0, 128
        %338 = vxpose.xlu0.b32.cont [14/16] 0, 128
        %339 = vxpose.xlu0.b32.cont [15/16] 0, 128
        %340 = vxpose.xlu0.b32.end [16/16] 0, 128
        %v341 = vpop.trf.xlu0
        %v342 = vpop.trf.xlu0
        %v343 = vpop.trf.xlu0
        %v344 = vpop.trf.xlu0
        %v345 = vpop.trf.xlu0
        %v346 = vpop.trf.xlu0
        %v347 = vpop.trf.xlu0
        %v348 = vpop.trf.xlu0
        %v349 = vpop.trf.xlu0
        %v350 = vpop.trf.xlu0
        %v351 = vpop.trf.xlu0
        %v352 = vpop.trf.xlu0
        %v353 = vpop.trf.xlu0
        %v354 = vpop.trf.xlu0
        %v355 = vpop.trf.xlu0
        %v356 = vpop.trf.xlu0
        %357 = vst [vmem:[%s184] sm:$0x1] %v341
        %s359 = ssub.s32 16, 1
        %v360 = vld [vmem:[#allocation2] sm:%s359]
        %s362 = ssub.s32 16, 1
        %363 = vst [vmem:[%s159] sm:%s362] %v360
        %s364 = sand.u32 %s14, 1
        %s365 = sand.u32 %s14, 1
        %s366 = smul.addr %s365, 4
        %s367 = scalar_lea.vmem [#allocation3], %s366
        %s368 = sand.u32 %s38, 1
        %s369 = scalar_lea.sflag [#allocation5], %s368
        %s370 = sand.u32 %s38, 1
        %s371 = smul.addr %s370, 8
        %s372 = scalar_lea.vmem [#allocation4], %s371
        %s373 = sand.u32 %s68, 1
        %s374 = sand.u32 %s68, 1
        %s375 = smul.addr %s374, 8
        %s376 = scalar_lea.vmem [#allocation6], %s375
        %s377 = smul.addr %s18, 16
        %s378 = sadd.s32 %s19, %s377
        %s379 = smul.addr %s378, 4
        %s380 = scalar_lea.vmem %s1, %s379
        // Predicated region
        $region59: #{custom-call.11} parent=49 // pred_check
          _
        $region60: #{custom-call.11} parent=49 // pred_check_branch
          %382 = sbr.rel (0) target = $region62
        $region61: #{custom-call.11} parent=49 // pred_region
          // Predicated region
          $region63: #{custom-call.11} parent=61 // pred_check
            _
          $region64: #{custom-call.11} parent=61 // pred_check_branch
            %384 = sbr.rel target = $region66
          $region65: #{custom-call.11} parent=61 // pred_region
            // Predicated region
            $region78: #{custom-call.11} parent=65 // pred_check
              _
            $region79: #{custom-call.11} parent=65 // pred_check_branch
              %400 = sbr.rel (0) target = $region81
            $region80: #{custom-call.11} parent=65 // pred_region
              %s402 = ssub.s32 16, 1
              loop: start=0, step=1, limit=1
              $region82: #{custom-call.11} parent=80 // loop_pre_header
                _
              $region83: #{custom-call.11} parent=80 // loop_header
                %s404 = sphi 0, %s408
                %p405 = scmp.ge.s32.totalorder %s404, 1
                %s409 = sphi %s367, %s367
                %s410 = sphi %s380, %s380
              $region84: #{custom-call.11} parent=80 // loop_header_branch
                %407 = sbr.rel (%p405) target = $region88
              $region85: #{custom-call.11} parent=80 // loop_body
                %v411 = vld [vmem:[%s409] sm:%s402]
                %412 = vst [vmem:[%s410] sm:%s402] %v411
              $region86: #{custom-call.11} parent=80 // loop_footer
                %s408 = sadd.s32 1, %s404
              $region87: #{custom-call.11} parent=80 // loop_footer_branch
                %403 = sbr.rel target = $region83
              $region88: #{custom-call.11} parent=80 // loop_exit
                _
            $region81: #{custom-call.11} parent=65 // pred_fallthru
              _
          $region66: #{custom-call.11} parent=61 // pred_fallthru
            _
          // Predicated region
          $region67: #{custom-call.11} parent=61 // pred_check
            _
          $region68: #{custom-call.11} parent=61 // pred_check_branch
            %386 = sbr.rel (0) target = $region70
          $region69: #{custom-call.11} parent=61 // pred_region
            %s388 = ssub.s32 16, 1
            loop: start=0, step=1, limit=1
            $region71: #{custom-call.11} parent=69 // loop_pre_header
              _
            $region72: #{custom-call.11} parent=69 // loop_header
              %s390 = sphi 0, %s394
              %p391 = scmp.ge.s32.totalorder %s390, 1
              %s395 = sphi %s367, %s367
              %s396 = sphi %s380, %s380
            $region73: #{custom-call.11} parent=69 // loop_header_branch
              %393 = sbr.rel (%p391) target = $region77
            $region74: #{custom-call.11} parent=69 // loop_body
              %v397 = vld [vmem:[%s395] sm:%s388]
              %398 = vst [vmem:[%s396] sm:%s388] %v397
            $region75: #{custom-call.11} parent=69 // loop_footer
              %s394 = sadd.s32 1, %s390
            $region76: #{custom-call.11} parent=69 // loop_footer_branch
              %389 = sbr.rel target = $region72
            $region77: #{custom-call.11} parent=69 // loop_exit
              _
          $region70: #{custom-call.11} parent=61 // pred_fallthru
            _
        $region62: #{custom-call.11} parent=49 // pred_fallthru
          _
        %413 = vnop
        // Predicated region
        $region89: #{custom-call.11} parent=49 // pred_check
          %p414 = pneg %p48
        $region90: #{custom-call.11} parent=49 // pred_check_branch
          %416 = sbr.rel (%p414) target = $region92
        $region91: #{custom-call.11} parent=49 // pred_region
          %s417 = sshrl.u32 %s19, 3
          %419 = vsyncadd %s369, 0
          %s420 = smul.addr %s18, 2
          %s421 = sadd.s32 %s417, %s420
          %s422 = smul.addr %s421, 8
          %s423 = scalar_lea.hbm %s2, %s422
          %s425 = sshll.u32 %s372, 4
          %s426 = int_to_ptr.vmem [resolvable:$true] %s425
          %s427 = sshll.u32 %s423, 4
          %s428 = int_to_ptr.hbm [resolvable:$true] %s427
          %430 = dma.vmem_to_hbm [thread:$0]  %s426, 128, %s428, %s369
        $region92: #{custom-call.11} parent=49 // pred_fallthru
          _
        // Predicated region
        $region93: #{custom-call.11} parent=49 // pred_check
          %p431 = pneg %p78
        $region94: #{custom-call.11} parent=49 // pred_check_branch
          %433 = sbr.rel (%p431) target = $region96
        $region95: #{custom-call.11} parent=49 // pred_region
          %s434 = sshrl.u32 %s19, 3
          %s435 = smul.addr %s18, 2
          %s436 = sadd.s32 %s434, %s435
          %s437 = smul.addr %s436, 8
          %s438 = scalar_lea.vmem %s3, %s437
          // Predicated region
          $region97: #{custom-call.11} parent=95 // pred_check
            _
          $region98: #{custom-call.11} parent=95 // pred_check_branch
            %440 = sbr.rel (0) target = $region100
          $region99: #{custom-call.11} parent=95 // pred_region
            // Predicated region
            $region101: #{custom-call.11} parent=99 // pred_check
              _
            $region102: #{custom-call.11} parent=99 // pred_check_branch
              %442 = sbr.rel (0) target = $region104
            $region103: #{custom-call.11} parent=99 // pred_region
              // Predicated region
              $region116: #{custom-call.11} parent=103 // pred_check
                _
              $region117: #{custom-call.11} parent=103 // pred_check_branch
                %458 = sbr.rel (0) target = $region119
              $region118: #{custom-call.11} parent=103 // pred_region
                loop: start=0, step=1, limit=1
                $region120: #{custom-call.11} parent=118 // loop_pre_header
                  _
                $region121: #{custom-call.11} parent=118 // loop_header
                  %s460 = sphi 0, %s464
                  %p461 = scmp.ge.s32.totalorder %s460, 1
                  %s465 = sphi %s376, %s376
                  %s466 = sphi %s438, %s438
                $region122: #{custom-call.11} parent=118 // loop_header_branch
                  %463 = sbr.rel (%p461) target = $region126
                $region123: #{custom-call.11} parent=118 // loop_body
                  %v467 = vld [vmem:[%s465] sm:$0xff]
                  %468 = vst [vmem:[%s466] sm:$0xff] %v467
                $region124: #{custom-call.11} parent=118 // loop_footer
                  %s464 = sadd.s32 1, %s460
                $region125: #{custom-call.11} parent=118 // loop_footer_branch
                  %459 = sbr.rel target = $region121
                $region126: #{custom-call.11} parent=118 // loop_exit
                  _
              $region119: #{custom-call.11} parent=103 // pred_fallthru
                _
              // Predicated region
              $region127: #{custom-call.11} parent=103 // pred_check
                _
              $region128: #{custom-call.11} parent=103 // pred_check_branch
                %470 = sbr.rel target = $region130
              $region129: #{custom-call.11} parent=103 // pred_region
                _
              $region130: #{custom-call.11} parent=103 // pred_fallthru
                _
            $region104: #{custom-call.11} parent=99 // pred_fallthru
              _
            // Predicated region
            $region105: #{custom-call.11} parent=99 // pred_check
              _
            $region106: #{custom-call.11} parent=99 // pred_check_branch
              %444 = sbr.rel target = $region108
            $region107: #{custom-call.11} parent=99 // pred_region
              %s446 = ssub.s32 256, 1
              loop: start=0, step=1, limit=1
              $region109: #{custom-call.11} parent=107 // loop_pre_header
                _
              $region110: #{custom-call.11} parent=107 // loop_header
                %s448 = sphi 0, %s452
                %p449 = scmp.ge.s32.totalorder %s448, 1
                %s453 = sphi %s376, %s376
                %s454 = sphi %s438, %s438
              $region111: #{custom-call.11} parent=107 // loop_header_branch
                %451 = sbr.rel (%p449) target = $region115
              $region112: #{custom-call.11} parent=107 // loop_body
                %v455 = vld [vmem:[%s453] sm:%s446]
                %456 = vst [vmem:[%s454] sm:%s446] %v455
              $region113: #{custom-call.11} parent=107 // loop_footer
                %s452 = sadd.s32 1, %s448
              $region114: #{custom-call.11} parent=107 // loop_footer_branch
                %447 = sbr.rel target = $region110
              $region115: #{custom-call.11} parent=107 // loop_exit
                _
            $region108: #{custom-call.11} parent=99 // pred_fallthru
              _
          $region100: #{custom-call.11} parent=95 // pred_fallthru
            _
          %471 = vnop
        $region96: #{custom-call.11} parent=49 // pred_fallthru
          _
      $region50: #{custom-call.11} parent=5 // pred_fallthru
        _
      %p472 = scmp.le.s32.totalorder 2, %s9
      // Predicated region
      $region131: #{custom-call.11} parent=5 // pred_check
        %p473 = pneg %p472
      $region132: #{custom-call.11} parent=5 // pred_check_branch
        %475 = sbr.rel (%p473) target = $region134
      $region133: #{custom-call.11} parent=5 // pred_region
        %s476 = ssub.s32 %s9, 2
        %s477 = sand.u32 %s15, 1
        %s478 = sand.u32 %s15, 1
        %s479 = smul.addr %s478, 4
        %s480 = scalar_lea.vmem [#allocation3], %s479
        // Predicated region
        $region135: #{custom-call.11} parent=133 // pred_check
          %p481 = pneg %p54
        $region136: #{custom-call.11} parent=133 // pred_check_branch
          %483 = sbr.rel (%p481) target = $region138
        $region137: #{custom-call.11} parent=133 // pred_region
          %s484 = sand.u32 %s39, 1
          %s485 = scalar_lea.sflag [#allocation5], %s484
          %s486 = sand.u32 %s39, 1
          %s487 = smul.addr %s486, 8
          %s488 = scalar_lea.vmem [#allocation4], %s487
          %490 = dma.done %s485, 128
        $region138: #{custom-call.11} parent=133 // pred_fallthru
          _
        // Predicated region
        $region139: #{custom-call.11} parent=133 // pred_check
          %p491 = pneg %p84
        $region140: #{custom-call.11} parent=133 // pred_check_branch
          %493 = sbr.rel (%p491) target = $region142
        $region141: #{custom-call.11} parent=133 // pred_region
          %s494 = sand.u32 %s69, 1
          %s495 = sand.u32 %s69, 1
          %s496 = smul.addr %s495, 8
          %s497 = scalar_lea.vmem [#allocation6], %s496
        $region142: #{custom-call.11} parent=133 // pred_fallthru
          _
      $region134: #{custom-call.11} parent=5 // pred_fallthru
        _
    $region6: #{custom-call.11} parent=1 // loop_footer
      %s13 = sadd.s32 1, %s9
    $region7: #{custom-call.11} parent=1 // loop_footer_branch
      %8 = sbr.rel target = $region3
    $region8: #{custom-call.11} parent=1 // loop_exit
      _
    %498 = vsyncpa [#allocation5], 1
    %s499 = scalar_lea.sflag [#allocation5], 1
    %500 = vsyncpa %s499, 1

// kernel: node_task_head_forward.3
$region0: #{node_task_head_forward.3}
  #allocation0 [shape = 'u32[]', space=smem, size = 0x4, offset = 0x4, fixed_abs, tag = 'smem constant byte address 0x4 - core index']
  #allocation1 [shape = 'u32[72,128]{1,0:T(1,128)}', space=vmem, size = 0x9000, scoped, tag = 'internal scratch']
  #allocation2 [shape = 'f32[1,1]{1,0:T(1,128)S(1)}', space=vmem, size = 0x200, scoped, tag = 'scoped memory for node_task_head_forward.3']
  %s0 = inlined_call_operand.vmem [shape: f32[2,16,32], index: 0, kind: input, shape index: {}]
  %s1 = inlined_call_operand.vmem [shape: f32[2,16,32], index: 1, kind: input, shape index: {}]
  %s2 = inlined_call_operand.vmem [shape: f32[2,16,16,32], index: 2, kind: input, shape index: {}]
  %s3 = inlined_call_operand.vmem [shape: s32[2,16,16], index: 3, kind: input, shape index: {}]
  %s4 = inlined_call_operand.vmem [shape: f32[32,32], index: 4, kind: input, shape index: {}]
  %s5 = inlined_call_operand.vmem [shape: f32[1,32], index: 5, kind: input, shape index: {}]
  %s6 = inlined_call_operand.<no memory space> [shape: f32[1,1], index: 6, kind: input, shape index: {}]
  %s7 = inlined_call_operand.vmem [shape: f32[2,16,128], index: 7, kind: output, shape index: {}]
  %s8 = sld [smem:[#allocation0]]
  $region61: #{node_task_head_forward.3} parent=0
    _
  %s10 = ssub.s32 1, %s8
  %s11 = scalar_select 0, %s10, %s8
  %v12 = vstv %s6
  %13 = vst [vmem:[#allocation2] sm:$0x1] %v12
  loop: start=0, step=1, limit=4
  $region2: #{node_task_head_forward.3} parent=0 // loop_pre_header
    _
  $region3: #{node_task_head_forward.3} parent=0 // loop_header
    %s15 = sphi 0, %s19
    %p16 = scmp.ge.s32.totalorder %s15, 4
    %s22 = sphi 0, %s34
    %s23 = sphi 0, %s30
    %s24 = sphi 0, %s22
    %s25 = sphi 0, %s23
    %s26 = sphi 0, %s24
    %s27 = sphi 0, %s25
    %s39 = sphi 0, %s41
    %s42 = sphi 0, %s39
    %s43 = sphi 0, %s42
    %s59 = sphi 0, %s43
    %s65 = sphi 0, %s67
    %s68 = sphi 0, %s65
    %s69 = sphi 0, %s68
    %s85 = sphi 0, %s69
    %s93 = sphi 0, %s95
    %s96 = sphi 0, %s93
    %s97 = sphi 0, %s96
    %s113 = sphi 0, %s97
    %s121 = sphi 0, %s123
    %s124 = sphi 0, %s121
    %s125 = sphi 0, %s124
    %s141 = sphi 0, %s125
    %s145 = sphi 0, %s145
    %s147 = sphi 0, %s145
    %s148 = sphi 0, %s147
    %s162 = sphi 0, %s148
    %s166 = sphi 0, %s166
    %s168 = sphi 0, %s166
    %s169 = sphi 0, %s168
    %s183 = sphi 0, %s169
    %s187 = sphi 0, %s187
    %s189 = sphi 0, %s187
    %s190 = sphi 0, %s189
    %s204 = sphi 0, %s190
    %s212 = sphi 0, %s214
    %s215 = sphi 0, %s212
    %s216 = sphi 0, %s215
    %s232 = sphi 0, %s216
  $region4: #{node_task_head_forward.3} parent=0 // loop_header_branch
    %18 = sbr.rel (%p16) target = $region8
  $region5: #{node_task_head_forward.3} parent=0 // loop_body
    %s20 = ssub.s32 %s15, 1
    %s21 = ssub.s32 %s15, 2
    %s28 = sadd.s32 1, %s23
    %p29 = scmp.ge.s32.totalorder %s28, 1
    %s30 = scalar_select %p29, 0, %s28
    %s31 = sadd.s32 1, %s22
    %s32 = scalar_select %p29, %s31, %s22
    %p33 = scmp.ge.s32.totalorder %s32, 2
    %s34 = scalar_select %p33, 0, %s32
    %s35 = ssub.s32 %s22, %s34
    %s36 = ssub.s32 %s23, %s30
    %s37 = sor.u32 %s35, %s36
    %p38 = scmp.eq.s32.totalorder %s37, 0
    %s40 = sadd.s32 %s39, 1
    %s41 = scalar_select %p38, %s39, %s40
    %p44 = pneg %p38
    %p45 = scmp.eq.s32.totalorder %s15, 1
    %p46 = por %p44, %p45
    %p47 = scmp.ne.s32.totalorder %s39, %s42
    %p48 = scmp.eq.s32.totalorder %s15, 0
    %p49 = por %p47, %p48
    %p50 = scmp.ne.s32.totalorder %s39, %s42
    %p51 = scmp.eq.s32.totalorder %s20, 1
    %p52 = por %p50, %p51
    %p53 = scmp.ne.s32.totalorder %s42, %s43
    %p54 = scmp.eq.s32.totalorder %s20, 0
    %p55 = por %p53, %p54
    %p56 = scmp.ne.s32.totalorder %s42, %s43
    %p57 = scmp.eq.s32.totalorder %s21, 1
    %p58 = por %p56, %p57
    %p60 = scmp.ne.s32.totalorder %s43, %s59
    %p61 = scmp.eq.s32.totalorder %s21, 0
    %p62 = por %p60, %p61
    %s63 = ssub.s32 %s22, %s34
    %p64 = scmp.eq.s32.totalorder %s63, 0
    %s66 = sadd.s32 %s65, 1
    %s67 = scalar_select %p64, %s65, %s66
    %p70 = pneg %p64
    %p71 = scmp.eq.s32.totalorder %s15, 1
    %p72 = por %p70, %p71
    %p73 = scmp.ne.s32.totalorder %s65, %s68
    %p74 = scmp.eq.s32.totalorder %s15, 0
    %p75 = por %p73, %p74
    %p76 = scmp.ne.s32.totalorder %s65, %s68
    %p77 = scmp.eq.s32.totalorder %s20, 1
    %p78 = por %p76, %p77
    %p79 = scmp.ne.s32.totalorder %s68, %s69
    %p80 = scmp.eq.s32.totalorder %s20, 0
    %p81 = por %p79, %p80
    %p82 = scmp.ne.s32.totalorder %s68, %s69
    %p83 = scmp.eq.s32.totalorder %s21, 1
    %p84 = por %p82, %p83
    %p86 = scmp.ne.s32.totalorder %s69, %s85
    %p87 = scmp.eq.s32.totalorder %s21, 0
    %p88 = por %p86, %p87
    %s89 = ssub.s32 %s22, %s34
    %s90 = ssub.s32 %s23, %s30
    %s91 = sor.u32 %s89, %s90
    %p92 = scmp.eq.s32.totalorder %s91, 0
    %s94 = sadd.s32 %s93, 1
    %s95 = scalar_select %p92, %s93, %s94
    %p98 = pneg %p92
    %p99 = scmp.eq.s32.totalorder %s15, 1
    %p100 = por %p98, %p99
    %p101 = scmp.ne.s32.totalorder %s93, %s96
    %p102 = scmp.eq.s32.totalorder %s15, 0
    %p103 = por %p101, %p102
    %p104 = scmp.ne.s32.totalorder %s93, %s96
    %p105 = scmp.eq.s32.totalorder %s20, 1
    %p106 = por %p104, %p105
    %p107 = scmp.ne.s32.totalorder %s96, %s97
    %p108 = scmp.eq.s32.totalorder %s20, 0
    %p109 = por %p107, %p108
    %p110 = scmp.ne.s32.totalorder %s96, %s97
    %p111 = scmp.eq.s32.totalorder %s21, 1
    %p112 = por %p110, %p111
    %p114 = scmp.ne.s32.totalorder %s97, %s113
    %p115 = scmp.eq.s32.totalorder %s21, 0
    %p116 = por %p114, %p115
    %s117 = ssub.s32 %s22, %s34
    %s118 = ssub.s32 %s23, %s30
    %s119 = sor.u32 %s117, %s118
    %p120 = scmp.eq.s32.totalorder %s119, 0
    %s122 = sadd.s32 %s121, 1
    %s123 = scalar_select %p120, %s121, %s122
    %p126 = pneg %p120
    %p127 = scmp.eq.s32.totalorder %s15, 1
    %p128 = por %p126, %p127
    %p129 = scmp.ne.s32.totalorder %s121, %s124
    %p130 = scmp.eq.s32.totalorder %s15, 0
    %p131 = por %p129, %p130
    %p132 = scmp.ne.s32.totalorder %s121, %s124
    %p133 = scmp.eq.s32.totalorder %s20, 1
    %p134 = por %p132, %p133
    %p135 = scmp.ne.s32.totalorder %s124, %s125
    %p136 = scmp.eq.s32.totalorder %s20, 0
    %p137 = por %p135, %p136
    %p138 = scmp.ne.s32.totalorder %s124, %s125
    %p139 = scmp.eq.s32.totalorder %s21, 1
    %p140 = por %p138, %p139
    %p142 = scmp.ne.s32.totalorder %s125, %s141
    %p143 = scmp.eq.s32.totalorder %s21, 0
    %p144 = por %p142, %p143
    %s146 = sadd.s32 %s145, 1
    %p149 = scmp.eq.s32.totalorder %s15, 1
    %p150 = scmp.ne.s32.totalorder %s145, %s147
    %p151 = scmp.eq.s32.totalorder %s15, 0
    %p152 = por %p150, %p151
    %p153 = scmp.ne.s32.totalorder %s145, %s147
    %p154 = scmp.eq.s32.totalorder %s20, 1
    %p155 = por %p153, %p154
    %p156 = scmp.ne.s32.totalorder %s147, %s148
    %p157 = scmp.eq.s32.totalorder %s20, 0
    %p158 = por %p156, %p157
    %p159 = scmp.ne.s32.totalorder %s147, %s148
    %p160 = scmp.eq.s32.totalorder %s21, 1
    %p161 = por %p159, %p160
    %p163 = scmp.ne.s32.totalorder %s148, %s162
    %p164 = scmp.eq.s32.totalorder %s21, 0
    %p165 = por %p163, %p164
    %s167 = sadd.s32 %s166, 1
    %p170 = scmp.eq.s32.totalorder %s15, 1
    %p171 = scmp.ne.s32.totalorder %s166, %s168
    %p172 = scmp.eq.s32.totalorder %s15, 0
    %p173 = por %p171, %p172
    %p174 = scmp.ne.s32.totalorder %s166, %s168
    %p175 = scmp.eq.s32.totalorder %s20, 1
    %p176 = por %p174, %p175
    %p177 = scmp.ne.s32.totalorder %s168, %s169
    %p178 = scmp.eq.s32.totalorder %s20, 0
    %p179 = por %p177, %p178
    %p180 = scmp.ne.s32.totalorder %s168, %s169
    %p181 = scmp.eq.s32.totalorder %s21, 1
    %p182 = por %p180, %p181
    %p184 = scmp.ne.s32.totalorder %s169, %s183
    %p185 = scmp.eq.s32.totalorder %s21, 0
    %p186 = por %p184, %p185
    %s188 = sadd.s32 %s187, 1
    %p191 = scmp.eq.s32.totalorder %s15, 1
    %p192 = scmp.ne.s32.totalorder %s187, %s189
    %p193 = scmp.eq.s32.totalorder %s15, 0
    %p194 = por %p192, %p193
    %p195 = scmp.ne.s32.totalorder %s187, %s189
    %p196 = scmp.eq.s32.totalorder %s20, 1
    %p197 = por %p195, %p196
    %p198 = scmp.ne.s32.totalorder %s189, %s190
    %p199 = scmp.eq.s32.totalorder %s20, 0
    %p200 = por %p198, %p199
    %p201 = scmp.ne.s32.totalorder %s189, %s190
    %p202 = scmp.eq.s32.totalorder %s21, 1
    %p203 = por %p201, %p202
    %p205 = scmp.ne.s32.totalorder %s190, %s204
    %p206 = scmp.eq.s32.totalorder %s21, 0
    %p207 = por %p205, %p206
    %s208 = ssub.s32 %s22, %s34
    %s209 = ssub.s32 %s23, %s30
    %s210 = sor.u32 %s208, %s209
    %p211 = scmp.eq.s32.totalorder %s210, 0
    %s213 = sadd.s32 %s212, 1
    %s214 = scalar_select %p211, %s212, %s213
    %p217 = pneg %p211
    %p218 = scmp.eq.s32.totalorder %s15, 1
    %p219 = por %p217, %p218
    %p220 = scmp.ne.s32.totalorder %s212, %s215
    %p221 = scmp.eq.s32.totalorder %s15, 0
    %p222 = por %p220, %p221
    %p223 = scmp.ne.s32.totalorder %s212, %s215
    %p224 = scmp.eq.s32.totalorder %s20, 1
    %p225 = por %p223, %p224
    %p226 = scmp.ne.s32.totalorder %s215, %s216
    %p227 = scmp.eq.s32.totalorder %s20, 0
    %p228 = por %p226, %p227
    %p229 = scmp.ne.s32.totalorder %s215, %s216
    %p230 = scmp.eq.s32.totalorder %s21, 1
    %p231 = por %p229, %p230
    %p233 = scmp.ne.s32.totalorder %s216, %s232
    %p234 = scmp.eq.s32.totalorder %s21, 0
    %p235 = por %p233, %p234
    %p236 = scmp.le.s32.totalorder 1, %s15
    %p237 = scmp.lt.s32.totalorder %s15, 3
    %p238 = pnand %p236, %p237
    %p239 = pneg %p238
    // Predicated region
    $region9: #{node_task_head_forward.3} parent=5 // pred_check
      _
    $region10: #{node_task_head_forward.3} parent=5 // pred_check_branch
      %241 = sbr.rel (%p238) target = $region12
    $region11: #{node_task_head_forward.3} parent=5 // pred_region
      %s242 = ssub.s32 %s15, 1
      // Predicated region
      $region13: #{node_task_head_forward.3} parent=11 // pred_check
        %p243 = pneg %p158
      $region14: #{node_task_head_forward.3} parent=11 // pred_check_branch
        %245 = sbr.rel (%p243) target = $region16
      $region15: #{node_task_head_forward.3} parent=11 // pred_region
        _
      $region16: #{node_task_head_forward.3} parent=11 // pred_fallthru
        _
      // Predicated region
      $region17: #{node_task_head_forward.3} parent=11 // pred_check
        %p246 = pneg %p179
      $region18: #{node_task_head_forward.3} parent=11 // pred_check_branch
        %248 = sbr.rel (%p246) target = $region20
      $region19: #{node_task_head_forward.3} parent=11 // pred_region
        _
      $region20: #{node_task_head_forward.3} parent=11 // pred_fallthru
        _
      // Predicated region
      $region21: #{node_task_head_forward.3} parent=11 // pred_check
        %p249 = pneg %p200
      $region22: #{node_task_head_forward.3} parent=11 // pred_check_branch
        %251 = sbr.rel (%p249) target = $region24
      $region23: #{node_task_head_forward.3} parent=11 // pred_region
        _
      $region24: #{node_task_head_forward.3} parent=11 // pred_fallthru
        _
    $region12: #{node_task_head_forward.3} parent=5 // pred_fallthru
      _
    %p252 = scmp.lt.s32.totalorder %s15, 2
    // Predicated region
    $region25: #{node_task_head_forward.3} parent=5 // pred_check
      %p253 = pneg %p252
    $region26: #{node_task_head_forward.3} parent=5 // pred_check_branch
      %255 = sbr.rel (%p253) target = $region28
    $region27: #{node_task_head_forward.3} parent=5 // pred_region
      // Predicated region
      $region29: #{node_task_head_forward.3} parent=27 // pred_check
        %p256 = pneg %p49
      $region30: #{node_task_head_forward.3} parent=27 // pred_check_branch
        %258 = sbr.rel (%p256) target = $region32
      $region31: #{node_task_head_forward.3} parent=27 // pred_region
        %s259 = smul.u32 2, %s23
        %p260 = scmp.lt.s32.totalorder %s22, 1
        %s261 = scalar_select %p260, %s22, 1
        %p262 = scmp.lt.s32.totalorder %s259, 1
        %s263 = scalar_select %p262, %s259, 1
        %s264 = smul.addr %s261, 2
        %s265 = sadd.s32 %s263, %s264
        %s266 = smul.addr %s265, 8
        %s267 = scalar_lea.vmem %s0, %s266
        %s268 = smul.u32 2, %s23
      $region32: #{node_task_head_forward.3} parent=27 // pred_fallthru
        _
      // Predicated region
      $region33: #{node_task_head_forward.3} parent=27 // pred_check
        %p269 = pneg %p75
      $region34: #{node_task_head_forward.3} parent=27 // pred_check_branch
        %271 = sbr.rel (%p269) target = $region36
      $region35: #{node_task_head_forward.3} parent=27 // pred_region
        %p272 = scmp.lt.s32.totalorder %s22, 1
        %s273 = scalar_select %p272, %s22, 1
        %s274 = smul.addr %s273, 2
        %s275 = smul.addr %s274, 8
        %s276 = scalar_lea.vmem %s1, %s275
      $region36: #{node_task_head_forward.3} parent=27 // pred_fallthru
        _
      // Predicated region
      $region37: #{node_task_head_forward.3} parent=27 // pred_check
        %p277 = pneg %p103
      $region38: #{node_task_head_forward.3} parent=27 // pred_check_branch
        %279 = sbr.rel (%p277) target = $region40
      $region39: #{node_task_head_forward.3} parent=27 // pred_region
        %s280 = smul.u32 16, %s23
        %p281 = scmp.lt.s32.totalorder %s22, 1
        %s282 = scalar_select %p281, %s22, 1
        %p283 = scmp.lt.s32.totalorder %s280, 15
        %s284 = scalar_select %p283, %s280, 15
        %s285 = smul.addr %s284, 2
        %s286 = smul.addr %s282, 32
        %s287 = sadd.s32 %s285, %s286
        %s288 = smul.addr %s287, 8
        %s289 = scalar_lea.vmem %s2, %s288
        %s290 = smul.u32 16, %s23
      $region40: #{node_task_head_forward.3} parent=27 // pred_fallthru
        _
      // Predicated region
      $region41: #{node_task_head_forward.3} parent=27 // pred_check
        %p291 = pneg %p131
      $region42: #{node_task_head_forward.3} parent=27 // pred_check_branch
        %293 = sbr.rel (%p291) target = $region44
      $region43: #{node_task_head_forward.3} parent=27 // pred_region
        %s294 = smul.u32 2, %s23
        %p295 = scmp.lt.s32.totalorder %s22, 1
        %s296 = scalar_select %p295, %s22, 1
        %p297 = scmp.lt.s32.totalorder %s294, 1
        %s298 = scalar_select %p297, %s294, 1
        %s299 = smul.addr %s296, 2
        %s300 = sadd.s32 %s298, %s299
        %s301 = smul.addr %s300, 8
        %s302 = scalar_lea.vmem %s3, %s301
        %s303 = smul.u32 2, %s23
      $region44: #{node_task_head_forward.3} parent=27 // pred_fallthru
        _
    $region28: #{node_task_head_forward.3} parent=5 // pred_fallthru
      _
    %p304 = scmp.le.s32.totalorder 1, %s15
    %p305 = scmp.lt.s32.totalorder %s15, 3
    %p306 = pnand %p304, %p305
    %p307 = pneg %p306
    // Predicated region
    $region45: #{node_task_head_forward.3} parent=5 // pred_check
      _
    $region46: #{node_task_head_forward.3} parent=5 // pred_check_branch
      %309 = sbr.rel (%p306) target = $region48
    $region47: #{node_task_head_forward.3} parent=5 // pred_region
      %s310 = ssub.s32 %s15, 1
      %s311 = smul.u32 2, %s25
      %p312 = scmp.lt.s32.totalorder %s24, 1
      %s313 = scalar_select %p312, %s24, 1
      %p314 = scmp.lt.s32.totalorder %s311, 1
      %s315 = scalar_select %p314, %s311, 1
      %s316 = smul.addr %s313, 2
      %s317 = sadd.s32 %s315, %s316
      %s318 = smul.addr %s317, 8
      %s319 = scalar_lea.vmem %s0, %s318
      %p320 = pneg %p55
      %p321 = pneg %p52
      %p322 = scmp.lt.s32.totalorder %s24, 1
      %s323 = scalar_select %p322, %s24, 1
      %s324 = smul.addr %s323, 2
      %s325 = smul.addr %s324, 8
      %s326 = scalar_lea.vmem %s1, %s325
      %p327 = pneg %p81
      %p328 = pneg %p78
      %s329 = smul.u32 16, %s25
      %p330 = scmp.lt.s32.totalorder %s24, 1
      %s331 = scalar_select %p330, %s24, 1
      %p332 = scmp.lt.s32.totalorder %s329, 15
      %s333 = scalar_select %p332, %s329, 15
      %s334 = smul.addr %s333, 2
      %s335 = smul.addr %s331, 32
      %s336 = sadd.s32 %s334, %s335
      %s337 = smul.addr %s336, 8
      %s338 = scalar_lea.vmem %s2, %s337
      %p339 = pneg %p109
      %p340 = pneg %p106
      %s341 = smul.u32 2, %s25
      %p342 = scmp.lt.s32.totalorder %s24, 1
      %s343 = scalar_select %p342, %s24, 1
      %p344 = scmp.lt.s32.totalorder %s341, 1
      %s345 = scalar_select %p344, %s341, 1
      %s346 = smul.addr %s343, 2
      %s347 = sadd.s32 %s345, %s346
      %s348 = smul.addr %s347, 8
      %s349 = scalar_lea.vmem %s3, %s348
      %p350 = pneg %p137
      %p351 = pneg %p134
      %p352 = pneg %p158
      %p353 = pneg %p155
      %p354 = pneg %p179
      %p355 = pneg %p176
      %p356 = pneg %p200
      %p357 = pneg %p197
      %p358 = pneg %p228
      %p359 = pneg %p225
      %s360 = smul.u32 2, %s25
      %p361 = scmp.lt.s32.totalorder %s24, 1
      %s362 = scalar_select %p361, %s24, 1
      %p363 = scmp.lt.s32.totalorder %s360, 1
      %s364 = scalar_select %p363, %s360, 1
      %s365 = smul.addr %s362, 2
      %s366 = sadd.s32 %s364, %s365
      %s367 = smul.addr %s366, 8
      %s368 = scalar_lea.vmem %s7, %s367
      %s369 = smul.u32 2, %s25
      %p370 = scmp.lt.s32.totalorder %s24, 1
      %s371 = scalar_select %p370, %s24, 1
      %p372 = scmp.lt.s32.totalorder %s369, 1
      %s373 = scalar_select %p372, %s369, 1
      %s374 = smul.addr %s371, 2
      %s375 = sadd.s32 %s373, %s374
      %s376 = smul.addr %s375, 8
      %s377 = scalar_lea.vmem %s0, %s376
      %s378 = smul.u32 2, %s25
      %p379 = scmp.lt.s32.totalorder %s24, 1
      %s380 = scalar_select %p379, %s24, 1
      %s381 = smul.addr %s380, 2
      %s382 = smul.addr %s381, 8
      %s383 = scalar_lea.vmem %s1, %s382
      %s384 = smul.u32 16, %s25
      %p385 = scmp.lt.s32.totalorder %s24, 1
      %s386 = scalar_select %p385, %s24, 1
      %p387 = scmp.lt.s32.totalorder %s384, 15
      %s388 = scalar_select %p387, %s384, 15
      %s389 = smul.addr %s388, 2
      %s390 = smul.addr %s386, 32
      %s391 = sadd.s32 %s389, %s390
      %s392 = smul.addr %s391, 8
      %s393 = scalar_lea.vmem %s2, %s392
      %s394 = smul.u32 16, %s25
      %s395 = smul.u32 2, %s25
      %p396 = scmp.lt.s32.totalorder %s24, 1
      %s397 = scalar_select %p396, %s24, 1
      %p398 = scmp.lt.s32.totalorder %s395, 1
      %s399 = scalar_select %p398, %s395, 1
      %s400 = smul.addr %s397, 2
      %s401 = sadd.s32 %s399, %s400
      %s402 = smul.addr %s401, 8
      %s403 = scalar_lea.vmem %s3, %s402
      %s404 = smul.u32 2, %s25
      %s405 = smul.u32 2, %s25
      %p406 = scmp.lt.s32.totalorder %s24, 1
      %s407 = scalar_select %p406, %s24, 1
      %p408 = scmp.lt.s32.totalorder %s405, 1
      %s409 = scalar_select %p408, %s405, 1
      %s410 = smul.addr %s407, 2
      %s411 = sadd.s32 %s409, %s410
      %s412 = smul.addr %s411, 8
      %s413 = scalar_lea.vmem %s7, %s412
      %s414 = smul.u32 2, %s25
      %v415 = vld [vmem:[%s393] sm:$0xff]
      %v416 = vld [vmem:[%s393 + $0x8] sm:$0xff]
      %v417 = vld [vmem:[%s393 + $0x10] sm:$0xff]
      %v418 = vld [vmem:[%s393 + $0x18] sm:$0xff]
      %v419 = vld [vmem:[%s393 + $0x20] sm:$0xff]
      %v420 = vld [vmem:[%s393 + $0x28] sm:$0xff]
      %v421 = vld [vmem:[%s393 + $0x30] sm:$0xff]
      %v422 = vld [vmem:[%s393 + $0x38] sm:$0xff]
      %v423 = vld [vmem:[%s393 + $0x40] sm:$0xff]
      %v424 = vld [vmem:[%s393 + $0x48] sm:$0xff]
      %v425 = vld [vmem:[%s393 + $0x50] sm:$0xff]
      %v426 = vld [vmem:[%s393 + $0x58] sm:$0xff]
      %v427 = vld [vmem:[%s393 + $0x60] sm:$0xff]
      %v428 = vld [vmem:[%s393 + $0x68] sm:$0xff]
      %v429 = vld [vmem:[%s393 + $0x70] sm:$0xff]
      %v430 = vld [vmem:[%s393 + $0x78] sm:$0xff]
      %v431 = vld [vmem:[%s393 + $0x80] sm:$0xff]
      %v432 = vld [vmem:[%s393 + $0x88] sm:$0xff]
      %v433 = vld [vmem:[%s393 + $0x90] sm:$0xff]
      %v434 = vld [vmem:[%s393 + $0x98] sm:$0xff]
      %v435 = vld [vmem:[%s393 + $0xa0] sm:$0xff]
      %v436 = vld [vmem:[%s393 + $0xa8] sm:$0xff]
      %v437 = vld [vmem:[%s393 + $0xb0] sm:$0xff]
      %v438 = vld [vmem:[%s393 + $0xb8] sm:$0xff]
      %v439 = vld [vmem:[%s393 + $0xc0] sm:$0xff]
      %v440 = vld [vmem:[%s393 + $0xc8] sm:$0xff]
      %v441 = vld [vmem:[%s393 + $0xd0] sm:$0xff]
      %v442 = vld [vmem:[%s393 + $0xd8] sm:$0xff]
      %v443 = vld [vmem:[%s393 + $0xe0] sm:$0xff]
      %v444 = vld [vmem:[%s393 + $0xe8] sm:$0xff]
      %v445 = vld [vmem:[%s393 + $0xf0] sm:$0xff]
      %v446 = vld [vmem:[%s393 + $0xf8] sm:$0xff]
      %v447 = vld [vmem:[%s4] sm:$0xff]
      %v448 = vld [vmem:[%s4 + $0x8] sm:$0xff]
      %v449 = vld [vmem:[%s4 + $0x10] sm:$0xff]
      %v450 = vld [vmem:[%s4 + $0x18] sm:$0xff]
      %vm451 = vcmask 261120
      %v453 = vsel %vm451, %v415, 0
      %v456 = vsel %vm451, %v416, 0
      %v459 = vsel %vm451, %v417, 0
      %v462 = vsel %vm451, %v418, 0
      %v465 = vsel %vm451, %v419, 0
      %v468 = vsel %vm451, %v420, 0
      %v471 = vsel %vm451, %v421, 0
      %v474 = vsel %vm451, %v422, 0
      %v477 = vsel %vm451, %v423, 0
      %v480 = vsel %vm451, %v424, 0
      %v483 = vsel %vm451, %v425, 0
      %v486 = vsel %vm451, %v426, 0
      %v489 = vsel %vm451, %v427, 0
      %v492 = vsel %vm451, %v428, 0
      %v495 = vsel %vm451, %v429, 0
      %v498 = vsel %vm451, %v430, 0
      %v501 = vsel %vm451, %v431, 0
      %v504 = vsel %vm451, %v432, 0
      %v507 = vsel %vm451, %v433, 0
      %v510 = vsel %vm451, %v434, 0
      %v513 = vsel %vm451, %v435, 0
      %v516 = vsel %vm451, %v436, 0
      %v519 = vsel %vm451, %v437, 0
      %v522 = vsel %vm451, %v438, 0
      %v525 = vsel %vm451, %v439, 0
      %v528 = vsel %vm451, %v440, 0
      %v531 = vsel %vm451, %v441, 0
      %v534 = vsel %vm451, %v442, 0
      %v537 = vsel %vm451, %v443, 0
      %v540 = vsel %vm451, %v444, 0
      %v543 = vsel %vm451, %v445, 0
      %v546 = vsel %vm451, %v446, 0
      %548 = vmatpush.msra.mxu0 0.0
      %549 = vmatpush.msra.mxu0 0.0
      %550 = vmatpush.msra.mxu0 0.0
      %551 = vmatpush.msra.mxu0 0.0
      %552 = vmatpush.msra.mxu0 0.0
      %553 = vmatpush.msra.mxu0 0.0
      %554 = vmatpush.msra.mxu0 0.0
      %555 = vmatpush.msra.mxu0 0.0
      %556 = vmatpush.msra.mxu0 0.0
      %557 = vmatpush.msra.mxu0 0.0
      %558 = vmatpush.msra.mxu0 0.0
      %559 = vmatpush.msra.mxu0 0.0
      %560 = vmatpush.msra.mxu0 %v450
      %561 = vmatpush.msra.mxu0 %v449
      %562 = vmatpush.msra.mxu0 %v448
      %563 = vmatpush.msra.mxu0 %v447
      %564 = vmatmul.f32.gmra.mxu0 %v453
      %v565 = vpop.f32.mrf.mxu0
      %v566 = vadd.f32 0.0, %v565
      %567 = vmatmul.f32.gmra.mxu0 %v456
      %v568 = vpop.f32.mrf.mxu0
      %v569 = vadd.f32 0.0, %v568
      %570 = vmatmul.f32.gmra.mxu0 %v459
      %v571 = vpop.f32.mrf.mxu0
      %v572 = vadd.f32 0.0, %v571
      %573 = vmatmul.f32.gmra.mxu0 %v462
      %v574 = vpop.f32.mrf.mxu0
      %v575 = vadd.f32 0.0, %v574
      %576 = vmatmul.f32.gmra.mxu0 %v465
      %v577 = vpop.f32.mrf.mxu0
      %v578 = vadd.f32 0.0, %v577
      %579 = vmatmul.f32.gmra.mxu0 %v468
      %v580 = vpop.f32.mrf.mxu0
      %v581 = vadd.f32 0.0, %v580
      %582 = vmatmul.f32.gmra.mxu0 %v471
      %v583 = vpop.f32.mrf.mxu0
      %v584 = vadd.f32 0.0, %v583
      %585 = vmatmul.f32.gmra.mxu0 %v474
      %v586 = vpop.f32.mrf.mxu0
      %v587 = vadd.f32 0.0, %v586
      %588 = vmatmul.f32.gmra.mxu0 %v477
      %v589 = vpop.f32.mrf.mxu0
      %v590 = vadd.f32 0.0, %v589
      %591 = vmatmul.f32.gmra.mxu0 %v480
      %v592 = vpop.f32.mrf.mxu0
      %v593 = vadd.f32 0.0, %v592
      %594 = vmatmul.f32.gmra.mxu0 %v483
      %v595 = vpop.f32.mrf.mxu0
      %v596 = vadd.f32 0.0, %v595
      %597 = vmatmul.f32.gmra.mxu0 %v486
      %v598 = vpop.f32.mrf.mxu0
      %v599 = vadd.f32 0.0, %v598
      %600 = vmatmul.f32.gmra.mxu0 %v489
      %v601 = vpop.f32.mrf.mxu0
      %v602 = vadd.f32 0.0, %v601
      %603 = vmatmul.f32.gmra.mxu0 %v492
      %v604 = vpop.f32.mrf.mxu0
      %v605 = vadd.f32 0.0, %v604
      %606 = vmatmul.f32.gmra.mxu0 %v495
      %v607 = vpop.f32.mrf.mxu0
      %v608 = vadd.f32 0.0, %v607
      %609 = vmatmul.f32.gmra.mxu0 %v498
      %v610 = vpop.f32.mrf.mxu0
      %v611 = vadd.f32 0.0, %v610
      %612 = vmatmul.f32.gmra.mxu0 %v501
      %v613 = vpop.f32.mrf.mxu0
      %v614 = vadd.f32 0.0, %v613
      %615 = vmatmul.f32.gmra.mxu0 %v504
      %v616 = vpop.f32.mrf.mxu0
      %v617 = vadd.f32 0.0, %v616
      %618 = vmatmul.f32.gmra.mxu0 %v507
      %v619 = vpop.f32.mrf.mxu0
      %v620 = vadd.f32 0.0, %v619
      %621 = vmatmul.f32.gmra.mxu0 %v510
      %v622 = vpop.f32.mrf.mxu0
      %v623 = vadd.f32 0.0, %v622
      %624 = vmatmul.f32.gmra.mxu0 %v513
      %v625 = vpop.f32.mrf.mxu0
      %v626 = vadd.f32 0.0, %v625
      %627 = vmatmul.f32.gmra.mxu0 %v516
      %v628 = vpop.f32.mrf.mxu0
      %v629 = vadd.f32 0.0, %v628
      %630 = vmatmul.f32.gmra.mxu0 %v519
      %v631 = vpop.f32.mrf.mxu0
      %v632 = vadd.f32 0.0, %v631
      %633 = vmatmul.f32.gmra.mxu0 %v522
      %v634 = vpop.f32.mrf.mxu0
      %v635 = vadd.f32 0.0, %v634
      %636 = vmatmul.f32.gmra.mxu0 %v525
      %v637 = vpop.f32.mrf.mxu0
      %v638 = vadd.f32 0.0, %v637
      %639 = vmatmul.f32.gmra.mxu0 %v528
      %v640 = vpop.f32.mrf.mxu0
      %v641 = vadd.f32 0.0, %v640
      %642 = vmatmul.f32.gmra.mxu0 %v531
      %v643 = vpop.f32.mrf.mxu0
      %v644 = vadd.f32 0.0, %v643
      %645 = vmatmul.f32.gmra.mxu0 %v534
      %v646 = vpop.f32.mrf.mxu0
      %v647 = vadd.f32 0.0, %v646
      %648 = vmatmul.f32.gmra.mxu0 %v537
      %v649 = vpop.f32.mrf.mxu0
      %v650 = vadd.f32 0.0, %v649
      %651 = vmatmul.f32.gmra.mxu0 %v540
      %v652 = vpop.f32.mrf.mxu0
      %v653 = vadd.f32 0.0, %v652
      %654 = vmatmul.f32.gmra.mxu0 %v543
      %v655 = vpop.f32.mrf.mxu0
      %v656 = vadd.f32 0.0, %v655
      %657 = vmatmul.f32.gmra.mxu0 %v546
      %v658 = vpop.f32.mrf.mxu0
      %v659 = vadd.f32 0.0, %v658
      %660 = vdwg.mxu0
      %v661 = vld [vmem:[%s377] sm:$0xff]
      %v662 = vld [vmem:[%s377 + $0x8] sm:$0xff]
      %v665 = vrot.slane %v661, 1
      %v666 = vrot.slane %v661, 2
      %v667 = vrot.slane %v661, 3
      %v668 = vrot.slane %v661, 4
      %v669 = vrot.slane %v661, 5
      %v670 = vrot.slane %v661, 6
      %v671 = vrot.slane %v661, 7
      %v672 = vrot.slane %v662, 1
      %v673 = vrot.slane %v662, 2
      %v674 = vrot.slane %v662, 3
      %v675 = vrot.slane %v662, 4
      %v676 = vrot.slane %v662, 5
      %v677 = vrot.slane %v662, 6
      %v678 = vrot.slane %v662, 7
      %v679 = vperm.slane %v661, 0
      %v680 = vperm.slane %v665, 0
      %v681 = vperm.slane %v666, 0
      %v682 = vperm.slane %v667, 0
      %v683 = vperm.slane %v668, 0
      %v684 = vperm.slane %v669, 0
      %v685 = vperm.slane %v670, 0
      %v686 = vperm.slane %v671, 0
      %v687 = vperm.slane %v662, 0
      %v688 = vperm.slane %v672, 0
      %v689 = vperm.slane %v673, 0
      %v690 = vperm.slane %v674, 0
      %v691 = vperm.slane %v675, 0
      %v692 = vperm.slane %v676, 0
      %v693 = vperm.slane %v677, 0
      %v694 = vperm.slane %v678, 0
      %v711 = vadd.f32 %v566, %v679
      %v712 = vadd.f32 %v569, %v679
      %v713 = vadd.f32 %v572, %v680
      %v714 = vadd.f32 %v575, %v680
      %v715 = vadd.f32 %v578, %v681
      %v716 = vadd.f32 %v581, %v681
      %v717 = vadd.f32 %v584, %v682
      %v718 = vadd.f32 %v587, %v682
      %v719 = vadd.f32 %v590, %v683
      %v720 = vadd.f32 %v593, %v683
      %v721 = vadd.f32 %v596, %v684
      %v722 = vadd.f32 %v599, %v684
      %v723 = vadd.f32 %v602, %v685
      %v724 = vadd.f32 %v605, %v685
      %v725 = vadd.f32 %v608, %v686
      %v726 = vadd.f32 %v611, %v686
      %v727 = vadd.f32 %v614, %v687
      %v728 = vadd.f32 %v617, %v687
      %v729 = vadd.f32 %v620, %v688
      %v730 = vadd.f32 %v623, %v688
      %v731 = vadd.f32 %v626, %v689
      %v732 = vadd.f32 %v629, %v689
      %v733 = vadd.f32 %v632, %v690
      %v734 = vadd.f32 %v635, %v690
      %v735 = vadd.f32 %v638, %v691
      %v736 = vadd.f32 %v641, %v691
      %v737 = vadd.f32 %v644, %v692
      %v738 = vadd.f32 %v647, %v692
      %v739 = vadd.f32 %v650, %v693
      %v740 = vadd.f32 %v653, %v693
      %v741 = vadd.f32 %v656, %v694
      %v742 = vadd.f32 %v659, %v694
      %v743 = vld [vmem:[%s383] sm:$0xff]
      %v744 = vld [vmem:[%s383 + $0x8] sm:$0xff]
      %v745 = vadd.f32 %v711, %v743
      %v746 = vadd.f32 %v712, %v744
      %v747 = vadd.f32 %v713, %v743
      %v748 = vadd.f32 %v714, %v744
      %v749 = vadd.f32 %v715, %v743
      %v750 = vadd.f32 %v716, %v744
      %v751 = vadd.f32 %v717, %v743
      %v752 = vadd.f32 %v718, %v744
      %v753 = vadd.f32 %v719, %v743
      %v754 = vadd.f32 %v720, %v744
      %v755 = vadd.f32 %v721, %v743
      %v756 = vadd.f32 %v722, %v744
      %v757 = vadd.f32 %v723, %v743
      %v758 = vadd.f32 %v724, %v744
      %v759 = vadd.f32 %v725, %v743
      %v760 = vadd.f32 %v726, %v744
      %v761 = vadd.f32 %v727, %v743
      %v762 = vadd.f32 %v728, %v744
      %v763 = vadd.f32 %v729, %v743
      %v764 = vadd.f32 %v730, %v744
      %v765 = vadd.f32 %v731, %v743
      %v766 = vadd.f32 %v732, %v744
      %v767 = vadd.f32 %v733, %v743
      %v768 = vadd.f32 %v734, %v744
      %v769 = vadd.f32 %v735, %v743
      %v770 = vadd.f32 %v736, %v744
      %v771 = vadd.f32 %v737, %v743
      %v772 = vadd.f32 %v738, %v744
      %v773 = vadd.f32 %v739, %v743
      %v774 = vadd.f32 %v740, %v744
      %v775 = vadd.f32 %v741, %v743
      %v776 = vadd.f32 %v742, %v744
      %v777 = vmul.f32 %v745, 0.5
      %v778 = vmul.f32 %v746, 0.5
      %v779 = vmul.f32 %v747, 0.5
      %v780 = vmul.f32 %v748, 0.5
      %v781 = vmul.f32 %v749, 0.5
      %v782 = vmul.f32 %v750, 0.5
      %v783 = vmul.f32 %v751, 0.5
      %v784 = vmul.f32 %v752, 0.5
      %v785 = vmul.f32 %v753, 0.5
      %v786 = vmul.f32 %v754, 0.5
      %v787 = vmul.f32 %v755, 0.5
      %v788 = vmul.f32 %v756, 0.5
      %v789 = vmul.f32 %v757, 0.5
      %v790 = vmul.f32 %v758, 0.5
      %v791 = vmul.f32 %v759, 0.5
      %v792 = vmul.f32 %v760, 0.5
      %v793 = vmul.f32 %v761, 0.5
      %v794 = vmul.f32 %v762, 0.5
      %v795 = vmul.f32 %v763, 0.5
      %v796 = vmul.f32 %v764, 0.5
      %v797 = vmul.f32 %v765, 0.5
      %v798 = vmul.f32 %v766, 0.5
      %v799 = vmul.f32 %v767, 0.5
      %v800 = vmul.f32 %v768, 0.5
      %v801 = vmul.f32 %v769, 0.5
      %v802 = vmul.f32 %v770, 0.5
      %v803 = vmul.f32 %v771, 0.5
      %v804 = vmul.f32 %v772, 0.5
      %v805 = vmul.f32 %v773, 0.5
      %v806 = vmul.f32 %v774, 0.5
      %v807 = vmul.f32 %v775, 0.5
      %v808 = vmul.f32 %v776, 0.5
      %v809 = vmul.f32 %v745, 0.044715
      %v810 = vmul.f32 %v746, 0.044715
      %v811 = vmul.f32 %v747, 0.044715
      %v812 = vmul.f32 %v748, 0.044715
      %v813 = vmul.f32 %v749, 0.044715
      %v814 = vmul.f32 %v750, 0.044715
      %v815 = vmul.f32 %v751, 0.044715
      %v816 = vmul.f32 %v752, 0.044715
      %v817 = vmul.f32 %v753, 0.044715
      %v818 = vmul.f32 %v754, 0.044715
      %v819 = vmul.f32 %v755, 0.044715
      %v820 = vmul.f32 %v756, 0.044715
      %v821 = vmul.f32 %v757, 0.044715
      %v822 = vmul.f32 %v758, 0.044715
      %v823 = vmul.f32 %v759, 0.044715
      %v824 = vmul.f32 %v760, 0.044715
      %v825 = vmul.f32 %v761, 0.044715
      %v826 = vmul.f32 %v762, 0.044715
      %v827 = vmul.f32 %v763, 0.044715
      %v828 = vmul.f32 %v764, 0.044715
      %v829 = vmul.f32 %v765, 0.044715
      %v830 = vmul.f32 %v766, 0.044715
      %v831 = vmul.f32 %v767, 0.044715
      %v832 = vmul.f32 %v768, 0.044715
      %v833 = vmul.f32 %v769, 0.044715
      %v834 = vmul.f32 %v770, 0.044715
      %v835 = vmul.f32 %v771, 0.044715
      %v836 = vmul.f32 %v772, 0.044715
      %v837 = vmul.f32 %v773, 0.044715
      %v838 = vmul.f32 %v774, 0.044715
      %v839 = vmul.f32 %v775, 0.044715
      %v840 = vmul.f32 %v776, 0.044715
      %v841 = vmul.f32 %v809, %v745
      %v842 = vmul.f32 %v810, %v746
      %v843 = vmul.f32 %v811, %v747
      %v844 = vmul.f32 %v812, %v748
      %v845 = vmul.f32 %v813, %v749
      %v846 = vmul.f32 %v814, %v750
      %v847 = vmul.f32 %v815, %v751
      %v848 = vmul.f32 %v816, %v752
      %v849 = vmul.f32 %v817, %v753
      %v850 = vmul.f32 %v818, %v754
      %v851 = vmul.f32 %v819, %v755
      %v852 = vmul.f32 %v820, %v756
      %v853 = vmul.f32 %v821, %v757
      %v854 = vmul.f32 %v822, %v758
      %v855 = vmul.f32 %v823, %v759
      %v856 = vmul.f32 %v824, %v760
      %v857 = vmul.f32 %v825, %v761
      %v858 = vmul.f32 %v826, %v762
      %v859 = vmul.f32 %v827, %v763
      %v860 = vmul.f32 %v828, %v764
      %v861 = vmul.f32 %v829, %v765
      %v862 = vmul.f32 %v830, %v766
      %v863 = vmul.f32 %v831, %v767
      %v864 = vmul.f32 %v832, %v768
      %v865 = vmul.f32 %v833, %v769
      %v866 = vmul.f32 %v834, %v770
      %v867 = vmul.f32 %v835, %v771
      %v868 = vmul.f32 %v836, %v772
      %v869 = vmul.f32 %v837, %v773
      %v870 = vmul.f32 %v838, %v774
      %v871 = vmul.f32 %v839, %v775
      %v872 = vmul.f32 %v840, %v776
      %v873 = vmul.f32 %v841, %v745
      %v874 = vmul.f32 %v842, %v746
      %v875 = vmul.f32 %v843, %v747
      %v876 = vmul.f32 %v844, %v748
      %v877 = vmul.f32 %v845, %v749
      %v878 = vmul.f32 %v846, %v750
      %v879 = vmul.f32 %v847, %v751
      %v880 = vmul.f32 %v848, %v752
      %v881 = vmul.f32 %v849, %v753
      %v882 = vmul.f32 %v850, %v754
      %v883 = vmul.f32 %v851, %v755
      %v884 = vmul.f32 %v852, %v756
      %v885 = vmul.f32 %v853, %v757
      %v886 = vmul.f32 %v854, %v758
      %v887 = vmul.f32 %v855, %v759
      %v888 = vmul.f32 %v856, %v760
      %v889 = vmul.f32 %v857, %v761
      %v890 = vmul.f32 %v858, %v762
      %v891 = vmul.f32 %v859, %v763
      %v892 = vmul.f32 %v860, %v764
      %v893 = vmul.f32 %v861, %v765
      %v894 = vmul.f32 %v862, %v766
      %v895 = vmul.f32 %v863, %v767
      %v896 = vmul.f32 %v864, %v768
      %v897 = vmul.f32 %v865, %v769
      %v898 = vmul.f32 %v866, %v770
      %v899 = vmul.f32 %v867, %v771
      %v900 = vmul.f32 %v868, %v772
      %v901 = vmul.f32 %v869, %v773
      %v902 = vmul.f32 %v870, %v774
      %v903 = vmul.f32 %v871, %v775
      %v904 = vmul.f32 %v872, %v776
      %v905 = vadd.f32 %v745, %v873
      %v906 = vadd.f32 %v746, %v874
      %v907 = vadd.f32 %v747, %v875
      %v908 = vadd.f32 %v748, %v876
      %v909 = vadd.f32 %v749, %v877
      %v910 = vadd.f32 %v750, %v878
      %v911 = vadd.f32 %v751, %v879
      %v912 = vadd.f32 %v752, %v880
      %v913 = vadd.f32 %v753, %v881
      %v914 = vadd.f32 %v754, %v882
      %v915 = vadd.f32 %v755, %v883
      %v916 = vadd.f32 %v756, %v884
      %v917 = vadd.f32 %v757, %v885
      %v918 = vadd.f32 %v758, %v886
      %v919 = vadd.f32 %v759, %v887
      %v920 = vadd.f32 %v760, %v888
      %v921 = vadd.f32 %v761, %v889
      %v922 = vadd.f32 %v762, %v890
      %v923 = vadd.f32 %v763, %v891
      %v924 = vadd.f32 %v764, %v892
      %v925 = vadd.f32 %v765, %v893
      %v926 = vadd.f32 %v766, %v894
      %v927 = vadd.f32 %v767, %v895
      %v928 = vadd.f32 %v768, %v896
      %v929 = vadd.f32 %v769, %v897
      %v930 = vadd.f32 %v770, %v898
      %v931 = vadd.f32 %v771, %v899
      %v932 = vadd.f32 %v772, %v900
      %v933 = vadd.f32 %v773, %v901
      %v934 = vadd.f32 %v774, %v902
      %v935 = vadd.f32 %v775, %v903
      %v936 = vadd.f32 %v776, %v904
      %v937 = vmul.f32 %v905, 0.7978846
      %v938 = vmul.f32 %v906, 0.7978846
      %v939 = vmul.f32 %v907, 0.7978846
      %v940 = vmul.f32 %v908, 0.7978846
      %v941 = vmul.f32 %v909, 0.7978846
      %v942 = vmul.f32 %v910, 0.7978846
      %v943 = vmul.f32 %v911, 0.7978846
      %v944 = vmul.f32 %v912, 0.7978846
      %v945 = vmul.f32 %v913, 0.7978846
      %v946 = vmul.f32 %v914, 0.7978846
      %v947 = vmul.f32 %v915, 0.7978846
      %v948 = vmul.f32 %v916, 0.7978846
      %v949 = vmul.f32 %v917, 0.7978846
      %v950 = vmul.f32 %v918, 0.7978846
      %v951 = vmul.f32 %v919, 0.7978846
      %v952 = vmul.f32 %v920, 0.7978846
      %v953 = vmul.f32 %v921, 0.7978846
      %v954 = vmul.f32 %v922, 0.7978846
      %v955 = vmul.f32 %v923, 0.7978846
      %v956 = vmul.f32 %v924, 0.7978846
      %v957 = vmul.f32 %v925, 0.7978846
      %v958 = vmul.f32 %v926, 0.7978846
      %v959 = vmul.f32 %v927, 0.7978846
      %v960 = vmul.f32 %v928, 0.7978846
      %v961 = vmul.f32 %v929, 0.7978846
      %v962 = vmul.f32 %v930, 0.7978846
      %v963 = vmul.f32 %v931, 0.7978846
      %v964 = vmul.f32 %v932, 0.7978846
      %v965 = vmul.f32 %v933, 0.7978846
      %v966 = vmul.f32 %v934, 0.7978846
      %v967 = vmul.f32 %v935, 0.7978846
      %v968 = vmul.f32 %v936, 0.7978846
      %v969 = vtanh.pop %v937
      %v970 = vtanh.pop %v938
      %v971 = vtanh.pop %v939
      %v972 = vtanh.pop %v940
      %v973 = vtanh.pop %v941
      %v974 = vtanh.pop %v942
      %v975 = vtanh.pop %v943
      %v976 = vtanh.pop %v944
      %v977 = vtanh.pop %v945
      %v978 = vtanh.pop %v946
      %v979 = vtanh.pop %v947
      %v980 = vtanh.pop %v948
      %v981 = vtanh.pop %v949
      %v982 = vtanh.pop %v950
      %v983 = vtanh.pop %v951
      %v984 = vtanh.pop %v952
      %v985 = vtanh.pop %v953
      %v986 = vtanh.pop %v954
      %v987 = vtanh.pop %v955
      %v988 = vtanh.pop %v956
      %v989 = vtanh.pop %v957
      %v990 = vtanh.pop %v958
      %v991 = vtanh.pop %v959
      %v992 = vtanh.pop %v960
      %v993 = vtanh.pop %v961
      %v994 = vtanh.pop %v962
      %v995 = vtanh.pop %v963
      %v996 = vtanh.pop %v964
      %v997 = vtanh.pop %v965
      %v998 = vtanh.pop %v966
      %v999 = vtanh.pop %v967
      %v1000 = vtanh.pop %v968
      %v1001 = vadd.f32 %v969, 1.0
      %v1002 = vadd.f32 %v970, 1.0
      %v1003 = vadd.f32 %v971, 1.0
      %v1004 = vadd.f32 %v972, 1.0
      %v1005 = vadd.f32 %v973, 1.0
      %v1006 = vadd.f32 %v974, 1.0
      %v1007 = vadd.f32 %v975, 1.0
      %v1008 = vadd.f32 %v976, 1.0
      %v1009 = vadd.f32 %v977, 1.0
      %v1010 = vadd.f32 %v978, 1.0
      %v1011 = vadd.f32 %v979, 1.0
      %v1012 = vadd.f32 %v980, 1.0
      %v1013 = vadd.f32 %v981, 1.0
      %v1014 = vadd.f32 %v982, 1.0
      %v1015 = vadd.f32 %v983, 1.0
      %v1016 = vadd.f32 %v984, 1.0
      %v1017 = vadd.f32 %v985, 1.0
      %v1018 = vadd.f32 %v986, 1.0
      %v1019 = vadd.f32 %v987, 1.0
      %v1020 = vadd.f32 %v988, 1.0
      %v1021 = vadd.f32 %v989, 1.0
      %v1022 = vadd.f32 %v990, 1.0
      %v1023 = vadd.f32 %v991, 1.0
      %v1024 = vadd.f32 %v992, 1.0
      %v1025 = vadd.f32 %v993, 1.0
      %v1026 = vadd.f32 %v994, 1.0
      %v1027 = vadd.f32 %v995, 1.0
      %v1028 = vadd.f32 %v996, 1.0
      %v1029 = vadd.f32 %v997, 1.0
      %v1030 = vadd.f32 %v998, 1.0
      %v1031 = vadd.f32 %v999, 1.0
      %v1032 = vadd.f32 %v1000, 1.0
      %v1033 = vmul.f32 %v777, %v1001
      %v1034 = vmul.f32 %v778, %v1002
      %v1035 = vmul.f32 %v779, %v1003
      %v1036 = vmul.f32 %v780, %v1004
      %v1037 = vmul.f32 %v781, %v1005
      %v1038 = vmul.f32 %v782, %v1006
      %v1039 = vmul.f32 %v783, %v1007
      %v1040 = vmul.f32 %v784, %v1008
      %v1041 = vmul.f32 %v785, %v1009
      %v1042 = vmul.f32 %v786, %v1010
      %v1043 = vmul.f32 %v787, %v1011
      %v1044 = vmul.f32 %v788, %v1012
      %v1045 = vmul.f32 %v789, %v1013
      %v1046 = vmul.f32 %v790, %v1014
      %v1047 = vmul.f32 %v791, %v1015
      %v1048 = vmul.f32 %v792, %v1016
      %v1049 = vmul.f32 %v793, %v1017
      %v1050 = vmul.f32 %v794, %v1018
      %v1051 = vmul.f32 %v795, %v1019
      %v1052 = vmul.f32 %v796, %v1020
      %v1053 = vmul.f32 %v797, %v1021
      %v1054 = vmul.f32 %v798, %v1022
      %v1055 = vmul.f32 %v799, %v1023
      %v1056 = vmul.f32 %v800, %v1024
      %v1057 = vmul.f32 %v801, %v1025
      %v1058 = vmul.f32 %v802, %v1026
      %v1059 = vmul.f32 %v803, %v1027
      %v1060 = vmul.f32 %v804, %v1028
      %v1061 = vmul.f32 %v805, %v1029
      %v1062 = vmul.f32 %v806, %v1030
      %v1063 = vmul.f32 %v807, %v1031
      %v1064 = vmul.f32 %v808, %v1032
      %v1065 = vld [vmem:[%s5] sm:$0x1]
      %v1067 = vperm.slane %v1065, 0
      %v1069 = vmul.f32 %v1033, %v1067
      %v1070 = vmul.f32 %v1034, %v1067
      %v1071 = vmul.f32 %v1035, %v1067
      %v1072 = vmul.f32 %v1036, %v1067
      %v1073 = vmul.f32 %v1037, %v1067
      %v1074 = vmul.f32 %v1038, %v1067
      %v1075 = vmul.f32 %v1039, %v1067
      %v1076 = vmul.f32 %v1040, %v1067
      %v1077 = vmul.f32 %v1041, %v1067
      %v1078 = vmul.f32 %v1042, %v1067
      %v1079 = vmul.f32 %v1043, %v1067
      %v1080 = vmul.f32 %v1044, %v1067
      %v1081 = vmul.f32 %v1045, %v1067
      %v1082 = vmul.f32 %v1046, %v1067
      %v1083 = vmul.f32 %v1047, %v1067
      %v1084 = vmul.f32 %v1048, %v1067
      %v1085 = vmul.f32 %v1049, %v1067
      %v1086 = vmul.f32 %v1050, %v1067
      %v1087 = vmul.f32 %v1051, %v1067
      %v1088 = vmul.f32 %v1052, %v1067
      %v1089 = vmul.f32 %v1053, %v1067
      %v1090 = vmul.f32 %v1054, %v1067
      %v1091 = vmul.f32 %v1055, %v1067
      %v1092 = vmul.f32 %v1056, %v1067
      %v1093 = vmul.f32 %v1057, %v1067
      %v1094 = vmul.f32 %v1058, %v1067
      %v1095 = vmul.f32 %v1059, %v1067
      %v1096 = vmul.f32 %v1060, %v1067
      %v1097 = vmul.f32 %v1061, %v1067
      %v1098 = vmul.f32 %v1062, %v1067
      %v1099 = vmul.f32 %v1063, %v1067
      %v1100 = vmul.f32 %v1064, %v1067
      %v1101 = vsel %vm451, %v1069, 0.0
      %1102 = vadd.xlane.f32.xlu0 %v1101
      %v1103 = vpop.xlane.xlu0 %1102
      %v1104 = vsel %vm451, %v1070, 0.0
      %1105 = vadd.xlane.f32.xlu0 %v1104
      %v1106 = vpop.xlane.xlu0 %1105
      %v1107 = vsel %vm451, %v1071, 0.0
      %1108 = vadd.xlane.f32.xlu0 %v1107
      %v1109 = vpop.xlane.xlu0 %1108
      %v1110 = vsel %vm451, %v1072, 0.0
      %1111 = vadd.xlane.f32.xlu0 %v1110
      %v1112 = vpop.xlane.xlu0 %1111
      %v1113 = vsel %vm451, %v1073, 0.0
      %1114 = vadd.xlane.f32.xlu0 %v1113
      %v1115 = vpop.xlane.xlu0 %1114
      %v1116 = vsel %vm451, %v1074, 0.0
      %1117 = vadd.xlane.f32.xlu0 %v1116
      %v1118 = vpop.xlane.xlu0 %1117
      %v1119 = vsel %vm451, %v1075, 0.0
      %1120 = vadd.xlane.f32.xlu0 %v1119
      %v1121 = vpop.xlane.xlu0 %1120
      %v1122 = vsel %vm451, %v1076, 0.0
      %1123 = vadd.xlane.f32.xlu0 %v1122
      %v1124 = vpop.xlane.xlu0 %1123
      %v1125 = vsel %vm451, %v1077, 0.0
      %1126 = vadd.xlane.f32.xlu0 %v1125
      %v1127 = vpop.xlane.xlu0 %1126
      %v1128 = vsel %vm451, %v1078, 0.0
      %1129 = vadd.xlane.f32.xlu0 %v1128
      %v1130 = vpop.xlane.xlu0 %1129
      %v1131 = vsel %vm451, %v1079, 0.0
      %1132 = vadd.xlane.f32.xlu0 %v1131
      %v1133 = vpop.xlane.xlu0 %1132
      %v1134 = vsel %vm451, %v1080, 0.0
      %1135 = vadd.xlane.f32.xlu0 %v1134
      %v1136 = vpop.xlane.xlu0 %1135
      %v1137 = vsel %vm451, %v1081, 0.0
      %1138 = vadd.xlane.f32.xlu0 %v1137
      %v1139 = vpop.xlane.xlu0 %1138
      %v1140 = vsel %vm451, %v1082, 0.0
      %1141 = vadd.xlane.f32.xlu0 %v1140
      %v1142 = vpop.xlane.xlu0 %1141
      %v1143 = vsel %vm451, %v1083, 0.0
      %1144 = vadd.xlane.f32.xlu0 %v1143
      %v1145 = vpop.xlane.xlu0 %1144
      %v1146 = vsel %vm451, %v1084, 0.0
      %1147 = vadd.xlane.f32.xlu0 %v1146
      %v1148 = vpop.xlane.xlu0 %1147
      %v1149 = vsel %vm451, %v1085, 0.0
      %1150 = vadd.xlane.f32.xlu0 %v1149
      %v1151 = vpop.xlane.xlu0 %1150
      %v1152 = vsel %vm451, %v1086, 0.0
      %1153 = vadd.xlane.f32.xlu0 %v1152
      %v1154 = vpop.xlane.xlu0 %1153
      %v1155 = vsel %vm451, %v1087, 0.0
      %1156 = vadd.xlane.f32.xlu0 %v1155
      %v1157 = vpop.xlane.xlu0 %1156
      %v1158 = vsel %vm451, %v1088, 0.0
      %1159 = vadd.xlane.f32.xlu0 %v1158
      %v1160 = vpop.xlane.xlu0 %1159
      %v1161 = vsel %vm451, %v1089, 0.0
      %1162 = vadd.xlane.f32.xlu0 %v1161
      %v1163 = vpop.xlane.xlu0 %1162
      %v1164 = vsel %vm451, %v1090, 0.0
      %1165 = vadd.xlane.f32.xlu0 %v1164
      %v1166 = vpop.xlane.xlu0 %1165
      %v1167 = vsel %vm451, %v1091, 0.0
      %1168 = vadd.xlane.f32.xlu0 %v1167
      %v1169 = vpop.xlane.xlu0 %1168
      %v1170 = vsel %vm451, %v1092, 0.0
      %1171 = vadd.xlane.f32.xlu0 %v1170
      %v1172 = vpop.xlane.xlu0 %1171
      %v1173 = vsel %vm451, %v1093, 0.0
      %1174 = vadd.xlane.f32.xlu0 %v1173
      %v1175 = vpop.xlane.xlu0 %1174
      %v1176 = vsel %vm451, %v1094, 0.0
      %1177 = vadd.xlane.f32.xlu0 %v1176
      %v1178 = vpop.xlane.xlu0 %1177
      %v1179 = vsel %vm451, %v1095, 0.0
      %1180 = vadd.xlane.f32.xlu0 %v1179
      %v1181 = vpop.xlane.xlu0 %1180
      %v1182 = vsel %vm451, %v1096, 0.0
      %1183 = vadd.xlane.f32.xlu0 %v1182
      %v1184 = vpop.xlane.xlu0 %1183
      %v1185 = vsel %vm451, %v1097, 0.0
      %1186 = vadd.xlane.f32.xlu0 %v1185
      %v1187 = vpop.xlane.xlu0 %1186
      %v1188 = vsel %vm451, %v1098, 0.0
      %1189 = vadd.xlane.f32.xlu0 %v1188
      %v1190 = vpop.xlane.xlu0 %1189
      %v1191 = vsel %vm451, %v1099, 0.0
      %1192 = vadd.xlane.f32.xlu0 %v1191
      %v1193 = vpop.xlane.xlu0 %1192
      %v1194 = vsel %vm451, %v1100, 0.0
      %1195 = vadd.xlane.f32.xlu0 %v1194
      %v1196 = vpop.xlane.xlu0 %1195
      %v1197 = vld [vmem:[#allocation2] sm:$0x1]
      %v1199 = vperm.slane %v1197, 0
      %1200 = vset.pattern.permute.xlu0 0
      %1201 = vperm.xlu0 %1200, %v1199
      %v1202 = vpop.permute.xlu0 %1201
      %v1204 = vadd.f32 %v1103, %v1202
      %v1205 = vadd.f32 %v1106, %v1202
      %v1206 = vadd.f32 %v1109, %v1202
      %v1207 = vadd.f32 %v1112, %v1202
      %v1208 = vadd.f32 %v1115, %v1202
      %v1209 = vadd.f32 %v1118, %v1202
      %v1210 = vadd.f32 %v1121, %v1202
      %v1211 = vadd.f32 %v1124, %v1202
      %v1212 = vadd.f32 %v1127, %v1202
      %v1213 = vadd.f32 %v1130, %v1202
      %v1214 = vadd.f32 %v1133, %v1202
      %v1215 = vadd.f32 %v1136, %v1202
      %v1216 = vadd.f32 %v1139, %v1202
      %v1217 = vadd.f32 %v1142, %v1202
      %v1218 = vadd.f32 %v1145, %v1202
      %v1219 = vadd.f32 %v1148, %v1202
      %v1220 = vadd.f32 %v1151, %v1202
      %v1221 = vadd.f32 %v1154, %v1202
      %v1222 = vadd.f32 %v1157, %v1202
      %v1223 = vadd.f32 %v1160, %v1202
      %v1224 = vadd.f32 %v1163, %v1202
      %v1225 = vadd.f32 %v1166, %v1202
      %v1226 = vadd.f32 %v1169, %v1202
      %v1227 = vadd.f32 %v1172, %v1202
      %v1228 = vadd.f32 %v1175, %v1202
      %v1229 = vadd.f32 %v1178, %v1202
      %v1230 = vadd.f32 %v1181, %v1202
      %v1231 = vadd.f32 %v1184, %v1202
      %v1232 = vadd.f32 %v1187, %v1202
      %v1233 = vadd.f32 %v1190, %v1202
      %v1234 = vadd.f32 %v1193, %v1202
      %v1235 = vadd.f32 %v1196, %v1202
      %v1236 = vld [vmem:[%s403] sm:$0xff]
      %v1237 = vld [vmem:[%s403 + $0x8] sm:$0xff]
      %vm1238 = vcmp.ne.s32.totalorder %v1236, 0
      %vm1239 = vcmp.ne.s32.totalorder %v1237, 0
      %v1272 = vlaneseq
      %v1273 = vand.u32 %v1272, 127
      %v1274 = vperm.slane %v1204, %v1273
      %v1275 = vadd.s32 %v1273, 4294967288
      %v1276 = vperm.slane %v1205, %v1275
      %vm1277 = vcmask 130112
      %v1278 = vsel %vm1277, %v1276, %v1274
      %v1279 = vperm.slane %v1206, %v1273
      %v1280 = vperm.slane %v1207, %v1275
      %v1281 = vsel %vm1277, %v1280, %v1279
      %v1282 = vperm.slane %v1208, %v1273
      %v1283 = vperm.slane %v1209, %v1275
      %v1284 = vsel %vm1277, %v1283, %v1282
      %v1285 = vperm.slane %v1210, %v1273
      %v1286 = vperm.slane %v1211, %v1275
      %v1287 = vsel %vm1277, %v1286, %v1285
      %v1288 = vperm.slane %v1212, %v1273
      %v1289 = vperm.slane %v1213, %v1275
      %v1290 = vsel %vm1277, %v1289, %v1288
      %v1291 = vperm.slane %v1214, %v1273
      %v1292 = vperm.slane %v1215, %v1275
      %v1293 = vsel %vm1277, %v1292, %v1291
      %v1294 = vperm.slane %v1216, %v1273
      %v1295 = vperm.slane %v1217, %v1275
      %v1296 = vsel %vm1277, %v1295, %v1294
      %v1297 = vperm.slane %v1218, %v1273
      %v1298 = vperm.slane %v1219, %v1275
      %v1299 = vsel %vm1277, %v1298, %v1297
      %v1300 = vperm.slane %v1220, %v1273
      %v1301 = vperm.slane %v1221, %v1275
      %v1302 = vsel %vm1277, %v1301, %v1300
      %v1303 = vperm.slane %v1222, %v1273
      %v1304 = vperm.slane %v1223, %v1275
      %v1305 = vsel %vm1277, %v1304, %v1303
      %v1306 = vperm.slane %v1224, %v1273
      %v1307 = vperm.slane %v1225, %v1275
      %v1308 = vsel %vm1277, %v1307, %v1306
      %v1309 = vperm.slane %v1226, %v1273
      %v1310 = vperm.slane %v1227, %v1275
      %v1311 = vsel %vm1277, %v1310, %v1309
      %v1312 = vperm.slane %v1228, %v1273
      %v1313 = vperm.slane %v1229, %v1275
      %v1314 = vsel %vm1277, %v1313, %v1312
      %v1315 = vperm.slane %v1230, %v1273
      %v1316 = vperm.slane %v1231, %v1275
      %v1317 = vsel %vm1277, %v1316, %v1315
      %v1318 = vperm.slane %v1232, %v1273
      %v1319 = vperm.slane %v1233, %v1275
      %v1320 = vsel %vm1277, %v1319, %v1318
      %v1321 = vperm.slane %v1234, %v1273
      %v1322 = vperm.slane %v1235, %v1275
      %v1323 = vsel %vm1277, %v1322, %v1321
      %vm1324 = vcmask 1041409
      %v1325 = vsel %vm1324, %v1281, %v1278
      %vm1326 = vcmask 1042434
      %v1327 = vsel %vm1326, %v1284, %v1325
      %vm1328 = vcmask 1043459
      %v1329 = vsel %vm1328, %v1287, %v1327
      %vm1330 = vcmask 1044484
      %v1331 = vsel %vm1330, %v1290, %v1329
      %vm1332 = vcmask 1045509
      %v1333 = vsel %vm1332, %v1293, %v1331
      %vm1334 = vcmask 1046534
      %v1335 = vsel %vm1334, %v1296, %v1333
      %vm1336 = vcmask 1047559
      %v1337 = vsel %vm1336, %v1299, %v1335
      %v1338 = vsel %vm1324, %v1305, %v1302
      %v1339 = vsel %vm1326, %v1308, %v1338
      %v1340 = vsel %vm1328, %v1311, %v1339
      %v1341 = vsel %vm1330, %v1314, %v1340
      %v1342 = vsel %vm1332, %v1317, %v1341
      %v1343 = vsel %vm1334, %v1320, %v1342
      %v1344 = vsel %vm1336, %v1323, %v1343
      %v1347 = vsel %vm1238, %v1337, 0.0
      %v1348 = vsel %vm1239, %v1344, 0.0
      %vm1349 = vcmask 130048
      %v1350 = vsel %vm1349, %v1347, 0.0
      %v1351 = vsel %vm1349, %v1348, 0.0
      %1352 = vst [vmem:[%s413] sm:$0xff] %v1350
      %1353 = vst [vmem:[%s413 + $0x8] sm:$0xff] %v1351
      %s1354 = smul.u32 2, %s25
      %p1355 = scmp.lt.s32.totalorder %s24, 1
      %s1356 = scalar_select %p1355, %s24, 1
      %p1357 = scmp.lt.s32.totalorder %s1354, 1
      %s1358 = scalar_select %p1357, %s1354, 1
      %s1359 = smul.addr %s1356, 2
      %s1360 = sadd.s32 %s1358, %s1359
      %s1361 = smul.addr %s1360, 8
      %s1362 = scalar_lea.vmem %s7, %s1361
      // Predicated region
      $region49: #{node_task_head_forward.3} parent=47 // pred_check
        %p1363 = pneg %p225
      $region50: #{node_task_head_forward.3} parent=47 // pred_check_branch
        %1365 = sbr.rel (%p1363) target = $region52
      $region51: #{node_task_head_forward.3} parent=47 // pred_region
        %s1366 = smul.u32 2, %s25
      $region52: #{node_task_head_forward.3} parent=47 // pred_fallthru
        _
    $region48: #{node_task_head_forward.3} parent=5 // pred_fallthru
      _
    %p1367 = scmp.le.s32.totalorder 2, %s15
    // Predicated region
    $region53: #{node_task_head_forward.3} parent=5 // pred_check
      %p1368 = pneg %p1367
    $region54: #{node_task_head_forward.3} parent=5 // pred_check_branch
      %1370 = sbr.rel (%p1368) target = $region56
    $region55: #{node_task_head_forward.3} parent=5 // pred_region
      %s1371 = ssub.s32 %s15, 2
      // Predicated region
      $region57: #{node_task_head_forward.3} parent=55 // pred_check
        %p1372 = pneg %p231
      $region58: #{node_task_head_forward.3} parent=55 // pred_check_branch
        %1374 = sbr.rel (%p1372) target = $region60
      $region59: #{node_task_head_forward.3} parent=55 // pred_region
        %s1375 = smul.u32 2, %s27
        %p1376 = scmp.lt.s32.totalorder %s26, 1
        %s1377 = scalar_select %p1376, %s26, 1
        %p1378 = scmp.lt.s32.totalorder %s1375, 1
        %s1379 = scalar_select %p1378, %s1375, 1
        %s1380 = smul.addr %s1377, 2
        %s1381 = sadd.s32 %s1379, %s1380
        %s1382 = smul.addr %s1381, 8
        %s1383 = scalar_lea.vmem %s7, %s1382
      $region60: #{node_task_head_forward.3} parent=55 // pred_fallthru
        _
    $region56: #{node_task_head_forward.3} parent=5 // pred_fallthru
      _
  $region6: #{node_task_head_forward.3} parent=0 // loop_footer
    %s19 = sadd.s32 1, %s15
  $region7: #{node_task_head_forward.3} parent=0 // loop_footer_branch
    %14 = sbr.rel target = $region3
  $region8: #{node_task_head_forward.3} parent=0 // loop_exit
    _

// kernel: custom-call.12
$region0: #{custom-call.12}
  %s0 = inlined_call_operand.vmem [shape: f32[2,16,1,3,3], index: 0, kind: input, shape index: {}]
  %s1 = inlined_call_operand.vmem [shape: f32[2,16,1,3,3], index: 1, kind: output, shape index: {}]
  $region1: #{custom-call.12} parent=0
    #allocation0 [shape = 'u8[4096]{0}', space=vmem, size = 0x1000, scoped, tag = 'operand span for operand 0']
    #allocation1 [shape = 'u8[4096]{0}', space=vmem, size = 0x1000, scoped, tag = 'packed  for operand 0']
    #allocation2 [shape = 'u8[4096]{0}', space=vmem, size = 0x1000, scoped, tag = 'operand span for operand 1']
    #allocation3 [shape = 'u8[4096]{0}', space=vmem, size = 0x1000, scoped, tag = 'packed  for operand 1']
    loop: start=0, step=1, limit=34
    $region2: #{custom-call.12} parent=1 // loop_pre_header
      _
    $region3: #{custom-call.12} parent=1 // loop_header
      %s3 = sphi 0, %s7
      %p4 = scmp.ge.s32.totalorder %s3, 34
      %s10 = sphi 0, %s43
      %s11 = sphi 0, %s39
      %s12 = sphi 0, %s35
      %s13 = sphi 0, %s31
      %s14 = sphi 0, %s27
      %s15 = sphi 0, %s10
      %s16 = sphi 0, %s11
      %s17 = sphi 0, %s12
      %s18 = sphi 0, %s13
      %s19 = sphi 0, %s14
      %s20 = sphi 0, %s15
      %s21 = sphi 0, %s16
      %s22 = sphi 0, %s17
      %s23 = sphi 0, %s18
      %s24 = sphi 0, %s19
    $region4: #{custom-call.12} parent=1 // loop_header_branch
      %6 = sbr.rel (%p4) target = $region8
    $region5: #{custom-call.12} parent=1 // loop_body
      %s8 = ssub.s32 %s3, 1
      %s9 = ssub.s32 %s3, 2
      %s25 = sadd.s32 1, %s14
      %p26 = scmp.ge.s32.totalorder %s25, 1
      %s27 = scalar_select %p26, 0, %s25
      %s28 = sadd.s32 1, %s13
      %s29 = scalar_select %p26, %s28, %s13
      %p30 = scmp.ge.s32.totalorder %s29, 1
      %s31 = scalar_select %p30, 0, %s29
      %s32 = sadd.s32 1, %s12
      %s33 = scalar_select %p30, %s32, %s12
      %p34 = scmp.ge.s32.totalorder %s33, 1
      %s35 = scalar_select %p34, 0, %s33
      %s36 = sadd.s32 1, %s11
      %s37 = scalar_select %p34, %s36, %s11
      %p38 = scmp.ge.s32.totalorder %s37, 16
      %s39 = scalar_select %p38, 0, %s37
      %s40 = sadd.s32 1, %s10
      %s41 = scalar_select %p38, %s40, %s10
      %p42 = scmp.ge.s32.totalorder %s41, 2
      %s43 = scalar_select %p42, 0, %s41
      %p44 = scmp.le.s32.totalorder 1, %s3
      %p45 = scmp.lt.s32.totalorder %s3, 33
      %p46 = pnand %p44, %p45
      %p47 = pneg %p46
      // Predicated region
      $region9: #{custom-call.12} parent=5 // pred_check
        _
      $region10: #{custom-call.12} parent=5 // pred_check_branch
        %49 = sbr.rel (%p46) target = $region12
      $region11: #{custom-call.12} parent=5 // pred_region
        %s50 = ssub.s32 %s3, 1
      $region12: #{custom-call.12} parent=5 // pred_fallthru
        _
      %p51 = scmp.lt.s32.totalorder %s3, 32
      // Predicated region
      $region13: #{custom-call.12} parent=5 // pred_check
        %p52 = pneg %p51
      $region14: #{custom-call.12} parent=5 // pred_check_branch
        %54 = sbr.rel (%p52) target = $region16
      $region15: #{custom-call.12} parent=5 // pred_region
        %s55 = sand.u32 %s3, 1
        %s56 = sand.u32 %s3, 1
        %s57 = smul.addr %s56, 4
        %s58 = scalar_lea.vmem [#allocation1], %s57
        %s59 = sadd.s32 %s14, %s13
        %s60 = sadd.s32 %s59, %s12
        %s61 = sadd.s32 %s60, %s11
        %s62 = smul.addr %s10, 16
        %s63 = sadd.s32 %s61, %s62
        %s64 = smul.addr %s63, 4
        %s65 = scalar_lea.vmem %s0, %s64
        // Predicated region
        $region17: #{custom-call.12} parent=15 // pred_check
          _
        $region18: #{custom-call.12} parent=15 // pred_check_branch
          %67 = sbr.rel (0) target = $region20
        $region19: #{custom-call.12} parent=15 // pred_region
          // Predicated region
          $region21: #{custom-call.12} parent=19 // pred_check
            _
          $region22: #{custom-call.12} parent=19 // pred_check_branch
            %69 = sbr.rel target = $region24
          $region23: #{custom-call.12} parent=19 // pred_region
            // Predicated region
            $region36: #{custom-call.12} parent=23 // pred_check
              _
            $region37: #{custom-call.12} parent=23 // pred_check_branch
              %85 = sbr.rel (0) target = $region39
            $region38: #{custom-call.12} parent=23 // pred_region
              %s87 = ssub.s32 16, 1
              loop: start=0, step=1, limit=1
              $region40: #{custom-call.12} parent=38 // loop_pre_header
                _
              $region41: #{custom-call.12} parent=38 // loop_header
                %s89 = sphi 0, %s93
                %p90 = scmp.ge.s32.totalorder %s89, 1
                %s94 = sphi %s65, %s65
                %s95 = sphi %s58, %s58
              $region42: #{custom-call.12} parent=38 // loop_header_branch
                %92 = sbr.rel (%p90) target = $region46
              $region43: #{custom-call.12} parent=38 // loop_body
                %v96 = vld [vmem:[%s94] sm:%s87]
                %97 = vst [vmem:[%s95] sm:%s87] %v96
              $region44: #{custom-call.12} parent=38 // loop_footer
                %s93 = sadd.s32 1, %s89
              $region45: #{custom-call.12} parent=38 // loop_footer_branch
                %88 = sbr.rel target = $region41
              $region46: #{custom-call.12} parent=38 // loop_exit
                _
            $region39: #{custom-call.12} parent=23 // pred_fallthru
              _
          $region24: #{custom-call.12} parent=19 // pred_fallthru
            _
          // Predicated region
          $region25: #{custom-call.12} parent=19 // pred_check
            _
          $region26: #{custom-call.12} parent=19 // pred_check_branch
            %71 = sbr.rel (0) target = $region28
          $region27: #{custom-call.12} parent=19 // pred_region
            %s73 = ssub.s32 16, 1
            loop: start=0, step=1, limit=1
            $region29: #{custom-call.12} parent=27 // loop_pre_header
              _
            $region30: #{custom-call.12} parent=27 // loop_header
              %s75 = sphi 0, %s79
              %p76 = scmp.ge.s32.totalorder %s75, 1
              %s80 = sphi %s65, %s65
              %s81 = sphi %s58, %s58
            $region31: #{custom-call.12} parent=27 // loop_header_branch
              %78 = sbr.rel (%p76) target = $region35
            $region32: #{custom-call.12} parent=27 // loop_body
              %v82 = vld [vmem:[%s80] sm:%s73]
              %83 = vst [vmem:[%s81] sm:%s73] %v82
            $region33: #{custom-call.12} parent=27 // loop_footer
              %s79 = sadd.s32 1, %s75
            $region34: #{custom-call.12} parent=27 // loop_footer_branch
              %74 = sbr.rel target = $region30
            $region35: #{custom-call.12} parent=27 // loop_exit
              _
          $region28: #{custom-call.12} parent=19 // pred_fallthru
            _
        $region20: #{custom-call.12} parent=15 // pred_fallthru
          _
        %98 = vnop
      $region16: #{custom-call.12} parent=5 // pred_fallthru
        _
      %p99 = scmp.le.s32.totalorder 1, %s3
      %p100 = scmp.lt.s32.totalorder %s3, 33
      %p101 = pnand %p99, %p100
      %p102 = pneg %p101
      // Predicated region
      $region47: #{custom-call.12} parent=5 // pred_check
        _
      $region48: #{custom-call.12} parent=5 // pred_check_branch
        %104 = sbr.rel (%p101) target = $region50
      $region49: #{custom-call.12} parent=5 // pred_region
        #allocation4 [shape = 'f32[3,3]{1,0}', space=vmem, size = 0x1000, scoped, tag = 'rescaled input a']
        %s105 = ssub.s32 %s3, 1
        %s106 = sand.u32 %s8, 1
        %s107 = sand.u32 %s8, 1
        %s108 = smul.addr %s107, 4
        %s109 = scalar_lea.vmem [#allocation1], %s108
        %s110 = sand.u32 %s8, 1
        %s111 = sand.u32 %s8, 1
        %s112 = smul.addr %s111, 4
        %s113 = scalar_lea.vmem [#allocation1], %s112
        %s114 = sand.u32 %s8, 1
        %s115 = sand.u32 %s8, 1
        %s116 = smul.addr %s115, 4
        %s117 = scalar_lea.vmem [#allocation3], %s116
        %s119 = ssub.s32 16, 1
        %v120 = vld [vmem:[%s113] sm:%s119]
        %121 = vst [vmem:[#allocation0] sm:%s119] %v120
        %v122 = vlaneseq
        %v123 = vand.u32 %v122, 127
        %vm124 = vcmp.lt.s32.totalorder %v123, 3
        %v125 = vlaneseq
        %v126 = vshrl.u32 %v125, 7
        %vm128 = vcmp.eq.s32.totalorder %v126, %v123
        %v129 = vld [vmem:[#allocation0] sm:$0xff]
        %v130 = vsel %vm128, %v129, 0.0
        %131 = vadd.xlane.f32.xlu0 %v130
        %v132 = vpop.xlane.xlu0 %131
        %vm133 = vcmp.le.s32.totalorder %v126, %v123
        %vm134 = vmand %vm133, %vm124
        %v135 = vsel %vm134, %v129, 0.0
        %v136 = vrcp.pop %v132
        %v137 = vmul.f32 %v132, %v136
        %v138 = vsub.f32 1.0, %v137
        %v139 = vmul.f32 %v136, %v138
        %v140 = vadd.f32 %v136, %v139
        %vm141 = vweird.f32 %v132
        %vm142 = vweird.f32 %v136
        %vm143 = vmor %vm141, %vm142
        %v144 = vsel %vm143, %v136, %v140
        %v145 = vand.u32 2147483647, %v132
        %vm146 = vcmp.eq.f32.partialorder %v145, 8.507059e+37
        %v147 = vand.u32 %v132, 2147483648
        %v148 = vor.u32 1.1754944e-38, %v147
        %v149 = vsel %vm146, %v148, %v144
        %v150 = vmul.f32 %v135, %v149
        %151 = vst [vmem:[#allocation4] sm:$0xff] %v150
        %v152 = vlaneseq
        %v153 = vand.u32 %v152, 127
        %v154 = vlaneseq
        %v155 = vshrl.u32 %v154, 7
        %vm157 = vcmp.eq.s32.totalorder %v153, %v155
        %v158 = vlaneseq
        %v159 = vand.u32 %v158, 127
        %vm160 = vcmp.eq.s32.totalorder %v159, 2
        %v161 = vsel %vm160, 1.0, -1.0
        %v162 = vsel %vm157, %v161, 0.0
        %s163 = scalar_lea.vmem [#allocation4], 1
        %v164 = vld [vmem:[%s163] ss:$0 sm:$0xff]
        %v165 = vxor.u32 %v164, 2147483648
        %v166 = vlaneseq
        %v167 = vand.u32 %v166, 127
        %vm168 = vcmp.eq.s32.totalorder %v167, 1
        %v169 = vmul.f32 %v165, %v162
        %170 = vadd.xlane.f32.xlu0 %v169
        %v171 = vpop.xlane.xlu0 %170
        %v172 = vsel %vm168, %v171, %v162
        %v173 = vld [vmem:[#allocation4] ss:$0 sm:$0xff]
        %v174 = vxor.u32 %v173, 2147483648
        %v175 = vlaneseq
        %v176 = vand.u32 %v175, 127
        %vm177 = vcmp.eq.s32.totalorder %v176, 0
        %v178 = vmul.f32 %v174, %v172
        %179 = vadd.xlane.f32.xlu0 %v178
        %v180 = vpop.xlane.xlu0 %179
        %v181 = vsel %vm177, %v180, %v172
        %v182 = vrcp.pop %v132
        %v183 = vmul.f32 %v132, %v182
        %v184 = vsub.f32 1.0, %v183
        %v185 = vmul.f32 %v182, %v184
        %v186 = vadd.f32 %v182, %v185
        %vm187 = vweird.f32 %v132
        %vm188 = vweird.f32 %v182
        %vm189 = vmor %vm187, %vm188
        %v190 = vsel %vm189, %v182, %v186
        %v191 = vand.u32 2147483647, %v132
        %vm192 = vcmp.eq.f32.partialorder %v191, 8.507059e+37
        %v193 = vand.u32 %v132, 2147483648
        %v194 = vor.u32 1.1754944e-38, %v193
        %v195 = vsel %vm192, %v194, %v190
        %v196 = vmul.f32 %v181, %v195
        %vm197 = vweird.f32 %v132
        %v198 = vsel %vm197, %v181, %v196
        %199 = vst [vmem:[#allocation2] sm:$0xff] %v198
        %s201 = ssub.s32 16, 1
        %v202 = vld [vmem:[#allocation2] sm:%s201]
        %s204 = ssub.s32 16, 1
        %205 = vst [vmem:[%s117] sm:%s204] %v202
        %s206 = sand.u32 %s8, 1
        %s207 = sand.u32 %s8, 1
        %s208 = smul.addr %s207, 4
        %s209 = scalar_lea.vmem [#allocation3], %s208
        %s210 = sadd.s32 %s19, %s18
        %s211 = sadd.s32 %s210, %s17
        %s212 = sadd.s32 %s211, %s16
        %s213 = smul.addr %s15, 16
        %s214 = sadd.s32 %s212, %s213
        %s215 = smul.addr %s214, 4
        %s216 = scalar_lea.vmem %s1, %s215
        // Predicated region
        $region51: #{custom-call.12} parent=49 // pred_check
          _
        $region52: #{custom-call.12} parent=49 // pred_check_branch
          %218 = sbr.rel (0) target = $region54
        $region53: #{custom-call.12} parent=49 // pred_region
          // Predicated region
          $region55: #{custom-call.12} parent=53 // pred_check
            _
          $region56: #{custom-call.12} parent=53 // pred_check_branch
            %220 = sbr.rel target = $region58
          $region57: #{custom-call.12} parent=53 // pred_region
            // Predicated region
            $region70: #{custom-call.12} parent=57 // pred_check
              _
            $region71: #{custom-call.12} parent=57 // pred_check_branch
              %236 = sbr.rel (0) target = $region73
            $region72: #{custom-call.12} parent=57 // pred_region
              %s238 = ssub.s32 16, 1
              loop: start=0, step=1, limit=1
              $region74: #{custom-call.12} parent=72 // loop_pre_header
                _
              $region75: #{custom-call.12} parent=72 // loop_header
                %s240 = sphi 0, %s244
                %p241 = scmp.ge.s32.totalorder %s240, 1
                %s245 = sphi %s209, %s209
                %s246 = sphi %s216, %s216
              $region76: #{custom-call.12} parent=72 // loop_header_branch
                %243 = sbr.rel (%p241) target = $region80
              $region77: #{custom-call.12} parent=72 // loop_body
                %v247 = vld [vmem:[%s245] sm:%s238]
                %248 = vst [vmem:[%s246] sm:%s238] %v247
              $region78: #{custom-call.12} parent=72 // loop_footer
                %s244 = sadd.s32 1, %s240
              $region79: #{custom-call.12} parent=72 // loop_footer_branch
                %239 = sbr.rel target = $region75
              $region80: #{custom-call.12} parent=72 // loop_exit
                _
            $region73: #{custom-call.12} parent=57 // pred_fallthru
              _
          $region58: #{custom-call.12} parent=53 // pred_fallthru
            _
          // Predicated region
          $region59: #{custom-call.12} parent=53 // pred_check
            _
          $region60: #{custom-call.12} parent=53 // pred_check_branch
            %222 = sbr.rel (0) target = $region62
          $region61: #{custom-call.12} parent=53 // pred_region
            %s224 = ssub.s32 16, 1
            loop: start=0, step=1, limit=1
            $region63: #{custom-call.12} parent=61 // loop_pre_header
              _
            $region64: #{custom-call.12} parent=61 // loop_header
              %s226 = sphi 0, %s230
              %p227 = scmp.ge.s32.totalorder %s226, 1
              %s231 = sphi %s209, %s209
              %s232 = sphi %s216, %s216
            $region65: #{custom-call.12} parent=61 // loop_header_branch
              %229 = sbr.rel (%p227) target = $region69
            $region66: #{custom-call.12} parent=61 // loop_body
              %v233 = vld [vmem:[%s231] sm:%s224]
              %234 = vst [vmem:[%s232] sm:%s224] %v233
            $region67: #{custom-call.12} parent=61 // loop_footer
              %s230 = sadd.s32 1, %s226
            $region68: #{custom-call.12} parent=61 // loop_footer_branch
              %225 = sbr.rel target = $region64
            $region69: #{custom-call.12} parent=61 // loop_exit
              _
          $region62: #{custom-call.12} parent=53 // pred_fallthru
            _
        $region54: #{custom-call.12} parent=49 // pred_fallthru
          _
        %249 = vnop
      $region50: #{custom-call.12} parent=5 // pred_fallthru
        _
      %p250 = scmp.le.s32.totalorder 2, %s3
      // Predicated region
      $region81: #{custom-call.12} parent=5 // pred_check
        %p251 = pneg %p250
      $region82: #{custom-call.12} parent=5 // pred_check_branch
        %253 = sbr.rel (%p251) target = $region84
      $region83: #{custom-call.12} parent=5 // pred_region
        %s254 = ssub.s32 %s3, 2
        %s255 = sand.u32 %s9, 1
        %s256 = sand.u32 %s9, 1
        %s257 = smul.addr %s256, 4
        %s258 = scalar_lea.vmem [#allocation3], %s257
      $region84: #{custom-call.12} parent=5 // pred_fallthru
        _
    $region6: #{custom-call.12} parent=1 // loop_footer
      %s7 = sadd.s32 1, %s3
    $region7: #{custom-call.12} parent=1 // loop_footer_branch
      %2 = sbr.rel target = $region3
    $region8: #{custom-call.12} parent=1 // loop_exit
      _

// kernel: custom-call.13
$region0: #{custom-call.13}
  %s0 = inlined_call_operand.vmem [shape: f32[2,16,1,3,3], index: 0, kind: input, shape index: {}]
  %s1 = inlined_call_operand.vmem [shape: f32[2,16,1,3,3], index: 1, kind: output, shape index: {}]
  $region1: #{custom-call.13} parent=0
    #allocation0 [shape = 'u8[4096]{0}', space=vmem, size = 0x1000, scoped, tag = 'operand span for operand 0']
    #allocation1 [shape = 'u8[4096]{0}', space=vmem, size = 0x1000, scoped, tag = 'packed  for operand 0']
    #allocation2 [shape = 'u8[4096]{0}', space=vmem, size = 0x1000, scoped, tag = 'operand span for operand 1']
    #allocation3 [shape = 'u8[4096]{0}', space=vmem, size = 0x1000, scoped, tag = 'packed  for operand 1']
    loop: start=0, step=1, limit=34
    $region2: #{custom-call.13} parent=1 // loop_pre_header
      _
    $region3: #{custom-call.13} parent=1 // loop_header
      %s3 = sphi 0, %s7
      %p4 = scmp.ge.s32.totalorder %s3, 34
      %s10 = sphi 0, %s43
      %s11 = sphi 0, %s39
      %s12 = sphi 0, %s35
      %s13 = sphi 0, %s31
      %s14 = sphi 0, %s27
      %s15 = sphi 0, %s10
      %s16 = sphi 0, %s11
      %s17 = sphi 0, %s12
      %s18 = sphi 0, %s13
      %s19 = sphi 0, %s14
      %s20 = sphi 0, %s15
      %s21 = sphi 0, %s16
      %s22 = sphi 0, %s17
      %s23 = sphi 0, %s18
      %s24 = sphi 0, %s19
    $region4: #{custom-call.13} parent=1 // loop_header_branch
      %6 = sbr.rel (%p4) target = $region8
    $region5: #{custom-call.13} parent=1 // loop_body
      %s8 = ssub.s32 %s3, 1
      %s9 = ssub.s32 %s3, 2
      %s25 = sadd.s32 1, %s14
      %p26 = scmp.ge.s32.totalorder %s25, 1
      %s27 = scalar_select %p26, 0, %s25
      %s28 = sadd.s32 1, %s13
      %s29 = scalar_select %p26, %s28, %s13
      %p30 = scmp.ge.s32.totalorder %s29, 1
      %s31 = scalar_select %p30, 0, %s29
      %s32 = sadd.s32 1, %s12
      %s33 = scalar_select %p30, %s32, %s12
      %p34 = scmp.ge.s32.totalorder %s33, 1
      %s35 = scalar_select %p34, 0, %s33
      %s36 = sadd.s32 1, %s11
      %s37 = scalar_select %p34, %s36, %s11
      %p38 = scmp.ge.s32.totalorder %s37, 16
      %s39 = scalar_select %p38, 0, %s37
      %s40 = sadd.s32 1, %s10
      %s41 = scalar_select %p38, %s40, %s10
      %p42 = scmp.ge.s32.totalorder %s41, 2
      %s43 = scalar_select %p42, 0, %s41
      %p44 = scmp.le.s32.totalorder 1, %s3
      %p45 = scmp.lt.s32.totalorder %s3, 33
      %p46 = pnand %p44, %p45
      %p47 = pneg %p46
      // Predicated region
      $region9: #{custom-call.13} parent=5 // pred_check
        _
      $region10: #{custom-call.13} parent=5 // pred_check_branch
        %49 = sbr.rel (%p46) target = $region12
      $region11: #{custom-call.13} parent=5 // pred_region
        %s50 = ssub.s32 %s3, 1
      $region12: #{custom-call.13} parent=5 // pred_fallthru
        _
      %p51 = scmp.lt.s32.totalorder %s3, 32
      // Predicated region
      $region13: #{custom-call.13} parent=5 // pred_check
        %p52 = pneg %p51
      $region14: #{custom-call.13} parent=5 // pred_check_branch
        %54 = sbr.rel (%p52) target = $region16
      $region15: #{custom-call.13} parent=5 // pred_region
        %s55 = sand.u32 %s3, 1
        %s56 = sand.u32 %s3, 1
        %s57 = smul.addr %s56, 4
        %s58 = scalar_lea.vmem [#allocation1], %s57
        %s59 = sadd.s32 %s14, %s13
        %s60 = sadd.s32 %s59, %s12
        %s61 = sadd.s32 %s60, %s11
        %s62 = smul.addr %s10, 16
        %s63 = sadd.s32 %s61, %s62
        %s64 = smul.addr %s63, 4
        %s65 = scalar_lea.vmem %s0, %s64
        // Predicated region
        $region17: #{custom-call.13} parent=15 // pred_check
          _
        $region18: #{custom-call.13} parent=15 // pred_check_branch
          %67 = sbr.rel (0) target = $region20
        $region19: #{custom-call.13} parent=15 // pred_region
          // Predicated region
          $region21: #{custom-call.13} parent=19 // pred_check
            _
          $region22: #{custom-call.13} parent=19 // pred_check_branch
            %69 = sbr.rel target = $region24
          $region23: #{custom-call.13} parent=19 // pred_region
            // Predicated region
            $region36: #{custom-call.13} parent=23 // pred_check
              _
            $region37: #{custom-call.13} parent=23 // pred_check_branch
              %85 = sbr.rel (0) target = $region39
            $region38: #{custom-call.13} parent=23 // pred_region
              %s87 = ssub.s32 16, 1
              loop: start=0, step=1, limit=1
              $region40: #{custom-call.13} parent=38 // loop_pre_header
                _
              $region41: #{custom-call.13} parent=38 // loop_header
                %s89 = sphi 0, %s93
                %p90 = scmp.ge.s32.totalorder %s89, 1
                %s94 = sphi %s65, %s65
                %s95 = sphi %s58, %s58
              $region42: #{custom-call.13} parent=38 // loop_header_branch
                %92 = sbr.rel (%p90) target = $region46
              $region43: #{custom-call.13} parent=38 // loop_body
                %v96 = vld [vmem:[%s94] sm:%s87]
                %97 = vst [vmem:[%s95] sm:%s87] %v96
              $region44: #{custom-call.13} parent=38 // loop_footer
                %s93 = sadd.s32 1, %s89
              $region45: #{custom-call.13} parent=38 // loop_footer_branch
                %88 = sbr.rel target = $region41
              $region46: #{custom-call.13} parent=38 // loop_exit
                _
            $region39: #{custom-call.13} parent=23 // pred_fallthru
              _
          $region24: #{custom-call.13} parent=19 // pred_fallthru
            _
          // Predicated region
          $region25: #{custom-call.13} parent=19 // pred_check
            _
          $region26: #{custom-call.13} parent=19 // pred_check_branch
            %71 = sbr.rel (0) target = $region28
          $region27: #{custom-call.13} parent=19 // pred_region
            %s73 = ssub.s32 16, 1
            loop: start=0, step=1, limit=1
            $region29: #{custom-call.13} parent=27 // loop_pre_header
              _
            $region30: #{custom-call.13} parent=27 // loop_header
              %s75 = sphi 0, %s79
              %p76 = scmp.ge.s32.totalorder %s75, 1
              %s80 = sphi %s65, %s65
              %s81 = sphi %s58, %s58
            $region31: #{custom-call.13} parent=27 // loop_header_branch
              %78 = sbr.rel (%p76) target = $region35
            $region32: #{custom-call.13} parent=27 // loop_body
              %v82 = vld [vmem:[%s80] sm:%s73]
              %83 = vst [vmem:[%s81] sm:%s73] %v82
            $region33: #{custom-call.13} parent=27 // loop_footer
              %s79 = sadd.s32 1, %s75
            $region34: #{custom-call.13} parent=27 // loop_footer_branch
              %74 = sbr.rel target = $region30
            $region35: #{custom-call.13} parent=27 // loop_exit
              _
          $region28: #{custom-call.13} parent=19 // pred_fallthru
            _
        $region20: #{custom-call.13} parent=15 // pred_fallthru
          _
        %98 = vnop
      $region16: #{custom-call.13} parent=5 // pred_fallthru
        _
      %p99 = scmp.le.s32.totalorder 1, %s3
      %p100 = scmp.lt.s32.totalorder %s3, 33
      %p101 = pnand %p99, %p100
      %p102 = pneg %p101
      // Predicated region
      $region47: #{custom-call.13} parent=5 // pred_check
        _
      $region48: #{custom-call.13} parent=5 // pred_check_branch
        %104 = sbr.rel (%p101) target = $region50
      $region49: #{custom-call.13} parent=5 // pred_region
        #allocation4 [shape = 'f32[3,3]{1,0}', space=vmem, size = 0x1000, scoped, tag = 'rescaled input a']
        %s105 = ssub.s32 %s3, 1
        %s106 = sand.u32 %s8, 1
        %s107 = sand.u32 %s8, 1
        %s108 = smul.addr %s107, 4
        %s109 = scalar_lea.vmem [#allocation1], %s108
        %s110 = sand.u32 %s8, 1
        %s111 = sand.u32 %s8, 1
        %s112 = smul.addr %s111, 4
        %s113 = scalar_lea.vmem [#allocation1], %s112
        %s114 = sand.u32 %s8, 1
        %s115 = sand.u32 %s8, 1
        %s116 = smul.addr %s115, 4
        %s117 = scalar_lea.vmem [#allocation3], %s116
        %s119 = ssub.s32 16, 1
        %v120 = vld [vmem:[%s113] sm:%s119]
        %121 = vst [vmem:[#allocation0] sm:%s119] %v120
        %v122 = vlaneseq
        %v123 = vand.u32 %v122, 127
        %vm124 = vcmp.lt.s32.totalorder %v123, 3
        %v125 = vlaneseq
        %v126 = vshrl.u32 %v125, 7
        %vm128 = vcmp.eq.s32.totalorder %v126, %v123
        %v129 = vld [vmem:[#allocation0] sm:$0xff]
        %v130 = vsel %vm128, %v129, 0.0
        %131 = vadd.xlane.f32.xlu0 %v130
        %v132 = vpop.xlane.xlu0 %131
        %vm133 = vcmp.ge.s32.totalorder %v126, %v123
        %vm134 = vmand %vm133, %vm124
        %v135 = vsel %vm134, %v129, 0.0
        %v136 = vrcp.pop %v132
        %v137 = vmul.f32 %v132, %v136
        %v138 = vsub.f32 1.0, %v137
        %v139 = vmul.f32 %v136, %v138
        %v140 = vadd.f32 %v136, %v139
        %vm141 = vweird.f32 %v132
        %vm142 = vweird.f32 %v136
        %vm143 = vmor %vm141, %vm142
        %v144 = vsel %vm143, %v136, %v140
        %v145 = vand.u32 2147483647, %v132
        %vm146 = vcmp.eq.f32.partialorder %v145, 8.507059e+37
        %v147 = vand.u32 %v132, 2147483648
        %v148 = vor.u32 1.1754944e-38, %v147
        %v149 = vsel %vm146, %v148, %v144
        %v150 = vmul.f32 %v135, %v149
        %151 = vst [vmem:[#allocation4] sm:$0xff] %v150
        %v152 = vlaneseq
        %v153 = vand.u32 %v152, 127
        %v154 = vlaneseq
        %v155 = vshrl.u32 %v154, 7
        %vm157 = vcmp.eq.s32.totalorder %v153, %v155
        %v158 = vlaneseq
        %v159 = vand.u32 %v158, 127
        %vm160 = vcmp.eq.s32.totalorder %v159, 0
        %v161 = vsel %vm160, 1.0, -1.0
        %v162 = vsel %vm157, %v161, 0.0
        %s163 = scalar_lea.vmem [#allocation4], 1
        %v164 = vld [vmem:[%s163] ss:$0 sm:$0xff]
        %v165 = vxor.u32 %v164, 2147483648
        %v166 = vlaneseq
        %v167 = vand.u32 %v166, 127
        %vm168 = vcmp.eq.s32.totalorder %v167, 1
        %v169 = vmul.f32 %v165, %v162
        %170 = vadd.xlane.f32.xlu0 %v169
        %v171 = vpop.xlane.xlu0 %170
        %v172 = vsel %vm168, %v171, %v162
        %s173 = scalar_lea.vmem [#allocation4], 2
        %v174 = vld [vmem:[%s173] ss:$0 sm:$0xff]
        %v175 = vxor.u32 %v174, 2147483648
        %v176 = vlaneseq
        %v177 = vand.u32 %v176, 127
        %vm178 = vcmp.eq.s32.totalorder %v177, 2
        %v179 = vmul.f32 %v175, %v172
        %180 = vadd.xlane.f32.xlu0 %v179
        %v181 = vpop.xlane.xlu0 %180
        %v182 = vsel %vm178, %v181, %v172
        %v183 = vrcp.pop %v132
        %v184 = vmul.f32 %v132, %v183
        %v185 = vsub.f32 1.0, %v184
        %v186 = vmul.f32 %v183, %v185
        %v187 = vadd.f32 %v183, %v186
        %vm188 = vweird.f32 %v132
        %vm189 = vweird.f32 %v183
        %vm190 = vmor %vm188, %vm189
        %v191 = vsel %vm190, %v183, %v187
        %v192 = vand.u32 2147483647, %v132
        %vm193 = vcmp.eq.f32.partialorder %v192, 8.507059e+37
        %v194 = vand.u32 %v132, 2147483648
        %v195 = vor.u32 1.1754944e-38, %v194
        %v196 = vsel %vm193, %v195, %v191
        %v197 = vmul.f32 %v182, %v196
        %vm198 = vweird.f32 %v132
        %v199 = vsel %vm198, %v182, %v197
        %200 = vst [vmem:[#allocation2] sm:$0xff] %v199
        %s202 = ssub.s32 16, 1
        %v203 = vld [vmem:[#allocation2] sm:%s202]
        %s205 = ssub.s32 16, 1
        %206 = vst [vmem:[%s117] sm:%s205] %v203
        %s207 = sand.u32 %s8, 1
        %s208 = sand.u32 %s8, 1
        %s209 = smul.addr %s208, 4
        %s210 = scalar_lea.vmem [#allocation3], %s209
        %s211 = sadd.s32 %s19, %s18
        %s212 = sadd.s32 %s211, %s17
        %s213 = sadd.s32 %s212, %s16
        %s214 = smul.addr %s15, 16
        %s215 = sadd.s32 %s213, %s214
        %s216 = smul.addr %s215, 4
        %s217 = scalar_lea.vmem %s1, %s216
        // Predicated region
        $region51: #{custom-call.13} parent=49 // pred_check
          _
        $region52: #{custom-call.13} parent=49 // pred_check_branch
          %219 = sbr.rel (0) target = $region54
        $region53: #{custom-call.13} parent=49 // pred_region
          // Predicated region
          $region55: #{custom-call.13} parent=53 // pred_check
            _
          $region56: #{custom-call.13} parent=53 // pred_check_branch
            %221 = sbr.rel target = $region58
          $region57: #{custom-call.13} parent=53 // pred_region
            // Predicated region
            $region70: #{custom-call.13} parent=57 // pred_check
              _
            $region71: #{custom-call.13} parent=57 // pred_check_branch
              %237 = sbr.rel (0) target = $region73
            $region72: #{custom-call.13} parent=57 // pred_region
              %s239 = ssub.s32 16, 1
              loop: start=0, step=1, limit=1
              $region74: #{custom-call.13} parent=72 // loop_pre_header
                _
              $region75: #{custom-call.13} parent=72 // loop_header
                %s241 = sphi 0, %s245
                %p242 = scmp.ge.s32.totalorder %s241, 1
                %s246 = sphi %s210, %s210
                %s247 = sphi %s217, %s217
              $region76: #{custom-call.13} parent=72 // loop_header_branch
                %244 = sbr.rel (%p242) target = $region80
              $region77: #{custom-call.13} parent=72 // loop_body
                %v248 = vld [vmem:[%s246] sm:%s239]
                %249 = vst [vmem:[%s247] sm:%s239] %v248
              $region78: #{custom-call.13} parent=72 // loop_footer
                %s245 = sadd.s32 1, %s241
              $region79: #{custom-call.13} parent=72 // loop_footer_branch
                %240 = sbr.rel target = $region75
              $region80: #{custom-call.13} parent=72 // loop_exit
                _
            $region73: #{custom-call.13} parent=57 // pred_fallthru
              _
          $region58: #{custom-call.13} parent=53 // pred_fallthru
            _
          // Predicated region
          $region59: #{custom-call.13} parent=53 // pred_check
            _
          $region60: #{custom-call.13} parent=53 // pred_check_branch
            %223 = sbr.rel (0) target = $region62
          $region61: #{custom-call.13} parent=53 // pred_region
            %s225 = ssub.s32 16, 1
            loop: start=0, step=1, limit=1
            $region63: #{custom-call.13} parent=61 // loop_pre_header
              _
            $region64: #{custom-call.13} parent=61 // loop_header
              %s227 = sphi 0, %s231
              %p228 = scmp.ge.s32.totalorder %s227, 1
              %s232 = sphi %s210, %s210
              %s233 = sphi %s217, %s217
            $region65: #{custom-call.13} parent=61 // loop_header_branch
              %230 = sbr.rel (%p228) target = $region69
            $region66: #{custom-call.13} parent=61 // loop_body
              %v234 = vld [vmem:[%s232] sm:%s225]
              %235 = vst [vmem:[%s233] sm:%s225] %v234
            $region67: #{custom-call.13} parent=61 // loop_footer
              %s231 = sadd.s32 1, %s227
            $region68: #{custom-call.13} parent=61 // loop_footer_branch
              %226 = sbr.rel target = $region64
            $region69: #{custom-call.13} parent=61 // loop_exit
              _
          $region62: #{custom-call.13} parent=53 // pred_fallthru
            _
        $region54: #{custom-call.13} parent=49 // pred_fallthru
          _
        %250 = vnop
      $region50: #{custom-call.13} parent=5 // pred_fallthru
        _
      %p251 = scmp.le.s32.totalorder 2, %s3
      // Predicated region
      $region81: #{custom-call.13} parent=5 // pred_check
        %p252 = pneg %p251
      $region82: #{custom-call.13} parent=5 // pred_check_branch
        %254 = sbr.rel (%p252) target = $region84
      $region83: #{custom-call.13} parent=5 // pred_region
        %s255 = ssub.s32 %s3, 2
        %s256 = sand.u32 %s9, 1
        %s257 = sand.u32 %s9, 1
        %s258 = smul.addr %s257, 4
        %s259 = scalar_lea.vmem [#allocation3], %s258
      $region84: #{custom-call.13} parent=5 // pred_fallthru
        _
    $region6: #{custom-call.13} parent=1 // loop_footer
      %s7 = sadd.s32 1, %s3
    $region7: #{custom-call.13} parent=1 // loop_footer_branch
      %2 = sbr.rel target = $region3
    $region8: #{custom-call.13} parent=1 // loop_exit
      _

</llo_original>
